<compile_context>
chip_gen: v7x
topology: tpu7x:2x2x1
jax: 0.10.0
libtpu: 0.0.40
codegen_flags: <defaults>
</compile_context>

<pallas_src>
import jax
import jax.numpy as jnp
from jax import lax
from jax.experimental import pallas as pl
from jax.experimental.pallas import tpu as pltpu

STATE_DIM = 80 * 80   # 6400
HIDDEN1 = 200


def nn_estimator_kernel(x_ref, w_ref, b_ref, o_ref):
    # x_ref: (1, STATE_DIM) bf16   w_ref: (HIDDEN1, STATE_DIM) bf16
    # b_ref: (1, HIDDEN1) f32      o_ref: (1, HIDDEN1) f32
    #
    # (1, K) . (N, K)^T -> (1, N), contracting the last dim of both operands
    # (no transpose materialized), f32 accumulation on the MXU.
    y = lax.dot_general(
        x_ref[...], w_ref[...],
        dimension_numbers=(((1,), (1,)), ((), ())),
        preferred_element_type=jnp.float32,
    )
    y = jnp.maximum(y + b_ref[...], 0.0)                    # fc1 + ReLU
    m = jnp.max(y, axis=1, keepdims=True)
    s = jnp.sum(jnp.exp(y - m), axis=1, keepdims=True)
    o_ref[...] = (y - m) - jnp.log(s)                       # log-softmax


def nn_estimator_forward(x, w_bf16, b2_f32):
    """x: any shape with STATE_DIM elements;
    w_bf16: (HIDDEN1, STATE_DIM) bf16, prepared once at init;
    b2_f32: (1, HIDDEN1) f32, prepared once at init."""
    x_flat = x.reshape(1, -1).astype(jnp.bfloat16)          # x.view(1, -1)

    grid_spec = pltpu.PrefetchScalarGridSpec(
        num_scalar_prefetch=0,
        grid=(1,),                                           # collapsed K grid
        in_specs=[
            pl.BlockSpec((1, STATE_DIM), lambda k: (0, 0)),        # x resident
            pl.BlockSpec((HIDDEN1, STATE_DIM), lambda k: (0, 0)),  # whole W, one
                                                                   # contiguous DMA
            pl.BlockSpec((1, HIDDEN1), lambda k: (0, 0)),          # bias resident
        ],
        out_specs=pl.BlockSpec((1, HIDDEN1), lambda k: (0, 0)),
        scratch_shapes=[],
    )

    return pl.pallas_call(
        nn_estimator_kernel,
        out_shape=jax.ShapeDtypeStruct((1, HIDDEN1), jnp.float32),
        grid_spec=grid_spec,
        compiler_params=pltpu.CompilerParams(
            dimension_semantics=("arbitrary",),
        ),
    )(x_flat, w_bf16, b2_f32)


if __name__ == "__main__":
    key = jax.random.PRNGKey(0)
    kx, kw, kb = jax.random.split(key, 3)

    # Deterministic parameter init (mimics nn.Linear default uniform bound).
    bound = 1.0 / jnp.sqrt(jnp.float32(STATE_DIM))
    w = jax.random.uniform(kw, (HIDDEN1, STATE_DIM), jnp.float32, -bound, bound)
    b = jax.random.uniform(kb, (HIDDEN1,), jnp.float32, -bound, bound)

    # One-time parameter prep (not per call): bf16 weight in PyTorch layout,
    # bias already reshaped/cast to the kernel's (1, HIDDEN1) f32 form.
    w_bf16 = w.astype(jnp.bfloat16)
    b2_f32 = b.reshape(1, HIDDEN1).astype(jnp.float32)

    # Example input: a single 80x80 "frame" (flattened inside forward).
    x = jax.random.uniform(kx, (1, 80, 80), jnp.float32)

    out = nn_estimator_forward(x, w_bf16, b2_f32)
    out = jax.block_until_ready(out)

    # Reference in plain JAX using the same bf16 operand precision / f32 acc.
    xb = x.reshape(1, -1).astype(jnp.bfloat16)
    y_ref = lax.dot_general(
        xb, w_bf16, (((1,), (1,)), ((), ())),
        preferred_element_type=jnp.float32,
    ) + b2_f32
    y_ref = jnp.maximum(y_ref, 0.0)
    ref = jax.nn.log_softmax(y_ref, axis=1)

    assert out.shape == (1, HIDDEN1)
    max_err = float(jnp.max(jnp.abs(out - ref)))
    assert jnp.allclose(out, ref, atol=2e-3, rtol=2e-3), max_err

    print("KERNEL_OK")
</pallas_src>

<mosaic_0001>
module attributes {stable_mosaic.version = 11 : i64} {
  func.func @nn_estimator_kernel(%arg0: i32, %arg1: memref<1x6400xbf16, #tpu.memory_space<vmem>>, %arg2: memref<200x6400xbf16, #tpu.memory_space<vmem>>, %arg3: memref<1x200xf32, #tpu.memory_space<vmem>>, %arg4: memref<1x200xf32, #tpu.memory_space<vmem>>) attributes {dimension_semantics = [#tpu.dimension_semantics<arbitrary>], iteration_bounds = array<i64: 1>, scalar_prefetch = 0 : i64, scratch_operands = 0 : i64, tpu.core_type = #tpu.core_type<tc>, window_params = [{pipeline_mode = #tpu.pipeline_mode<synchronous>, transform_indices = @transform_0, window_bounds = array<i64: 1, 6400>}, {pipeline_mode = #tpu.pipeline_mode<synchronous>, transform_indices = @transform_1, window_bounds = array<i64: 200, 6400>}, {pipeline_mode = #tpu.pipeline_mode<synchronous>, transform_indices = @transform_2, window_bounds = array<i64: 1, 200>}, {pipeline_mode = #tpu.pipeline_mode<synchronous>, transform_indices = @transform_3, window_bounds = array<i64: 1, 200>}]} {
    %c0 = arith.constant 0 : index
    %c0_0 = arith.constant 0 : index
    %0 = vector.load %arg1[%c0, %c0_0] : memref<1x6400xbf16, #tpu.memory_space<vmem>>, vector<1x6400xbf16>
    %c0_1 = arith.constant 0 : index
    %c0_2 = arith.constant 0 : index
    %1 = vector.load %arg2[%c0_1, %c0_2] : memref<200x6400xbf16, #tpu.memory_space<vmem>>, vector<200x6400xbf16>
    %cst = arith.constant dense<0.000000e+00> : vector<1x200xf32>
    %2 = tpu.matmul %0, %1, %cst {dimension_numbers = #tpu.dot_dimension_numbers<[1], [1], [0], [0], [0, 0, 1, 0], [], []>} : vector<1x6400xbf16>, vector<200x6400xbf16>, vector<1x200xf32> -> vector<1x200xf32>
    %c0_3 = arith.constant 0 : index
    %c0_4 = arith.constant 0 : index
    %3 = vector.load %arg3[%c0_3, %c0_4] : memref<1x200xf32, #tpu.memory_space<vmem>>, vector<1x200xf32>
    %4 = arith.addf %2, %3 : vector<1x200xf32>
    %cst_5 = arith.constant 0.000000e+00 : f32
    %5 = vector.broadcast %cst_5 : f32 to vector<1x200xf32>
    %6 = arith.maximumf %4, %5 : vector<1x200xf32>
    %cst_6 = arith.constant dense<0xFF800000> : vector<1xf32>
    %7 = vector.multi_reduction <maximumf>, %6, %cst_6 [1] : vector<1x200xf32> to vector<1xf32>
    %8 = vector.shape_cast %7 : vector<1xf32> to vector<1x1xf32>
    %9 = vector.broadcast %8 : vector<1x1xf32> to vector<1x200xf32>
    %10 = arith.subf %6, %9 : vector<1x200xf32>
    %11 = math.exp %10 : vector<1x200xf32>
    %cst_7 = arith.constant dense<0.000000e+00> : vector<1xf32>
    %12 = vector.multi_reduction <add>, %11, %cst_7 [1] : vector<1x200xf32> to vector<1xf32>
    %13 = vector.shape_cast %12 : vector<1xf32> to vector<1x1xf32>
    %14 = vector.broadcast %8 : vector<1x1xf32> to vector<1x200xf32>
    %15 = arith.subf %6, %14 : vector<1x200xf32>
    %16 = math.log %13 : vector<1x1xf32>
    %17 = vector.broadcast %16 : vector<1x1xf32> to vector<1x200xf32>
    %18 = arith.subf %15, %17 : vector<1x200xf32>
    %c0_8 = arith.constant 0 : index
    %c0_9 = arith.constant 0 : index
    %19 = vector.load %arg4[%c0_8, %c0_9] : memref<1x200xf32, #tpu.memory_space<vmem>>, vector<1x200xf32>
    tpu.vector_store %arg4[%c0_8, %c0_9], %18 {strides = array<i32>} : memref<1x200xf32, #tpu.memory_space<vmem>>, vector<1x200xf32>,
    return
  }
  func.func @transform_0(%arg0: i32) -> (i32, i32) {
    %c0_i32 = arith.constant 0 : i32
    %c0_i32_0 = arith.constant 0 : i32
    %c0_i32_1 = arith.constant 0 : i32
    return %c0_i32, %c0_i32_0 : i32, i32
  }
  func.func @transform_1(%arg0: i32) -> (i32, i32) {
    %c0_i32 = arith.constant 0 : i32
    %c0_i32_0 = arith.constant 0 : i32
    %c0_i32_1 = arith.constant 0 : i32
    return %c0_i32, %c0_i32_0 : i32, i32
  }
  func.func @transform_2(%arg0: i32) -> (i32, i32) {
    %c0_i32 = arith.constant 0 : i32
    %c0_i32_0 = arith.constant 0 : i32
    %c0_i32_1 = arith.constant 0 : i32
    return %c0_i32, %c0_i32_0 : i32, i32
  }
  func.func @transform_3(%arg0: i32) -> (i32, i32) {
    %c0_i32 = arith.constant 0 : i32
    %c0_i32_0 = arith.constant 0 : i32
    %c0_i32_1 = arith.constant 0 : i32
    return %c0_i32, %c0_i32_0 : i32, i32
  }
}

</mosaic_0001>

<llo_original>
// kernel: tpu_custom_call.1
$region0: #{tpu_custom_call.1}
  #allocation0 [shape = 'u32[]', space=smem, size = 0x4, offset = 0x4, fixed_abs, tag = 'smem constant byte address 0x4 - core index']
  #allocation1 [shape = 'u32[144,128]{1,0:T(1,128)}', space=vmem, size = 0x12000, scoped, tag = 'internal scratch']
  %s0 = inlined_call_operand.hbm [shape: bf16[1,6400], index: 0, kind: input, shape index: {}]
  %s1 = inlined_call_operand.hbm [shape: bf16[200,6400], index: 1, kind: input, shape index: {}]
  %s2 = inlined_call_operand.hbm [shape: f32[1,200], index: 2, kind: input, shape index: {}]
  %s3 = inlined_call_operand.hbm [shape: f32[1,200], index: 3, kind: output, shape index: {}]
  %s4 = sld [smem:[#allocation0]]
  $region34: #{tpu_custom_call.1} parent=0
    _
  %s6 = ssub.s32 1, %s4
  %s7 = scalar_select 0, %s6, %s4
  $region1: #{tpu_custom_call.1} parent=0
    #allocation2 [shape = 'u8[25600]{0}', space=vmem, size = 0x6400, scoped, tag = 'input window, operand 0, single buffered']
    #allocation3 [shape = 's32[1]{0}', space=sflag, size = 0x4, scoped, tag = 'scoped memory for tpu_custom_call.1']
    #allocation4 [shape = 's32[1]{0}', space=sflag, size = 0x4, scoped, tag = 'scoped memory for tpu_custom_call.1']
    #allocation5 [shape = 'u8[2560000]{0}', space=vmem, size = 0x271000, scoped, tag = 'input window, operand 1, single buffered']
    #allocation6 [shape = 's32[1]{0}', space=sflag, size = 0x4, scoped, tag = 'scoped memory for tpu_custom_call.1']
    #allocation7 [shape = 'u8[1024]{0}', space=vmem, size = 0x400, scoped, tag = 'input window, operand 2, single buffered']
    #allocation8 [shape = 'u8[1024]{0}', space=vmem, size = 0x400, scoped, tag = 'output window, operand 0, single buffered']
    %8 = vsyncpa [#allocation3], 0
    %9 = vsyncpa [#allocation6], 0
    %10 = vsyncpa [#allocation4], 0
    // Predicated region
    $region2: #{tpu_custom_call.1} parent=1 // pred_check
      _
    $region3: #{tpu_custom_call.1} parent=1 // pred_check_branch
      %12 = sbr.rel (0) target = $region5
    $region4: #{tpu_custom_call.1} parent=1 // pred_region
      %s14 = ssub.s32 800, 800
      %15 = vsyncadd [#allocation3], %s14
      %s17 = sshll.u32 [#allocation2], 4
      %s18 = int_to_ptr.vmem [resolvable:$true] %s17
      %20 = dma.hbm_to_vmem [thread:$0]  %s0, 800, %s18, [#allocation3]
    $region5: #{tpu_custom_call.1} parent=1 // pred_fallthru
      _
    // Predicated region
    $region6: #{tpu_custom_call.1} parent=1 // pred_check
      _
    $region7: #{tpu_custom_call.1} parent=1 // pred_check_branch
      %22 = sbr.rel (0) target = $region9
    $region8: #{tpu_custom_call.1} parent=1 // pred_region
      %s24 = ssub.s32 80000, 80000
      %25 = vsyncadd [#allocation6], %s24
      %s26 = sshll.u32 [#allocation5], 4
      %s27 = int_to_ptr.vmem [resolvable:$true] %s26
      %32 = dma.hbm_to_vmem [thread:$0]  %s1, 80000, %s27, [#allocation6], 3200, 3200, 200
    $region9: #{tpu_custom_call.1} parent=1 // pred_fallthru
      _
    // Predicated region
    $region10: #{tpu_custom_call.1} parent=1 // pred_check
      _
    $region11: #{tpu_custom_call.1} parent=1 // pred_check_branch
      %34 = sbr.rel (0) target = $region13
    $region12: #{tpu_custom_call.1} parent=1 // pred_region
      %s36 = ssub.s32 32, 32
      %37 = vsyncadd [#allocation6], %s36
      %s39 = sshll.u32 [#allocation7], 4
      %s40 = int_to_ptr.vmem [resolvable:$true] %s39
      %42 = dma.hbm_to_vmem [thread:$0]  %s2, 32, %s40, [#allocation6]
    $region13: #{tpu_custom_call.1} parent=1 // pred_fallthru
      _
    // Predicated region
    $region14: #{tpu_custom_call.1} parent=1 // pred_check
      _
    $region15: #{tpu_custom_call.1} parent=1 // pred_check_branch
      %44 = sbr.rel (0) target = $region17
    $region16: #{tpu_custom_call.1} parent=1 // pred_region
      %45 = dma.done [#allocation3], 800
    $region17: #{tpu_custom_call.1} parent=1 // pred_fallthru
      _
    // Predicated region
    $region18: #{tpu_custom_call.1} parent=1 // pred_check
      _
    $region19: #{tpu_custom_call.1} parent=1 // pred_check_branch
      %47 = sbr.rel (0) target = $region21
    $region20: #{tpu_custom_call.1} parent=1 // pred_region
      %48 = dma.done [#allocation6], 80000
    $region21: #{tpu_custom_call.1} parent=1 // pred_fallthru
      _
    // Predicated region
    $region22: #{tpu_custom_call.1} parent=1 // pred_check
      _
    $region23: #{tpu_custom_call.1} parent=1 // pred_check_branch
      %50 = sbr.rel (0) target = $region25
    $region24: #{tpu_custom_call.1} parent=1 // pred_region
      %51 = dma.done [#allocation6], 32
    $region25: #{tpu_custom_call.1} parent=1 // pred_fallthru
      _
    %v53 = vld [vmem:[#allocation2] sm:$0xff]
    %v54 = vld [vmem:[#allocation2 + $0x8] sm:$0xff]
    %v55 = vld [vmem:[#allocation2 + $0x10] sm:$0xff]
    %v56 = vld [vmem:[#allocation2 + $0x18] sm:$0xff]
    %v57 = vld [vmem:[#allocation2 + $0x20] sm:$0xff]
    %v58 = vld [vmem:[#allocation2 + $0x28] sm:$0xff]
    %v59 = vld [vmem:[#allocation2 + $0x30] sm:$0x3]
    %v60 = vld [vmem:[#allocation5] sm:$0xff]
    %v61 = vld [vmem:[#allocation5 + $0x8] sm:$0xff]
    %v62 = vld [vmem:[#allocation5 + $0x10] sm:$0xff]
    %v63 = vld [vmem:[#allocation5 + $0x18] sm:$0xff]
    %v64 = vld [vmem:[#allocation5 + $0x20] sm:$0xff]
    %v65 = vld [vmem:[#allocation5 + $0x28] sm:$0xff]
    %v66 = vld [vmem:[#allocation5 + $0x30] sm:$0xff]
    %v67 = vld [vmem:[#allocation5 + $0x38] sm:$0xff]
    %v68 = vld [vmem:[#allocation5 + $0x40] sm:$0xff]
    %v69 = vld [vmem:[#allocation5 + $0x48] sm:$0xff]
    %v70 = vld [vmem:[#allocation5 + $0x50] sm:$0xff]
    %v71 = vld [vmem:[#allocation5 + $0x58] sm:$0xff]
    %v72 = vld [vmem:[#allocation5 + $0x60] sm:$0xff]
    %v73 = vld [vmem:[#allocation5 + $0x68] sm:$0xff]
    %v74 = vld [vmem:[#allocation5 + $0x70] sm:$0xff]
    %v75 = vld [vmem:[#allocation5 + $0x78] sm:$0xff]
    %v76 = vld [vmem:[#allocation5 + $0x80] sm:$0xff]
    %v77 = vld [vmem:[#allocation5 + $0x88] sm:$0xff]
    %v78 = vld [vmem:[#allocation5 + $0x90] sm:$0xff]
    %v79 = vld [vmem:[#allocation5 + $0x98] sm:$0xff]
    %v80 = vld [vmem:[#allocation5 + $0xa0] sm:$0xff]
    %v81 = vld [vmem:[#allocation5 + $0xa8] sm:$0xff]
    %v82 = vld [vmem:[#allocation5 + $0xb0] sm:$0xff]
    %v83 = vld [vmem:[#allocation5 + $0xb8] sm:$0xff]
    %v84 = vld [vmem:[#allocation5 + $0xc0] sm:$0xff]
    %v85 = vld [vmem:[#allocation5 + $0xc8] sm:$0xff]
    %v86 = vld [vmem:[#allocation5 + $0xd0] sm:$0xff]
    %v87 = vld [vmem:[#allocation5 + $0xd8] sm:$0xff]
    %v88 = vld [vmem:[#allocation5 + $0xe0] sm:$0xff]
    %v89 = vld [vmem:[#allocation5 + $0xe8] sm:$0xff]
    %v90 = vld [vmem:[#allocation5 + $0xf0] sm:$0xff]
    %v91 = vld [vmem:[#allocation5 + $0xf8] sm:$0xff]
    %v92 = vld [vmem:[#allocation5 + $0x100] sm:$0xff]
    %v93 = vld [vmem:[#allocation5 + $0x108] sm:$0xff]
    %v94 = vld [vmem:[#allocation5 + $0x110] sm:$0xff]
    %v95 = vld [vmem:[#allocation5 + $0x118] sm:$0xff]
    %v96 = vld [vmem:[#allocation5 + $0x120] sm:$0xff]
    %v97 = vld [vmem:[#allocation5 + $0x128] sm:$0xff]
    %v98 = vld [vmem:[#allocation5 + $0x130] sm:$0xff]
    %v99 = vld [vmem:[#allocation5 + $0x138] sm:$0xff]
    %v100 = vld [vmem:[#allocation5 + $0x140] sm:$0xff]
    %v101 = vld [vmem:[#allocation5 + $0x148] sm:$0xff]
    %v102 = vld [vmem:[#allocation5 + $0x150] sm:$0xff]
    %v103 = vld [vmem:[#allocation5 + $0x158] sm:$0xff]
    %v104 = vld [vmem:[#allocation5 + $0x160] sm:$0xff]
    %v105 = vld [vmem:[#allocation5 + $0x168] sm:$0xff]
    %v106 = vld [vmem:[#allocation5 + $0x170] sm:$0xff]
    %v107 = vld [vmem:[#allocation5 + $0x178] sm:$0xff]
    %v108 = vld [vmem:[#allocation5 + $0x180] sm:$0xff]
    %v109 = vld [vmem:[#allocation5 + $0x188] sm:$0xff]
    %v110 = vld [vmem:[#allocation5 + $0x190] sm:$0xff]
    %v111 = vld [vmem:[#allocation5 + $0x198] sm:$0xff]
    %v112 = vld [vmem:[#allocation5 + $0x1a0] sm:$0xff]
    %v113 = vld [vmem:[#allocation5 + $0x1a8] sm:$0xff]
    %v114 = vld [vmem:[#allocation5 + $0x1b0] sm:$0xff]
    %v115 = vld [vmem:[#allocation5 + $0x1b8] sm:$0xff]
    %v116 = vld [vmem:[#allocation5 + $0x1c0] sm:$0xff]
    %v117 = vld [vmem:[#allocation5 + $0x1c8] sm:$0xff]
    %v118 = vld [vmem:[#allocation5 + $0x1d0] sm:$0xff]
    %v119 = vld [vmem:[#allocation5 + $0x1d8] sm:$0xff]
    %v120 = vld [vmem:[#allocation5 + $0x1e0] sm:$0xff]
    %v121 = vld [vmem:[#allocation5 + $0x1e8] sm:$0xff]
    %v122 = vld [vmem:[#allocation5 + $0x1f0] sm:$0xff]
    %v123 = vld [vmem:[#allocation5 + $0x1f8] sm:$0xff]
    %v124 = vld [vmem:[#allocation5 + $0x200] sm:$0xff]
    %v125 = vld [vmem:[#allocation5 + $0x208] sm:$0xff]
    %v126 = vld [vmem:[#allocation5 + $0x210] sm:$0xff]
    %v127 = vld [vmem:[#allocation5 + $0x218] sm:$0xff]
    %v128 = vld [vmem:[#allocation5 + $0x220] sm:$0xff]
    %v129 = vld [vmem:[#allocation5 + $0x228] sm:$0xff]
    %v130 = vld [vmem:[#allocation5 + $0x230] sm:$0xff]
    %v131 = vld [vmem:[#allocation5 + $0x238] sm:$0xff]
    %v132 = vld [vmem:[#allocation5 + $0x240] sm:$0xff]
    %v133 = vld [vmem:[#allocation5 + $0x248] sm:$0xff]
    %v134 = vld [vmem:[#allocation5 + $0x250] sm:$0xff]
    %v135 = vld [vmem:[#allocation5 + $0x258] sm:$0xff]
    %v136 = vld [vmem:[#allocation5 + $0x260] sm:$0xff]
    %v137 = vld [vmem:[#allocation5 + $0x268] sm:$0xff]
    %v138 = vld [vmem:[#allocation5 + $0x270] sm:$0xff]
    %v139 = vld [vmem:[#allocation5 + $0x278] sm:$0xff]
    %v140 = vld [vmem:[#allocation5 + $0x280] sm:$0xff]
    %v141 = vld [vmem:[#allocation5 + $0x288] sm:$0xff]
    %v142 = vld [vmem:[#allocation5 + $0x290] sm:$0xff]
    %v143 = vld [vmem:[#allocation5 + $0x298] sm:$0xff]
    %v144 = vld [vmem:[#allocation5 + $0x2a0] sm:$0xff]
    %v145 = vld [vmem:[#allocation5 + $0x2a8] sm:$0xff]
    %v146 = vld [vmem:[#allocation5 + $0x2b0] sm:$0xff]
    %v147 = vld [vmem:[#allocation5 + $0x2b8] sm:$0xff]
    %v148 = vld [vmem:[#allocation5 + $0x2c0] sm:$0xff]
    %v149 = vld [vmem:[#allocation5 + $0x2c8] sm:$0xff]
    %v150 = vld [vmem:[#allocation5 + $0x2d0] sm:$0xff]
    %v151 = vld [vmem:[#allocation5 + $0x2d8] sm:$0xff]
    %v152 = vld [vmem:[#allocation5 + $0x2e0] sm:$0xff]
    %v153 = vld [vmem:[#allocation5 + $0x2e8] sm:$0xff]
    %v154 = vld [vmem:[#allocation5 + $0x2f0] sm:$0xff]
    %v155 = vld [vmem:[#allocation5 + $0x2f8] sm:$0xff]
    %v156 = vld [vmem:[#allocation5 + $0x300] sm:$0xff]
    %v157 = vld [vmem:[#allocation5 + $0x308] sm:$0xff]
    %v158 = vld [vmem:[#allocation5 + $0x310] sm:$0xff]
    %v159 = vld [vmem:[#allocation5 + $0x318] sm:$0xff]
    %v160 = vld [vmem:[#allocation5 + $0x320] sm:$0xff]
    %v161 = vld [vmem:[#allocation5 + $0x328] sm:$0xff]
    %v162 = vld [vmem:[#allocation5 + $0x330] sm:$0xff]
    %v163 = vld [vmem:[#allocation5 + $0x338] sm:$0xff]
    %v164 = vld [vmem:[#allocation5 + $0x340] sm:$0xff]
    %v165 = vld [vmem:[#allocation5 + $0x348] sm:$0xff]
    %v166 = vld [vmem:[#allocation5 + $0x350] sm:$0xff]
    %v167 = vld [vmem:[#allocation5 + $0x358] sm:$0xff]
    %v168 = vld [vmem:[#allocation5 + $0x360] sm:$0xff]
    %v169 = vld [vmem:[#allocation5 + $0x368] sm:$0xff]
    %v170 = vld [vmem:[#allocation5 + $0x370] sm:$0xff]
    %v171 = vld [vmem:[#allocation5 + $0x378] sm:$0xff]
    %v172 = vld [vmem:[#allocation5 + $0x380] sm:$0xff]
    %v173 = vld [vmem:[#allocation5 + $0x388] sm:$0xff]
    %v174 = vld [vmem:[#allocation5 + $0x390] sm:$0xff]
    %v175 = vld [vmem:[#allocation5 + $0x398] sm:$0xff]
    %v176 = vld [vmem:[#allocation5 + $0x3a0] sm:$0xff]
    %v177 = vld [vmem:[#allocation5 + $0x3a8] sm:$0xff]
    %v178 = vld [vmem:[#allocation5 + $0x3b0] sm:$0xff]
    %v179 = vld [vmem:[#allocation5 + $0x3b8] sm:$0xff]
    %v180 = vld [vmem:[#allocation5 + $0x3c0] sm:$0xff]
    %v181 = vld [vmem:[#allocation5 + $0x3c8] sm:$0xff]
    %v182 = vld [vmem:[#allocation5 + $0x3d0] sm:$0xff]
    %v183 = vld [vmem:[#allocation5 + $0x3d8] sm:$0xff]
    %v184 = vld [vmem:[#allocation5 + $0x3e0] sm:$0xff]
    %v185 = vld [vmem:[#allocation5 + $0x3e8] sm:$0xff]
    %v186 = vld [vmem:[#allocation5 + $0x3f0] sm:$0xff]
    %v187 = vld [vmem:[#allocation5 + $0x3f8] sm:$0xff]
    %v188 = vld [vmem:[#allocation5 + $0x400] sm:$0xff]
    %v189 = vld [vmem:[#allocation5 + $0x408] sm:$0xff]
    %v190 = vld [vmem:[#allocation5 + $0x410] sm:$0xff]
    %v191 = vld [vmem:[#allocation5 + $0x418] sm:$0xff]
    %v192 = vld [vmem:[#allocation5 + $0x420] sm:$0xff]
    %v193 = vld [vmem:[#allocation5 + $0x428] sm:$0xff]
    %v194 = vld [vmem:[#allocation5 + $0x430] sm:$0xff]
    %v195 = vld [vmem:[#allocation5 + $0x438] sm:$0xff]
    %v196 = vld [vmem:[#allocation5 + $0x440] sm:$0xff]
    %v197 = vld [vmem:[#allocation5 + $0x448] sm:$0xff]
    %v198 = vld [vmem:[#allocation5 + $0x450] sm:$0xff]
    %v199 = vld [vmem:[#allocation5 + $0x458] sm:$0xff]
    %v200 = vld [vmem:[#allocation5 + $0x460] sm:$0xff]
    %v201 = vld [vmem:[#allocation5 + $0x468] sm:$0xff]
    %v202 = vld [vmem:[#allocation5 + $0x470] sm:$0xff]
    %v203 = vld [vmem:[#allocation5 + $0x478] sm:$0xff]
    %v204 = vld [vmem:[#allocation5 + $0x480] sm:$0xff]
    %v205 = vld [vmem:[#allocation5 + $0x488] sm:$0xff]
    %v206 = vld [vmem:[#allocation5 + $0x490] sm:$0xff]
    %v207 = vld [vmem:[#allocation5 + $0x498] sm:$0xff]
    %v208 = vld [vmem:[#allocation5 + $0x4a0] sm:$0xff]
    %v209 = vld [vmem:[#allocation5 + $0x4a8] sm:$0xff]
    %v210 = vld [vmem:[#allocation5 + $0x4b0] sm:$0xff]
    %v211 = vld [vmem:[#allocation5 + $0x4b8] sm:$0xff]
    %v212 = vld [vmem:[#allocation5 + $0x4c0] sm:$0xff]
    %v213 = vld [vmem:[#allocation5 + $0x4c8] sm:$0xff]
    %v214 = vld [vmem:[#allocation5 + $0x4d0] sm:$0xff]
    %v215 = vld [vmem:[#allocation5 + $0x4d8] sm:$0xff]
    %v216 = vld [vmem:[#allocation5 + $0x4e0] sm:$0xff]
    %v217 = vld [vmem:[#allocation5 + $0x4e8] sm:$0xff]
    %v218 = vld [vmem:[#allocation5 + $0x4f0] sm:$0xff]
    %v219 = vld [vmem:[#allocation5 + $0x4f8] sm:$0xff]
    %v220 = vld [vmem:[#allocation5 + $0x500] sm:$0xff]
    %v221 = vld [vmem:[#allocation5 + $0x508] sm:$0xff]
    %v222 = vld [vmem:[#allocation5 + $0x510] sm:$0xff]
    %v223 = vld [vmem:[#allocation5 + $0x518] sm:$0xff]
    %v224 = vld [vmem:[#allocation5 + $0x520] sm:$0xff]
    %v225 = vld [vmem:[#allocation5 + $0x528] sm:$0xff]
    %v226 = vld [vmem:[#allocation5 + $0x530] sm:$0xff]
    %v227 = vld [vmem:[#allocation5 + $0x538] sm:$0xff]
    %v228 = vld [vmem:[#allocation5 + $0x540] sm:$0xff]
    %v229 = vld [vmem:[#allocation5 + $0x548] sm:$0xff]
    %v230 = vld [vmem:[#allocation5 + $0x550] sm:$0xff]
    %v231 = vld [vmem:[#allocation5 + $0x558] sm:$0xff]
    %v232 = vld [vmem:[#allocation5 + $0x560] sm:$0xff]
    %v233 = vld [vmem:[#allocation5 + $0x568] sm:$0xff]
    %v234 = vld [vmem:[#allocation5 + $0x570] sm:$0xff]
    %v235 = vld [vmem:[#allocation5 + $0x578] sm:$0xff]
    %v236 = vld [vmem:[#allocation5 + $0x580] sm:$0xff]
    %v237 = vld [vmem:[#allocation5 + $0x588] sm:$0xff]
    %v238 = vld [vmem:[#allocation5 + $0x590] sm:$0xff]
    %v239 = vld [vmem:[#allocation5 + $0x598] sm:$0xff]
    %v240 = vld [vmem:[#allocation5 + $0x5a0] sm:$0xff]
    %v241 = vld [vmem:[#allocation5 + $0x5a8] sm:$0xff]
    %v242 = vld [vmem:[#allocation5 + $0x5b0] sm:$0xff]
    %v243 = vld [vmem:[#allocation5 + $0x5b8] sm:$0xff]
    %v244 = vld [vmem:[#allocation5 + $0x5c0] sm:$0xff]
    %v245 = vld [vmem:[#allocation5 + $0x5c8] sm:$0xff]
    %v246 = vld [vmem:[#allocation5 + $0x5d0] sm:$0xff]
    %v247 = vld [vmem:[#allocation5 + $0x5d8] sm:$0xff]
    %v248 = vld [vmem:[#allocation5 + $0x5e0] sm:$0xff]
    %v249 = vld [vmem:[#allocation5 + $0x5e8] sm:$0xff]
    %v250 = vld [vmem:[#allocation5 + $0x5f0] sm:$0xff]
    %v251 = vld [vmem:[#allocation5 + $0x5f8] sm:$0xff]
    %v252 = vld [vmem:[#allocation5 + $0x600] sm:$0xff]
    %v253 = vld [vmem:[#allocation5 + $0x608] sm:$0xff]
    %v254 = vld [vmem:[#allocation5 + $0x610] sm:$0xff]
    %v255 = vld [vmem:[#allocation5 + $0x618] sm:$0xff]
    %v256 = vld [vmem:[#allocation5 + $0x620] sm:$0xff]
    %v257 = vld [vmem:[#allocation5 + $0x628] sm:$0xff]
    %v258 = vld [vmem:[#allocation5 + $0x630] sm:$0xff]
    %v259 = vld [vmem:[#allocation5 + $0x638] sm:$0xff]
    %v260 = vld [vmem:[#allocation5 + $0x640] sm:$0xff]
    %v261 = vld [vmem:[#allocation5 + $0x648] sm:$0xff]
    %v262 = vld [vmem:[#allocation5 + $0x650] sm:$0xff]
    %v263 = vld [vmem:[#allocation5 + $0x658] sm:$0xff]
    %v264 = vld [vmem:[#allocation5 + $0x660] sm:$0xff]
    %v265 = vld [vmem:[#allocation5 + $0x668] sm:$0xff]
    %v266 = vld [vmem:[#allocation5 + $0x670] sm:$0xff]
    %v267 = vld [vmem:[#allocation5 + $0x678] sm:$0xff]
    %v268 = vld [vmem:[#allocation5 + $0x680] sm:$0xff]
    %v269 = vld [vmem:[#allocation5 + $0x688] sm:$0xff]
    %v270 = vld [vmem:[#allocation5 + $0x690] sm:$0xff]
    %v271 = vld [vmem:[#allocation5 + $0x698] sm:$0xff]
    %v272 = vld [vmem:[#allocation5 + $0x6a0] sm:$0xff]
    %v273 = vld [vmem:[#allocation5 + $0x6a8] sm:$0xff]
    %v274 = vld [vmem:[#allocation5 + $0x6b0] sm:$0xff]
    %v275 = vld [vmem:[#allocation5 + $0x6b8] sm:$0xff]
    %v276 = vld [vmem:[#allocation5 + $0x6c0] sm:$0xff]
    %v277 = vld [vmem:[#allocation5 + $0x6c8] sm:$0xff]
    %v278 = vld [vmem:[#allocation5 + $0x6d0] sm:$0xff]
    %v279 = vld [vmem:[#allocation5 + $0x6d8] sm:$0xff]
    %v280 = vld [vmem:[#allocation5 + $0x6e0] sm:$0xff]
    %v281 = vld [vmem:[#allocation5 + $0x6e8] sm:$0xff]
    %v282 = vld [vmem:[#allocation5 + $0x6f0] sm:$0xff]
    %v283 = vld [vmem:[#allocation5 + $0x6f8] sm:$0xff]
    %v284 = vld [vmem:[#allocation5 + $0x700] sm:$0xff]
    %v285 = vld [vmem:[#allocation5 + $0x708] sm:$0xff]
    %v286 = vld [vmem:[#allocation5 + $0x710] sm:$0xff]
    %v287 = vld [vmem:[#allocation5 + $0x718] sm:$0xff]
    %v288 = vld [vmem:[#allocation5 + $0x720] sm:$0xff]
    %v289 = vld [vmem:[#allocation5 + $0x728] sm:$0xff]
    %v290 = vld [vmem:[#allocation5 + $0x730] sm:$0xff]
    %v291 = vld [vmem:[#allocation5 + $0x738] sm:$0xff]
    %v292 = vld [vmem:[#allocation5 + $0x740] sm:$0xff]
    %v293 = vld [vmem:[#allocation5 + $0x748] sm:$0xff]
    %v294 = vld [vmem:[#allocation5 + $0x750] sm:$0xff]
    %v295 = vld [vmem:[#allocation5 + $0x758] sm:$0xff]
    %v296 = vld [vmem:[#allocation5 + $0x760] sm:$0xff]
    %v297 = vld [vmem:[#allocation5 + $0x768] sm:$0xff]
    %v298 = vld [vmem:[#allocation5 + $0x770] sm:$0xff]
    %v299 = vld [vmem:[#allocation5 + $0x778] sm:$0xff]
    %v300 = vld [vmem:[#allocation5 + $0x780] sm:$0xff]
    %v301 = vld [vmem:[#allocation5 + $0x788] sm:$0xff]
    %v302 = vld [vmem:[#allocation5 + $0x790] sm:$0xff]
    %v303 = vld [vmem:[#allocation5 + $0x798] sm:$0xff]
    %v304 = vld [vmem:[#allocation5 + $0x7a0] sm:$0xff]
    %v305 = vld [vmem:[#allocation5 + $0x7a8] sm:$0xff]
    %v306 = vld [vmem:[#allocation5 + $0x7b0] sm:$0xff]
    %v307 = vld [vmem:[#allocation5 + $0x7b8] sm:$0xff]
    %v308 = vld [vmem:[#allocation5 + $0x7c0] sm:$0xff]
    %v309 = vld [vmem:[#allocation5 + $0x7c8] sm:$0xff]
    %v310 = vld [vmem:[#allocation5 + $0x7d0] sm:$0xff]
    %v311 = vld [vmem:[#allocation5 + $0x7d8] sm:$0xff]
    %v312 = vld [vmem:[#allocation5 + $0x7e0] sm:$0xff]
    %v313 = vld [vmem:[#allocation5 + $0x7e8] sm:$0xff]
    %v314 = vld [vmem:[#allocation5 + $0x7f0] sm:$0xff]
    %v315 = vld [vmem:[#allocation5 + $0x7f8] sm:$0xff]
    %v316 = vld [vmem:[#allocation5 + $0x800] sm:$0xff]
    %v317 = vld [vmem:[#allocation5 + $0x808] sm:$0xff]
    %v318 = vld [vmem:[#allocation5 + $0x810] sm:$0xff]
    %v319 = vld [vmem:[#allocation5 + $0x818] sm:$0xff]
    %v320 = vld [vmem:[#allocation5 + $0x820] sm:$0xff]
    %v321 = vld [vmem:[#allocation5 + $0x828] sm:$0xff]
    %v322 = vld [vmem:[#allocation5 + $0x830] sm:$0xff]
    %v323 = vld [vmem:[#allocation5 + $0x838] sm:$0xff]
    %v324 = vld [vmem:[#allocation5 + $0x840] sm:$0xff]
    %v325 = vld [vmem:[#allocation5 + $0x848] sm:$0xff]
    %v326 = vld [vmem:[#allocation5 + $0x850] sm:$0xff]
    %v327 = vld [vmem:[#allocation5 + $0x858] sm:$0xff]
    %v328 = vld [vmem:[#allocation5 + $0x860] sm:$0xff]
    %v329 = vld [vmem:[#allocation5 + $0x868] sm:$0xff]
    %v330 = vld [vmem:[#allocation5 + $0x870] sm:$0xff]
    %v331 = vld [vmem:[#allocation5 + $0x878] sm:$0xff]
    %v332 = vld [vmem:[#allocation5 + $0x880] sm:$0xff]
    %v333 = vld [vmem:[#allocation5 + $0x888] sm:$0xff]
    %v334 = vld [vmem:[#allocation5 + $0x890] sm:$0xff]
    %v335 = vld [vmem:[#allocation5 + $0x898] sm:$0xff]
    %v336 = vld [vmem:[#allocation5 + $0x8a0] sm:$0xff]
    %v337 = vld [vmem:[#allocation5 + $0x8a8] sm:$0xff]
    %v338 = vld [vmem:[#allocation5 + $0x8b0] sm:$0xff]
    %v339 = vld [vmem:[#allocation5 + $0x8b8] sm:$0xff]
    %v340 = vld [vmem:[#allocation5 + $0x8c0] sm:$0xff]
    %v341 = vld [vmem:[#allocation5 + $0x8c8] sm:$0xff]
    %v342 = vld [vmem:[#allocation5 + $0x8d0] sm:$0xff]
    %v343 = vld [vmem:[#allocation5 + $0x8d8] sm:$0xff]
    %v344 = vld [vmem:[#allocation5 + $0x8e0] sm:$0xff]
    %v345 = vld [vmem:[#allocation5 + $0x8e8] sm:$0xff]
    %v346 = vld [vmem:[#allocation5 + $0x8f0] sm:$0xff]
    %v347 = vld [vmem:[#allocation5 + $0x8f8] sm:$0xff]
    %v348 = vld [vmem:[#allocation5 + $0x900] sm:$0xff]
    %v349 = vld [vmem:[#allocation5 + $0x908] sm:$0xff]
    %v350 = vld [vmem:[#allocation5 + $0x910] sm:$0xff]
    %v351 = vld [vmem:[#allocation5 + $0x918] sm:$0xff]
    %v352 = vld [vmem:[#allocation5 + $0x920] sm:$0xff]
    %v353 = vld [vmem:[#allocation5 + $0x928] sm:$0xff]
    %v354 = vld [vmem:[#allocation5 + $0x930] sm:$0xff]
    %v355 = vld [vmem:[#allocation5 + $0x938] sm:$0xff]
    %v356 = vld [vmem:[#allocation5 + $0x940] sm:$0xff]
    %v357 = vld [vmem:[#allocation5 + $0x948] sm:$0xff]
    %v358 = vld [vmem:[#allocation5 + $0x950] sm:$0xff]
    %v359 = vld [vmem:[#allocation5 + $0x958] sm:$0xff]
    %v360 = vld [vmem:[#allocation5 + $0x960] sm:$0xff]
    %v361 = vld [vmem:[#allocation5 + $0x968] sm:$0xff]
    %v362 = vld [vmem:[#allocation5 + $0x970] sm:$0xff]
    %v363 = vld [vmem:[#allocation5 + $0x978] sm:$0xff]
    %v364 = vld [vmem:[#allocation5 + $0x980] sm:$0xff]
    %v365 = vld [vmem:[#allocation5 + $0x988] sm:$0xff]
    %v366 = vld [vmem:[#allocation5 + $0x990] sm:$0xff]
    %v367 = vld [vmem:[#allocation5 + $0x998] sm:$0xff]
    %v368 = vld [vmem:[#allocation5 + $0x9a0] sm:$0xff]
    %v369 = vld [vmem:[#allocation5 + $0x9a8] sm:$0xff]
    %v370 = vld [vmem:[#allocation5 + $0x9b0] sm:$0xff]
    %v371 = vld [vmem:[#allocation5 + $0x9b8] sm:$0xff]
    %v372 = vld [vmem:[#allocation5 + $0x9c0] sm:$0xff]
    %v373 = vld [vmem:[#allocation5 + $0x9c8] sm:$0xff]
    %v374 = vld [vmem:[#allocation5 + $0x9d0] sm:$0xff]
    %v375 = vld [vmem:[#allocation5 + $0x9d8] sm:$0xff]
    %v376 = vld [vmem:[#allocation5 + $0x9e0] sm:$0xff]
    %v377 = vld [vmem:[#allocation5 + $0x9e8] sm:$0xff]
    %v378 = vld [vmem:[#allocation5 + $0x9f0] sm:$0xff]
    %v379 = vld [vmem:[#allocation5 + $0x9f8] sm:$0xff]
    %v380 = vld [vmem:[#allocation5 + $0xa00] sm:$0xff]
    %v381 = vld [vmem:[#allocation5 + $0xa08] sm:$0xff]
    %v382 = vld [vmem:[#allocation5 + $0xa10] sm:$0xff]
    %v383 = vld [vmem:[#allocation5 + $0xa18] sm:$0xff]
    %v384 = vld [vmem:[#allocation5 + $0xa20] sm:$0xff]
    %v385 = vld [vmem:[#allocation5 + $0xa28] sm:$0xff]
    %v386 = vld [vmem:[#allocation5 + $0xa30] sm:$0xff]
    %v387 = vld [vmem:[#allocation5 + $0xa38] sm:$0xff]
    %v388 = vld [vmem:[#allocation5 + $0xa40] sm:$0xff]
    %v389 = vld [vmem:[#allocation5 + $0xa48] sm:$0xff]
    %v390 = vld [vmem:[#allocation5 + $0xa50] sm:$0xff]
    %v391 = vld [vmem:[#allocation5 + $0xa58] sm:$0xff]
    %v392 = vld [vmem:[#allocation5 + $0xa60] sm:$0xff]
    %v393 = vld [vmem:[#allocation5 + $0xa68] sm:$0xff]
    %v394 = vld [vmem:[#allocation5 + $0xa70] sm:$0xff]
    %v395 = vld [vmem:[#allocation5 + $0xa78] sm:$0xff]
    %v396 = vld [vmem:[#allocation5 + $0xa80] sm:$0xff]
    %v397 = vld [vmem:[#allocation5 + $0xa88] sm:$0xff]
    %v398 = vld [vmem:[#allocation5 + $0xa90] sm:$0xff]
    %v399 = vld [vmem:[#allocation5 + $0xa98] sm:$0xff]
    %v400 = vld [vmem:[#allocation5 + $0xaa0] sm:$0xff]
    %v401 = vld [vmem:[#allocation5 + $0xaa8] sm:$0xff]
    %v402 = vld [vmem:[#allocation5 + $0xab0] sm:$0xff]
    %v403 = vld [vmem:[#allocation5 + $0xab8] sm:$0xff]
    %v404 = vld [vmem:[#allocation5 + $0xac0] sm:$0xff]
    %v405 = vld [vmem:[#allocation5 + $0xac8] sm:$0xff]
    %v406 = vld [vmem:[#allocation5 + $0xad0] sm:$0xff]
    %v407 = vld [vmem:[#allocation5 + $0xad8] sm:$0xff]
    %v408 = vld [vmem:[#allocation5 + $0xae0] sm:$0xff]
    %v409 = vld [vmem:[#allocation5 + $0xae8] sm:$0xff]
    %v410 = vld [vmem:[#allocation5 + $0xaf0] sm:$0xff]
    %v411 = vld [vmem:[#allocation5 + $0xaf8] sm:$0xff]
    %v412 = vld [vmem:[#allocation5 + $0xb00] sm:$0xff]
    %v413 = vld [vmem:[#allocation5 + $0xb08] sm:$0xff]
    %v414 = vld [vmem:[#allocation5 + $0xb10] sm:$0xff]
    %v415 = vld [vmem:[#allocation5 + $0xb18] sm:$0xff]
    %v416 = vld [vmem:[#allocation5 + $0xb20] sm:$0xff]
    %v417 = vld [vmem:[#allocation5 + $0xb28] sm:$0xff]
    %v418 = vld [vmem:[#allocation5 + $0xb30] sm:$0xff]
    %v419 = vld [vmem:[#allocation5 + $0xb38] sm:$0xff]
    %v420 = vld [vmem:[#allocation5 + $0xb40] sm:$0xff]
    %v421 = vld [vmem:[#allocation5 + $0xb48] sm:$0xff]
    %v422 = vld [vmem:[#allocation5 + $0xb50] sm:$0xff]
    %v423 = vld [vmem:[#allocation5 + $0xb58] sm:$0xff]
    %v424 = vld [vmem:[#allocation5 + $0xb60] sm:$0xff]
    %v425 = vld [vmem:[#allocation5 + $0xb68] sm:$0xff]
    %v426 = vld [vmem:[#allocation5 + $0xb70] sm:$0xff]
    %v427 = vld [vmem:[#allocation5 + $0xb78] sm:$0xff]
    %v428 = vld [vmem:[#allocation5 + $0xb80] sm:$0xff]
    %v429 = vld [vmem:[#allocation5 + $0xb88] sm:$0xff]
    %v430 = vld [vmem:[#allocation5 + $0xb90] sm:$0xff]
    %v431 = vld [vmem:[#allocation5 + $0xb98] sm:$0xff]
    %v432 = vld [vmem:[#allocation5 + $0xba0] sm:$0xff]
    %v433 = vld [vmem:[#allocation5 + $0xba8] sm:$0xff]
    %v434 = vld [vmem:[#allocation5 + $0xbb0] sm:$0xff]
    %v435 = vld [vmem:[#allocation5 + $0xbb8] sm:$0xff]
    %v436 = vld [vmem:[#allocation5 + $0xbc0] sm:$0xff]
    %v437 = vld [vmem:[#allocation5 + $0xbc8] sm:$0xff]
    %v438 = vld [vmem:[#allocation5 + $0xbd0] sm:$0xff]
    %v439 = vld [vmem:[#allocation5 + $0xbd8] sm:$0xff]
    %v440 = vld [vmem:[#allocation5 + $0xbe0] sm:$0xff]
    %v441 = vld [vmem:[#allocation5 + $0xbe8] sm:$0xff]
    %v442 = vld [vmem:[#allocation5 + $0xbf0] sm:$0xff]
    %v443 = vld [vmem:[#allocation5 + $0xbf8] sm:$0xff]
    %v444 = vld [vmem:[#allocation5 + $0xc00] sm:$0xff]
    %v445 = vld [vmem:[#allocation5 + $0xc08] sm:$0xff]
    %v446 = vld [vmem:[#allocation5 + $0xc10] sm:$0xff]
    %v447 = vld [vmem:[#allocation5 + $0xc18] sm:$0xff]
    %v448 = vld [vmem:[#allocation5 + $0xc20] sm:$0xff]
    %v449 = vld [vmem:[#allocation5 + $0xc28] sm:$0xff]
    %v450 = vld [vmem:[#allocation5 + $0xc30] sm:$0xff]
    %v451 = vld [vmem:[#allocation5 + $0xc38] sm:$0xff]
    %v452 = vld [vmem:[#allocation5 + $0xc40] sm:$0xff]
    %v453 = vld [vmem:[#allocation5 + $0xc48] sm:$0xff]
    %v454 = vld [vmem:[#allocation5 + $0xc50] sm:$0xff]
    %v455 = vld [vmem:[#allocation5 + $0xc58] sm:$0xff]
    %v456 = vld [vmem:[#allocation5 + $0xc60] sm:$0xff]
    %v457 = vld [vmem:[#allocation5 + $0xc68] sm:$0xff]
    %v458 = vld [vmem:[#allocation5 + $0xc70] sm:$0xff]
    %v459 = vld [vmem:[#allocation5 + $0xc78] sm:$0xff]
    %v460 = vld [vmem:[#allocation5 + $0xc80] sm:$0xff]
    %v461 = vld [vmem:[#allocation5 + $0xc88] sm:$0xff]
    %v462 = vld [vmem:[#allocation5 + $0xc90] sm:$0xff]
    %v463 = vld [vmem:[#allocation5 + $0xc98] sm:$0xff]
    %v464 = vld [vmem:[#allocation5 + $0xca0] sm:$0xff]
    %v465 = vld [vmem:[#allocation5 + $0xca8] sm:$0xff]
    %v466 = vld [vmem:[#allocation5 + $0xcb0] sm:$0xff]
    %v467 = vld [vmem:[#allocation5 + $0xcb8] sm:$0xff]
    %v468 = vld [vmem:[#allocation5 + $0xcc0] sm:$0xff]
    %v469 = vld [vmem:[#allocation5 + $0xcc8] sm:$0xff]
    %v470 = vld [vmem:[#allocation5 + $0xcd0] sm:$0xff]
    %v471 = vld [vmem:[#allocation5 + $0xcd8] sm:$0xff]
    %v472 = vld [vmem:[#allocation5 + $0xce0] sm:$0xff]
    %v473 = vld [vmem:[#allocation5 + $0xce8] sm:$0xff]
    %v474 = vld [vmem:[#allocation5 + $0xcf0] sm:$0xff]
    %v475 = vld [vmem:[#allocation5 + $0xcf8] sm:$0xff]
    %v476 = vld [vmem:[#allocation5 + $0xd00] sm:$0xff]
    %v477 = vld [vmem:[#allocation5 + $0xd08] sm:$0xff]
    %v478 = vld [vmem:[#allocation5 + $0xd10] sm:$0xff]
    %v479 = vld [vmem:[#allocation5 + $0xd18] sm:$0xff]
    %v480 = vld [vmem:[#allocation5 + $0xd20] sm:$0xff]
    %v481 = vld [vmem:[#allocation5 + $0xd28] sm:$0xff]
    %v482 = vld [vmem:[#allocation5 + $0xd30] sm:$0xff]
    %v483 = vld [vmem:[#allocation5 + $0xd38] sm:$0xff]
    %v484 = vld [vmem:[#allocation5 + $0xd40] sm:$0xff]
    %v485 = vld [vmem:[#allocation5 + $0xd48] sm:$0xff]
    %v486 = vld [vmem:[#allocation5 + $0xd50] sm:$0xff]
    %v487 = vld [vmem:[#allocation5 + $0xd58] sm:$0xff]
    %v488 = vld [vmem:[#allocation5 + $0xd60] sm:$0xff]
    %v489 = vld [vmem:[#allocation5 + $0xd68] sm:$0xff]
    %v490 = vld [vmem:[#allocation5 + $0xd70] sm:$0xff]
    %v491 = vld [vmem:[#allocation5 + $0xd78] sm:$0xff]
    %v492 = vld [vmem:[#allocation5 + $0xd80] sm:$0xff]
    %v493 = vld [vmem:[#allocation5 + $0xd88] sm:$0xff]
    %v494 = vld [vmem:[#allocation5 + $0xd90] sm:$0xff]
    %v495 = vld [vmem:[#allocation5 + $0xd98] sm:$0xff]
    %v496 = vld [vmem:[#allocation5 + $0xda0] sm:$0xff]
    %v497 = vld [vmem:[#allocation5 + $0xda8] sm:$0xff]
    %v498 = vld [vmem:[#allocation5 + $0xdb0] sm:$0xff]
    %v499 = vld [vmem:[#allocation5 + $0xdb8] sm:$0xff]
    %v500 = vld [vmem:[#allocation5 + $0xdc0] sm:$0xff]
    %v501 = vld [vmem:[#allocation5 + $0xdc8] sm:$0xff]
    %v502 = vld [vmem:[#allocation5 + $0xdd0] sm:$0xff]
    %v503 = vld [vmem:[#allocation5 + $0xdd8] sm:$0xff]
    %v504 = vld [vmem:[#allocation5 + $0xde0] sm:$0xff]
    %v505 = vld [vmem:[#allocation5 + $0xde8] sm:$0xff]
    %v506 = vld [vmem:[#allocation5 + $0xdf0] sm:$0xff]
    %v507 = vld [vmem:[#allocation5 + $0xdf8] sm:$0xff]
    %v508 = vld [vmem:[#allocation5 + $0xe00] sm:$0xff]
    %v509 = vld [vmem:[#allocation5 + $0xe08] sm:$0xff]
    %v510 = vld [vmem:[#allocation5 + $0xe10] sm:$0xff]
    %v511 = vld [vmem:[#allocation5 + $0xe18] sm:$0xff]
    %v512 = vld [vmem:[#allocation5 + $0xe20] sm:$0xff]
    %v513 = vld [vmem:[#allocation5 + $0xe28] sm:$0xff]
    %v514 = vld [vmem:[#allocation5 + $0xe30] sm:$0xff]
    %v515 = vld [vmem:[#allocation5 + $0xe38] sm:$0xff]
    %v516 = vld [vmem:[#allocation5 + $0xe40] sm:$0xff]
    %v517 = vld [vmem:[#allocation5 + $0xe48] sm:$0xff]
    %v518 = vld [vmem:[#allocation5 + $0xe50] sm:$0xff]
    %v519 = vld [vmem:[#allocation5 + $0xe58] sm:$0xff]
    %v520 = vld [vmem:[#allocation5 + $0xe60] sm:$0xff]
    %v521 = vld [vmem:[#allocation5 + $0xe68] sm:$0xff]
    %v522 = vld [vmem:[#allocation5 + $0xe70] sm:$0xff]
    %v523 = vld [vmem:[#allocation5 + $0xe78] sm:$0xff]
    %v524 = vld [vmem:[#allocation5 + $0xe80] sm:$0xff]
    %v525 = vld [vmem:[#allocation5 + $0xe88] sm:$0xff]
    %v526 = vld [vmem:[#allocation5 + $0xe90] sm:$0xff]
    %v527 = vld [vmem:[#allocation5 + $0xe98] sm:$0xff]
    %v528 = vld [vmem:[#allocation5 + $0xea0] sm:$0xff]
    %v529 = vld [vmem:[#allocation5 + $0xea8] sm:$0xff]
    %v530 = vld [vmem:[#allocation5 + $0xeb0] sm:$0xff]
    %v531 = vld [vmem:[#allocation5 + $0xeb8] sm:$0xff]
    %v532 = vld [vmem:[#allocation5 + $0xec0] sm:$0xff]
    %v533 = vld [vmem:[#allocation5 + $0xec8] sm:$0xff]
    %v534 = vld [vmem:[#allocation5 + $0xed0] sm:$0xff]
    %v535 = vld [vmem:[#allocation5 + $0xed8] sm:$0xff]
    %v536 = vld [vmem:[#allocation5 + $0xee0] sm:$0xff]
    %v537 = vld [vmem:[#allocation5 + $0xee8] sm:$0xff]
    %v538 = vld [vmem:[#allocation5 + $0xef0] sm:$0xff]
    %v539 = vld [vmem:[#allocation5 + $0xef8] sm:$0xff]
    %v540 = vld [vmem:[#allocation5 + $0xf00] sm:$0xff]
    %v541 = vld [vmem:[#allocation5 + $0xf08] sm:$0xff]
    %v542 = vld [vmem:[#allocation5 + $0xf10] sm:$0xff]
    %v543 = vld [vmem:[#allocation5 + $0xf18] sm:$0xff]
    %v544 = vld [vmem:[#allocation5 + $0xf20] sm:$0xff]
    %v545 = vld [vmem:[#allocation5 + $0xf28] sm:$0xff]
    %v546 = vld [vmem:[#allocation5 + $0xf30] sm:$0xff]
    %v547 = vld [vmem:[#allocation5 + $0xf38] sm:$0xff]
    %v548 = vld [vmem:[#allocation5 + $0xf40] sm:$0xff]
    %v549 = vld [vmem:[#allocation5 + $0xf48] sm:$0xff]
    %v550 = vld [vmem:[#allocation5 + $0xf50] sm:$0xff]
    %v551 = vld [vmem:[#allocation5 + $0xf58] sm:$0xff]
    %v552 = vld [vmem:[#allocation5 + $0xf60] sm:$0xff]
    %v553 = vld [vmem:[#allocation5 + $0xf68] sm:$0xff]
    %v554 = vld [vmem:[#allocation5 + $0xf70] sm:$0xff]
    %v555 = vld [vmem:[#allocation5 + $0xf78] sm:$0xff]
    %v556 = vld [vmem:[#allocation5 + $0xf80] sm:$0xff]
    %v557 = vld [vmem:[#allocation5 + $0xf88] sm:$0xff]
    %v558 = vld [vmem:[#allocation5 + $0xf90] sm:$0xff]
    %v559 = vld [vmem:[#allocation5 + $0xf98] sm:$0xff]
    %v560 = vld [vmem:[#allocation5 + $0xfa0] sm:$0xff]
    %v561 = vld [vmem:[#allocation5 + $0xfa8] sm:$0xff]
    %v562 = vld [vmem:[#allocation5 + $0xfb0] sm:$0xff]
    %v563 = vld [vmem:[#allocation5 + $0xfb8] sm:$0xff]
    %v564 = vld [vmem:[#allocation5 + $0xfc0] sm:$0xff]
    %v565 = vld [vmem:[#allocation5 + $0xfc8] sm:$0xff]
    %v566 = vld [vmem:[#allocation5 + $0xfd0] sm:$0xff]
    %v567 = vld [vmem:[#allocation5 + $0xfd8] sm:$0xff]
    %v568 = vld [vmem:[#allocation5 + $0xfe0] sm:$0xff]
    %v569 = vld [vmem:[#allocation5 + $0xfe8] sm:$0xff]
    %v570 = vld [vmem:[#allocation5 + $0xff0] sm:$0xff]
    %v571 = vld [vmem:[#allocation5 + $0xff8] sm:$0xff]
    %v572 = vld [vmem:[#allocation5 + $0x1000] sm:$0xff]
    %v573 = vld [vmem:[#allocation5 + $0x1008] sm:$0xff]
    %v574 = vld [vmem:[#allocation5 + $0x1010] sm:$0xff]
    %v575 = vld [vmem:[#allocation5 + $0x1018] sm:$0xff]
    %v576 = vld [vmem:[#allocation5 + $0x1020] sm:$0xff]
    %v577 = vld [vmem:[#allocation5 + $0x1028] sm:$0xff]
    %v578 = vld [vmem:[#allocation5 + $0x1030] sm:$0xff]
    %v579 = vld [vmem:[#allocation5 + $0x1038] sm:$0xff]
    %v580 = vld [vmem:[#allocation5 + $0x1040] sm:$0xff]
    %v581 = vld [vmem:[#allocation5 + $0x1048] sm:$0xff]
    %v582 = vld [vmem:[#allocation5 + $0x1050] sm:$0xff]
    %v583 = vld [vmem:[#allocation5 + $0x1058] sm:$0xff]
    %v584 = vld [vmem:[#allocation5 + $0x1060] sm:$0xff]
    %v585 = vld [vmem:[#allocation5 + $0x1068] sm:$0xff]
    %v586 = vld [vmem:[#allocation5 + $0x1070] sm:$0xff]
    %v587 = vld [vmem:[#allocation5 + $0x1078] sm:$0xff]
    %v588 = vld [vmem:[#allocation5 + $0x1080] sm:$0xff]
    %v589 = vld [vmem:[#allocation5 + $0x1088] sm:$0xff]
    %v590 = vld [vmem:[#allocation5 + $0x1090] sm:$0xff]
    %v591 = vld [vmem:[#allocation5 + $0x1098] sm:$0xff]
    %v592 = vld [vmem:[#allocation5 + $0x10a0] sm:$0xff]
    %v593 = vld [vmem:[#allocation5 + $0x10a8] sm:$0xff]
    %v594 = vld [vmem:[#allocation5 + $0x10b0] sm:$0xff]
    %v595 = vld [vmem:[#allocation5 + $0x10b8] sm:$0xff]
    %v596 = vld [vmem:[#allocation5 + $0x10c0] sm:$0xff]
    %v597 = vld [vmem:[#allocation5 + $0x10c8] sm:$0xff]
    %v598 = vld [vmem:[#allocation5 + $0x10d0] sm:$0xff]
    %v599 = vld [vmem:[#allocation5 + $0x10d8] sm:$0xff]
    %v600 = vld [vmem:[#allocation5 + $0x10e0] sm:$0xff]
    %v601 = vld [vmem:[#allocation5 + $0x10e8] sm:$0xff]
    %v602 = vld [vmem:[#allocation5 + $0x10f0] sm:$0xff]
    %v603 = vld [vmem:[#allocation5 + $0x10f8] sm:$0xff]
    %v604 = vld [vmem:[#allocation5 + $0x1100] sm:$0xff]
    %v605 = vld [vmem:[#allocation5 + $0x1108] sm:$0xff]
    %v606 = vld [vmem:[#allocation5 + $0x1110] sm:$0xff]
    %v607 = vld [vmem:[#allocation5 + $0x1118] sm:$0xff]
    %v608 = vld [vmem:[#allocation5 + $0x1120] sm:$0xff]
    %v609 = vld [vmem:[#allocation5 + $0x1128] sm:$0xff]
    %v610 = vld [vmem:[#allocation5 + $0x1130] sm:$0xff]
    %v611 = vld [vmem:[#allocation5 + $0x1138] sm:$0xff]
    %v612 = vld [vmem:[#allocation5 + $0x1140] sm:$0xff]
    %v613 = vld [vmem:[#allocation5 + $0x1148] sm:$0xff]
    %v614 = vld [vmem:[#allocation5 + $0x1150] sm:$0xff]
    %v615 = vld [vmem:[#allocation5 + $0x1158] sm:$0xff]
    %v616 = vld [vmem:[#allocation5 + $0x1160] sm:$0xff]
    %v617 = vld [vmem:[#allocation5 + $0x1168] sm:$0xff]
    %v618 = vld [vmem:[#allocation5 + $0x1170] sm:$0xff]
    %v619 = vld [vmem:[#allocation5 + $0x1178] sm:$0xff]
    %v620 = vld [vmem:[#allocation5 + $0x1180] sm:$0xff]
    %v621 = vld [vmem:[#allocation5 + $0x1188] sm:$0xff]
    %v622 = vld [vmem:[#allocation5 + $0x1190] sm:$0xff]
    %v623 = vld [vmem:[#allocation5 + $0x1198] sm:$0xff]
    %v624 = vld [vmem:[#allocation5 + $0x11a0] sm:$0xff]
    %v625 = vld [vmem:[#allocation5 + $0x11a8] sm:$0xff]
    %v626 = vld [vmem:[#allocation5 + $0x11b0] sm:$0xff]
    %v627 = vld [vmem:[#allocation5 + $0x11b8] sm:$0xff]
    %v628 = vld [vmem:[#allocation5 + $0x11c0] sm:$0xff]
    %v629 = vld [vmem:[#allocation5 + $0x11c8] sm:$0xff]
    %v630 = vld [vmem:[#allocation5 + $0x11d0] sm:$0xff]
    %v631 = vld [vmem:[#allocation5 + $0x11d8] sm:$0xff]
    %v632 = vld [vmem:[#allocation5 + $0x11e0] sm:$0xff]
    %v633 = vld [vmem:[#allocation5 + $0x11e8] sm:$0xff]
    %v634 = vld [vmem:[#allocation5 + $0x11f0] sm:$0xff]
    %v635 = vld [vmem:[#allocation5 + $0x11f8] sm:$0xff]
    %v636 = vld [vmem:[#allocation5 + $0x1200] sm:$0xff]
    %v637 = vld [vmem:[#allocation5 + $0x1208] sm:$0xff]
    %v638 = vld [vmem:[#allocation5 + $0x1210] sm:$0xff]
    %v639 = vld [vmem:[#allocation5 + $0x1218] sm:$0xff]
    %v640 = vld [vmem:[#allocation5 + $0x1220] sm:$0xff]
    %v641 = vld [vmem:[#allocation5 + $0x1228] sm:$0xff]
    %v642 = vld [vmem:[#allocation5 + $0x1230] sm:$0xff]
    %v643 = vld [vmem:[#allocation5 + $0x1238] sm:$0xff]
    %v644 = vld [vmem:[#allocation5 + $0x1240] sm:$0xff]
    %v645 = vld [vmem:[#allocation5 + $0x1248] sm:$0xff]
    %v646 = vld [vmem:[#allocation5 + $0x1250] sm:$0xff]
    %v647 = vld [vmem:[#allocation5 + $0x1258] sm:$0xff]
    %v648 = vld [vmem:[#allocation5 + $0x1260] sm:$0xff]
    %v649 = vld [vmem:[#allocation5 + $0x1268] sm:$0xff]
    %v650 = vld [vmem:[#allocation5 + $0x1270] sm:$0xff]
    %v651 = vld [vmem:[#allocation5 + $0x1278] sm:$0xff]
    %v652 = vld [vmem:[#allocation5 + $0x1280] sm:$0xff]
    %v653 = vld [vmem:[#allocation5 + $0x1288] sm:$0xff]
    %v654 = vld [vmem:[#allocation5 + $0x1290] sm:$0xff]
    %v655 = vld [vmem:[#allocation5 + $0x1298] sm:$0xff]
    %v656 = vld [vmem:[#allocation5 + $0x12a0] sm:$0xff]
    %v657 = vld [vmem:[#allocation5 + $0x12a8] sm:$0xff]
    %v658 = vld [vmem:[#allocation5 + $0x12b0] sm:$0xff]
    %v659 = vld [vmem:[#allocation5 + $0x12b8] sm:$0xff]
    %v660 = vld [vmem:[#allocation5 + $0x12c0] sm:$0xff]
    %v661 = vld [vmem:[#allocation5 + $0x12c8] sm:$0xff]
    %v662 = vld [vmem:[#allocation5 + $0x12d0] sm:$0xff]
    %v663 = vld [vmem:[#allocation5 + $0x12d8] sm:$0xff]
    %v664 = vld [vmem:[#allocation5 + $0x12e0] sm:$0xff]
    %v665 = vld [vmem:[#allocation5 + $0x12e8] sm:$0xff]
    %v666 = vld [vmem:[#allocation5 + $0x12f0] sm:$0xff]
    %v667 = vld [vmem:[#allocation5 + $0x12f8] sm:$0xff]
    %v668 = vld [vmem:[#allocation5 + $0x1300] sm:$0xff]
    %v669 = vld [vmem:[#allocation5 + $0x1308] sm:$0xff]
    %v670 = vld [vmem:[#allocation5 + $0x1310] sm:$0xff]
    %v671 = vld [vmem:[#allocation5 + $0x1318] sm:$0xff]
    %v672 = vld [vmem:[#allocation5 + $0x1320] sm:$0xff]
    %v673 = vld [vmem:[#allocation5 + $0x1328] sm:$0xff]
    %v674 = vld [vmem:[#allocation5 + $0x1330] sm:$0xff]
    %v675 = vld [vmem:[#allocation5 + $0x1338] sm:$0xff]
    %v676 = vld [vmem:[#allocation5 + $0x1340] sm:$0xff]
    %v677 = vld [vmem:[#allocation5 + $0x1348] sm:$0xff]
    %v678 = vld [vmem:[#allocation5 + $0x1350] sm:$0xff]
    %v679 = vld [vmem:[#allocation5 + $0x1358] sm:$0xff]
    %v680 = vld [vmem:[#allocation5 + $0x1360] sm:$0xff]
    %v681 = vld [vmem:[#allocation5 + $0x1368] sm:$0xff]
    %v682 = vld [vmem:[#allocation5 + $0x1370] sm:$0xff]
    %v683 = vld [vmem:[#allocation5 + $0x1378] sm:$0xff]
    %v684 = vld [vmem:[#allocation5 + $0x1380] sm:$0xff]
    %v685 = vld [vmem:[#allocation7] sm:$0x3]
    %v693 = vcombine.high %v53, %v53
    %v695 = vunpack.c.l.s4 1966171168
    %v696 = vunpack.c.0.s8 %v695
    %v697 = vlaneseq
    %v698 = vshrl.u32 %v697, 7
    %v699 = vsub.s32 %v696, %v698
    %v700 = vrot.slane %v53, %v699
    %v702 = vunpack.c.l.s4 1966171168
    %v703 = vunpack.c.0.s8 %v702
    %v704 = vlaneseq
    %v705 = vshrl.u32 %v704, 7
    %v706 = vsub.s32 %v703, %v705
    %v707 = vrot.slane %v693, %v706
    %v708 = vcombine.high %v700, %v700
    %v709 = vcombine.high %v707, %v707
    %v711 = vunpack.c.l.s4 1966171168
    %v712 = vunpack.c.0.s8 %v711
    %v713 = vlaneseq
    %v714 = vshrl.u32 %v713, 7
    %v715 = vsub.s32 %v712, %v714
    %v716 = vrot.slane %v700, %v715
    %v718 = vunpack.c.l.s4 1966171168
    %v719 = vunpack.c.0.s8 %v718
    %v720 = vlaneseq
    %v721 = vshrl.u32 %v720, 7
    %v722 = vsub.s32 %v719, %v721
    %v723 = vrot.slane %v707, %v722
    %v725 = vunpack.c.l.s4 1966171168
    %v726 = vunpack.c.0.s8 %v725
    %v727 = vlaneseq
    %v728 = vshrl.u32 %v727, 7
    %v729 = vsub.s32 %v726, %v728
    %v730 = vrot.slane %v708, %v729
    %v732 = vunpack.c.l.s4 1966171168
    %v733 = vunpack.c.0.s8 %v732
    %v734 = vlaneseq
    %v735 = vshrl.u32 %v734, 7
    %v736 = vsub.s32 %v733, %v735
    %v737 = vrot.slane %v709, %v736
    %v738 = vcombine.high %v716, %v716
    %v739 = vcombine.high %v723, %v723
    %v740 = vcombine.high %v730, %v730
    %v741 = vcombine.high %v737, %v737
    %v742 = vcombine.high %v54, %v54
    %v744 = vunpack.c.l.s4 1966171168
    %v745 = vunpack.c.0.s8 %v744
    %v746 = vlaneseq
    %v747 = vshrl.u32 %v746, 7
    %v748 = vsub.s32 %v745, %v747
    %v749 = vrot.slane %v54, %v748
    %v751 = vunpack.c.l.s4 1966171168
    %v752 = vunpack.c.0.s8 %v751
    %v753 = vlaneseq
    %v754 = vshrl.u32 %v753, 7
    %v755 = vsub.s32 %v752, %v754
    %v756 = vrot.slane %v742, %v755
    %v757 = vcombine.high %v749, %v749
    %v758 = vcombine.high %v756, %v756
    %v760 = vunpack.c.l.s4 1966171168
    %v761 = vunpack.c.0.s8 %v760
    %v762 = vlaneseq
    %v763 = vshrl.u32 %v762, 7
    %v764 = vsub.s32 %v761, %v763
    %v765 = vrot.slane %v749, %v764
    %v767 = vunpack.c.l.s4 1966171168
    %v768 = vunpack.c.0.s8 %v767
    %v769 = vlaneseq
    %v770 = vshrl.u32 %v769, 7
    %v771 = vsub.s32 %v768, %v770
    %v772 = vrot.slane %v756, %v771
    %v774 = vunpack.c.l.s4 1966171168
    %v775 = vunpack.c.0.s8 %v774
    %v776 = vlaneseq
    %v777 = vshrl.u32 %v776, 7
    %v778 = vsub.s32 %v775, %v777
    %v779 = vrot.slane %v757, %v778
    %v781 = vunpack.c.l.s4 1966171168
    %v782 = vunpack.c.0.s8 %v781
    %v783 = vlaneseq
    %v784 = vshrl.u32 %v783, 7
    %v785 = vsub.s32 %v782, %v784
    %v786 = vrot.slane %v758, %v785
    %v787 = vcombine.high %v765, %v765
    %v788 = vcombine.high %v772, %v772
    %v789 = vcombine.high %v779, %v779
    %v790 = vcombine.high %v786, %v786
    %v791 = vcombine.high %v55, %v55
    %v793 = vunpack.c.l.s4 1966171168
    %v794 = vunpack.c.0.s8 %v793
    %v795 = vlaneseq
    %v796 = vshrl.u32 %v795, 7
    %v797 = vsub.s32 %v794, %v796
    %v798 = vrot.slane %v55, %v797
    %v800 = vunpack.c.l.s4 1966171168
    %v801 = vunpack.c.0.s8 %v800
    %v802 = vlaneseq
    %v803 = vshrl.u32 %v802, 7
    %v804 = vsub.s32 %v801, %v803
    %v805 = vrot.slane %v791, %v804
    %v806 = vcombine.high %v798, %v798
    %v807 = vcombine.high %v805, %v805
    %v809 = vunpack.c.l.s4 1966171168
    %v810 = vunpack.c.0.s8 %v809
    %v811 = vlaneseq
    %v812 = vshrl.u32 %v811, 7
    %v813 = vsub.s32 %v810, %v812
    %v814 = vrot.slane %v798, %v813
    %v816 = vunpack.c.l.s4 1966171168
    %v817 = vunpack.c.0.s8 %v816
    %v818 = vlaneseq
    %v819 = vshrl.u32 %v818, 7
    %v820 = vsub.s32 %v817, %v819
    %v821 = vrot.slane %v805, %v820
    %v823 = vunpack.c.l.s4 1966171168
    %v824 = vunpack.c.0.s8 %v823
    %v825 = vlaneseq
    %v826 = vshrl.u32 %v825, 7
    %v827 = vsub.s32 %v824, %v826
    %v828 = vrot.slane %v806, %v827
    %v830 = vunpack.c.l.s4 1966171168
    %v831 = vunpack.c.0.s8 %v830
    %v832 = vlaneseq
    %v833 = vshrl.u32 %v832, 7
    %v834 = vsub.s32 %v831, %v833
    %v835 = vrot.slane %v807, %v834
    %v836 = vcombine.high %v814, %v814
    %v837 = vcombine.high %v821, %v821
    %v838 = vcombine.high %v828, %v828
    %v839 = vcombine.high %v835, %v835
    %v840 = vcombine.high %v56, %v56
    %v842 = vunpack.c.l.s4 1966171168
    %v843 = vunpack.c.0.s8 %v842
    %v844 = vlaneseq
    %v845 = vshrl.u32 %v844, 7
    %v846 = vsub.s32 %v843, %v845
    %v847 = vrot.slane %v56, %v846
    %v849 = vunpack.c.l.s4 1966171168
    %v850 = vunpack.c.0.s8 %v849
    %v851 = vlaneseq
    %v852 = vshrl.u32 %v851, 7
    %v853 = vsub.s32 %v850, %v852
    %v854 = vrot.slane %v840, %v853
    %v855 = vcombine.high %v847, %v847
    %v856 = vcombine.high %v854, %v854
    %v858 = vunpack.c.l.s4 1966171168
    %v859 = vunpack.c.0.s8 %v858
    %v860 = vlaneseq
    %v861 = vshrl.u32 %v860, 7
    %v862 = vsub.s32 %v859, %v861
    %v863 = vrot.slane %v847, %v862
    %v865 = vunpack.c.l.s4 1966171168
    %v866 = vunpack.c.0.s8 %v865
    %v867 = vlaneseq
    %v868 = vshrl.u32 %v867, 7
    %v869 = vsub.s32 %v866, %v868
    %v870 = vrot.slane %v854, %v869
    %v872 = vunpack.c.l.s4 1966171168
    %v873 = vunpack.c.0.s8 %v872
    %v874 = vlaneseq
    %v875 = vshrl.u32 %v874, 7
    %v876 = vsub.s32 %v873, %v875
    %v877 = vrot.slane %v855, %v876
    %v879 = vunpack.c.l.s4 1966171168
    %v880 = vunpack.c.0.s8 %v879
    %v881 = vlaneseq
    %v882 = vshrl.u32 %v881, 7
    %v883 = vsub.s32 %v880, %v882
    %v884 = vrot.slane %v856, %v883
    %v885 = vcombine.high %v863, %v863
    %v886 = vcombine.high %v870, %v870
    %v887 = vcombine.high %v877, %v877
    %v888 = vcombine.high %v884, %v884
    %v889 = vcombine.high %v57, %v57
    %v891 = vunpack.c.l.s4 1966171168
    %v892 = vunpack.c.0.s8 %v891
    %v893 = vlaneseq
    %v894 = vshrl.u32 %v893, 7
    %v895 = vsub.s32 %v892, %v894
    %v896 = vrot.slane %v57, %v895
    %v898 = vunpack.c.l.s4 1966171168
    %v899 = vunpack.c.0.s8 %v898
    %v900 = vlaneseq
    %v901 = vshrl.u32 %v900, 7
    %v902 = vsub.s32 %v899, %v901
    %v903 = vrot.slane %v889, %v902
    %v904 = vcombine.high %v896, %v896
    %v905 = vcombine.high %v903, %v903
    %v907 = vunpack.c.l.s4 1966171168
    %v908 = vunpack.c.0.s8 %v907
    %v909 = vlaneseq
    %v910 = vshrl.u32 %v909, 7
    %v911 = vsub.s32 %v908, %v910
    %v912 = vrot.slane %v896, %v911
    %v914 = vunpack.c.l.s4 1966171168
    %v915 = vunpack.c.0.s8 %v914
    %v916 = vlaneseq
    %v917 = vshrl.u32 %v916, 7
    %v918 = vsub.s32 %v915, %v917
    %v919 = vrot.slane %v903, %v918
    %v921 = vunpack.c.l.s4 1966171168
    %v922 = vunpack.c.0.s8 %v921
    %v923 = vlaneseq
    %v924 = vshrl.u32 %v923, 7
    %v925 = vsub.s32 %v922, %v924
    %v926 = vrot.slane %v904, %v925
    %v928 = vunpack.c.l.s4 1966171168
    %v929 = vunpack.c.0.s8 %v928
    %v930 = vlaneseq
    %v931 = vshrl.u32 %v930, 7
    %v932 = vsub.s32 %v929, %v931
    %v933 = vrot.slane %v905, %v932
    %v934 = vcombine.high %v912, %v912
    %v935 = vcombine.high %v919, %v919
    %v936 = vcombine.high %v926, %v926
    %v937 = vcombine.high %v933, %v933
    %v938 = vcombine.high %v58, %v58
    %v940 = vunpack.c.l.s4 1966171168
    %v941 = vunpack.c.0.s8 %v940
    %v942 = vlaneseq
    %v943 = vshrl.u32 %v942, 7
    %v944 = vsub.s32 %v941, %v943
    %v945 = vrot.slane %v58, %v944
    %v947 = vunpack.c.l.s4 1966171168
    %v948 = vunpack.c.0.s8 %v947
    %v949 = vlaneseq
    %v950 = vshrl.u32 %v949, 7
    %v951 = vsub.s32 %v948, %v950
    %v952 = vrot.slane %v938, %v951
    %v953 = vcombine.high %v945, %v945
    %v954 = vcombine.high %v952, %v952
    %v956 = vunpack.c.l.s4 1966171168
    %v957 = vunpack.c.0.s8 %v956
    %v958 = vlaneseq
    %v959 = vshrl.u32 %v958, 7
    %v960 = vsub.s32 %v957, %v959
    %v961 = vrot.slane %v945, %v960
    %v963 = vunpack.c.l.s4 1966171168
    %v964 = vunpack.c.0.s8 %v963
    %v965 = vlaneseq
    %v966 = vshrl.u32 %v965, 7
    %v967 = vsub.s32 %v964, %v966
    %v968 = vrot.slane %v952, %v967
    %v970 = vunpack.c.l.s4 1966171168
    %v971 = vunpack.c.0.s8 %v970
    %v972 = vlaneseq
    %v973 = vshrl.u32 %v972, 7
    %v974 = vsub.s32 %v971, %v973
    %v975 = vrot.slane %v953, %v974
    %v977 = vunpack.c.l.s4 1966171168
    %v978 = vunpack.c.0.s8 %v977
    %v979 = vlaneseq
    %v980 = vshrl.u32 %v979, 7
    %v981 = vsub.s32 %v978, %v980
    %v982 = vrot.slane %v954, %v981
    %v983 = vcombine.high %v961, %v961
    %v984 = vcombine.high %v968, %v968
    %v985 = vcombine.high %v975, %v975
    %v986 = vcombine.high %v982, %v982
    %v988 = vunpack.c.l.s4 1966171168
    %v989 = vunpack.c.0.s8 %v988
    %v990 = vlaneseq
    %v991 = vshrl.u32 %v990, 7
    %v992 = vsub.s32 %v989, %v991
    %v993 = vrot.slane %v59, %v992
    %v994 = vcombine.high %v993, %v993
    %v996 = vunpack.c.l.s4 1966171168
    %v997 = vunpack.c.0.s8 %v996
    %v998 = vlaneseq
    %v999 = vshrl.u32 %v998, 7
    %v1000 = vsub.s32 %v997, %v999
    %v1001 = vrot.slane %v993, %v1000
    %v1003 = vunpack.c.l.s4 1966171168
    %v1004 = vunpack.c.0.s8 %v1003
    %v1005 = vlaneseq
    %v1006 = vshrl.u32 %v1005, 7
    %v1007 = vsub.s32 %v1004, %v1006
    %v1008 = vrot.slane %v994, %v1007
    %v1684 = vunpack.c.l.b16 %v60
    %v1685 = vunpack.c.h.b16 %v60
    %v1686 = vunpack.c.l.b16 %v61
    %v1687 = vunpack.c.h.b16 %v61
    %v1688 = vunpack.c.l.b16 %v62
    %v1689 = vunpack.c.h.b16 %v62
    %v1690 = vunpack.c.l.b16 %v63
    %v1691 = vunpack.c.h.b16 %v63
    %v1692 = vunpack.c.l.b16 %v64
    %v1693 = vunpack.c.h.b16 %v64
    %v1694 = vunpack.c.l.b16 %v65
    %v1695 = vunpack.c.h.b16 %v65
    %v1696 = vunpack.c.l.b16 %v66
    %v1697 = vunpack.c.h.b16 %v66
    %v1698 = vunpack.c.l.b16 %v67
    %v1699 = vunpack.c.h.b16 %v67
    %v1700 = vunpack.c.l.b16 %v68
    %v1701 = vunpack.c.h.b16 %v68
    %v1702 = vunpack.c.l.b16 %v69
    %v1703 = vunpack.c.h.b16 %v69
    %v1704 = vunpack.c.l.b16 %v70
    %v1705 = vunpack.c.h.b16 %v70
    %v1706 = vunpack.c.l.b16 %v71
    %v1707 = vunpack.c.h.b16 %v71
    %v1708 = vunpack.c.l.b16 %v72
    %v1709 = vunpack.c.h.b16 %v72
    %v1710 = vunpack.c.l.b16 %v73
    %v1711 = vunpack.c.h.b16 %v73
    %v1712 = vunpack.c.l.b16 %v74
    %v1713 = vunpack.c.h.b16 %v74
    %v1714 = vunpack.c.l.b16 %v75
    %v1715 = vunpack.c.h.b16 %v75
    %v1716 = vunpack.c.l.b16 %v76
    %v1717 = vunpack.c.h.b16 %v76
    %v1718 = vunpack.c.l.b16 %v77
    %v1719 = vunpack.c.h.b16 %v77
    %v1720 = vunpack.c.l.b16 %v78
    %v1721 = vunpack.c.h.b16 %v78
    %v1722 = vunpack.c.l.b16 %v79
    %v1723 = vunpack.c.h.b16 %v79
    %v1724 = vunpack.c.l.b16 %v80
    %v1725 = vunpack.c.h.b16 %v80
    %v1726 = vunpack.c.l.b16 %v81
    %v1727 = vunpack.c.h.b16 %v81
    %v1728 = vunpack.c.l.b16 %v82
    %v1729 = vunpack.c.h.b16 %v82
    %v1730 = vunpack.c.l.b16 %v83
    %v1731 = vunpack.c.h.b16 %v83
    %v1732 = vunpack.c.l.b16 %v84
    %v1733 = vunpack.c.h.b16 %v84
    %v1734 = vunpack.c.l.b16 %v85
    %v1735 = vunpack.c.h.b16 %v85
    %v1736 = vunpack.c.l.b16 %v86
    %v1737 = vunpack.c.h.b16 %v86
    %v1738 = vunpack.c.l.b16 %v87
    %v1739 = vunpack.c.h.b16 %v87
    %v1740 = vunpack.c.l.b16 %v88
    %v1741 = vunpack.c.h.b16 %v88
    %v1742 = vunpack.c.l.b16 %v89
    %v1743 = vunpack.c.h.b16 %v89
    %v1744 = vunpack.c.l.b16 %v90
    %v1745 = vunpack.c.h.b16 %v90
    %v1746 = vunpack.c.l.b16 %v91
    %v1747 = vunpack.c.h.b16 %v91
    %v1748 = vunpack.c.l.b16 %v92
    %v1749 = vunpack.c.h.b16 %v92
    %v1750 = vunpack.c.l.b16 %v93
    %v1751 = vunpack.c.h.b16 %v93
    %v1752 = vunpack.c.l.b16 %v94
    %v1753 = vunpack.c.h.b16 %v94
    %v1754 = vunpack.c.l.b16 %v95
    %v1755 = vunpack.c.h.b16 %v95
    %v1756 = vunpack.c.l.b16 %v96
    %v1757 = vunpack.c.h.b16 %v96
    %v1758 = vunpack.c.l.b16 %v97
    %v1759 = vunpack.c.h.b16 %v97
    %v1760 = vunpack.c.l.b16 %v98
    %v1761 = vunpack.c.h.b16 %v98
    %v1762 = vunpack.c.l.b16 %v99
    %v1763 = vunpack.c.h.b16 %v99
    %v1764 = vunpack.c.l.b16 %v100
    %v1765 = vunpack.c.h.b16 %v100
    %v1766 = vunpack.c.l.b16 %v101
    %v1767 = vunpack.c.h.b16 %v101
    %v1768 = vunpack.c.l.b16 %v102
    %v1769 = vunpack.c.h.b16 %v102
    %v1770 = vunpack.c.l.b16 %v103
    %v1771 = vunpack.c.h.b16 %v103
    %v1772 = vunpack.c.l.b16 %v104
    %v1773 = vunpack.c.h.b16 %v104
    %v1774 = vunpack.c.l.b16 %v105
    %v1775 = vunpack.c.h.b16 %v105
    %v1776 = vunpack.c.l.b16 %v106
    %v1777 = vunpack.c.h.b16 %v106
    %v1778 = vunpack.c.l.b16 %v107
    %v1779 = vunpack.c.h.b16 %v107
    %v1780 = vunpack.c.l.b16 %v108
    %v1781 = vunpack.c.h.b16 %v108
    %v1782 = vunpack.c.l.b16 %v109
    %v1783 = vunpack.c.h.b16 %v109
    %v1784 = vunpack.c.l.b16 %v110
    %v1785 = vunpack.c.h.b16 %v110
    %v1786 = vunpack.c.l.b16 %v111
    %v1787 = vunpack.c.h.b16 %v111
    %v1788 = vunpack.c.l.b16 %v112
    %v1789 = vunpack.c.h.b16 %v112
    %v1790 = vunpack.c.l.b16 %v113
    %v1791 = vunpack.c.h.b16 %v113
    %v1792 = vunpack.c.l.b16 %v114
    %v1793 = vunpack.c.h.b16 %v114
    %v1794 = vunpack.c.l.b16 %v115
    %v1795 = vunpack.c.h.b16 %v115
    %v1796 = vunpack.c.l.b16 %v116
    %v1797 = vunpack.c.h.b16 %v116
    %v1798 = vunpack.c.l.b16 %v117
    %v1799 = vunpack.c.h.b16 %v117
    %v1800 = vunpack.c.l.b16 %v118
    %v1801 = vunpack.c.h.b16 %v118
    %v1802 = vunpack.c.l.b16 %v119
    %v1803 = vunpack.c.h.b16 %v119
    %v1804 = vunpack.c.l.b16 %v120
    %v1805 = vunpack.c.h.b16 %v120
    %v1806 = vunpack.c.l.b16 %v121
    %v1807 = vunpack.c.h.b16 %v121
    %v1808 = vunpack.c.l.b16 %v122
    %v1809 = vunpack.c.h.b16 %v122
    %v1810 = vunpack.c.l.b16 %v123
    %v1811 = vunpack.c.h.b16 %v123
    %v1812 = vunpack.c.l.b16 %v124
    %v1813 = vunpack.c.h.b16 %v124
    %v1814 = vunpack.c.l.b16 %v125
    %v1815 = vunpack.c.h.b16 %v125
    %v1816 = vunpack.c.l.b16 %v126
    %v1817 = vunpack.c.h.b16 %v126
    %v1818 = vunpack.c.l.b16 %v127
    %v1819 = vunpack.c.h.b16 %v127
    %v1820 = vunpack.c.l.b16 %v128
    %v1821 = vunpack.c.h.b16 %v128
    %v1822 = vunpack.c.l.b16 %v129
    %v1823 = vunpack.c.h.b16 %v129
    %v1824 = vunpack.c.l.b16 %v130
    %v1825 = vunpack.c.h.b16 %v130
    %v1826 = vunpack.c.l.b16 %v131
    %v1827 = vunpack.c.h.b16 %v131
    %v1828 = vunpack.c.l.b16 %v132
    %v1829 = vunpack.c.h.b16 %v132
    %v1830 = vunpack.c.l.b16 %v133
    %v1831 = vunpack.c.h.b16 %v133
    %v1832 = vunpack.c.l.b16 %v134
    %v1833 = vunpack.c.h.b16 %v134
    %v1834 = vunpack.c.l.b16 %v135
    %v1835 = vunpack.c.h.b16 %v135
    %v1836 = vunpack.c.l.b16 %v136
    %v1837 = vunpack.c.h.b16 %v136
    %v1838 = vunpack.c.l.b16 %v137
    %v1839 = vunpack.c.h.b16 %v137
    %v1840 = vunpack.c.l.b16 %v138
    %v1841 = vunpack.c.h.b16 %v138
    %v1842 = vunpack.c.l.b16 %v139
    %v1843 = vunpack.c.h.b16 %v139
    %v1844 = vunpack.c.l.b16 %v140
    %v1845 = vunpack.c.h.b16 %v140
    %v1846 = vunpack.c.l.b16 %v141
    %v1847 = vunpack.c.h.b16 %v141
    %v1848 = vunpack.c.l.b16 %v142
    %v1849 = vunpack.c.h.b16 %v142
    %v1850 = vunpack.c.l.b16 %v143
    %v1851 = vunpack.c.h.b16 %v143
    %v1852 = vunpack.c.l.b16 %v144
    %v1853 = vunpack.c.h.b16 %v144
    %v1854 = vunpack.c.l.b16 %v145
    %v1855 = vunpack.c.h.b16 %v145
    %v1856 = vunpack.c.l.b16 %v146
    %v1857 = vunpack.c.h.b16 %v146
    %v1858 = vunpack.c.l.b16 %v147
    %v1859 = vunpack.c.h.b16 %v147
    %v1860 = vunpack.c.l.b16 %v148
    %v1861 = vunpack.c.h.b16 %v148
    %v1862 = vunpack.c.l.b16 %v149
    %v1863 = vunpack.c.h.b16 %v149
    %v1864 = vunpack.c.l.b16 %v150
    %v1865 = vunpack.c.h.b16 %v150
    %v1866 = vunpack.c.l.b16 %v151
    %v1867 = vunpack.c.h.b16 %v151
    %v1868 = vunpack.c.l.b16 %v152
    %v1869 = vunpack.c.h.b16 %v152
    %v1870 = vunpack.c.l.b16 %v153
    %v1871 = vunpack.c.h.b16 %v153
    %v1872 = vunpack.c.l.b16 %v154
    %v1873 = vunpack.c.h.b16 %v154
    %v1874 = vunpack.c.l.b16 %v155
    %v1875 = vunpack.c.h.b16 %v155
    %v1876 = vunpack.c.l.b16 %v156
    %v1877 = vunpack.c.h.b16 %v156
    %v1878 = vunpack.c.l.b16 %v157
    %v1879 = vunpack.c.h.b16 %v157
    %v1880 = vunpack.c.l.b16 %v158
    %v1881 = vunpack.c.h.b16 %v158
    %v1882 = vunpack.c.l.b16 %v159
    %v1883 = vunpack.c.h.b16 %v159
    %v1884 = vunpack.c.l.b16 %v160
    %v1885 = vunpack.c.h.b16 %v160
    %v1886 = vunpack.c.l.b16 %v161
    %v1887 = vunpack.c.h.b16 %v161
    %v1888 = vunpack.c.l.b16 %v162
    %v1889 = vunpack.c.h.b16 %v162
    %v1890 = vunpack.c.l.b16 %v163
    %v1891 = vunpack.c.h.b16 %v163
    %v1892 = vunpack.c.l.b16 %v164
    %v1893 = vunpack.c.h.b16 %v164
    %v1894 = vunpack.c.l.b16 %v165
    %v1895 = vunpack.c.h.b16 %v165
    %v1896 = vunpack.c.l.b16 %v166
    %v1897 = vunpack.c.h.b16 %v166
    %v1898 = vunpack.c.l.b16 %v167
    %v1899 = vunpack.c.h.b16 %v167
    %v1900 = vunpack.c.l.b16 %v168
    %v1901 = vunpack.c.h.b16 %v168
    %v1902 = vunpack.c.l.b16 %v169
    %v1903 = vunpack.c.h.b16 %v169
    %v1904 = vunpack.c.l.b16 %v170
    %v1905 = vunpack.c.h.b16 %v170
    %v1906 = vunpack.c.l.b16 %v171
    %v1907 = vunpack.c.h.b16 %v171
    %v1908 = vunpack.c.l.b16 %v172
    %v1909 = vunpack.c.h.b16 %v172
    %v1910 = vunpack.c.l.b16 %v173
    %v1911 = vunpack.c.h.b16 %v173
    %v1912 = vunpack.c.l.b16 %v174
    %v1913 = vunpack.c.h.b16 %v174
    %v1914 = vunpack.c.l.b16 %v175
    %v1915 = vunpack.c.h.b16 %v175
    %v1916 = vunpack.c.l.b16 %v176
    %v1917 = vunpack.c.h.b16 %v176
    %v1918 = vunpack.c.l.b16 %v177
    %v1919 = vunpack.c.h.b16 %v177
    %v1920 = vunpack.c.l.b16 %v178
    %v1921 = vunpack.c.h.b16 %v178
    %v1922 = vunpack.c.l.b16 %v179
    %v1923 = vunpack.c.h.b16 %v179
    %v1924 = vunpack.c.l.b16 %v180
    %v1925 = vunpack.c.h.b16 %v180
    %v1926 = vunpack.c.l.b16 %v181
    %v1927 = vunpack.c.h.b16 %v181
    %v1928 = vunpack.c.l.b16 %v182
    %v1929 = vunpack.c.h.b16 %v182
    %v1930 = vunpack.c.l.b16 %v183
    %v1931 = vunpack.c.h.b16 %v183
    %v1932 = vunpack.c.l.b16 %v184
    %v1933 = vunpack.c.h.b16 %v184
    %v1934 = vunpack.c.l.b16 %v185
    %v1935 = vunpack.c.h.b16 %v185
    %v1936 = vunpack.c.l.b16 %v186
    %v1937 = vunpack.c.h.b16 %v186
    %v1938 = vunpack.c.l.b16 %v187
    %v1939 = vunpack.c.h.b16 %v187
    %v1940 = vunpack.c.l.b16 %v188
    %v1941 = vunpack.c.h.b16 %v188
    %v1942 = vunpack.c.l.b16 %v189
    %v1943 = vunpack.c.h.b16 %v189
    %v1944 = vunpack.c.l.b16 %v190
    %v1945 = vunpack.c.h.b16 %v190
    %v1946 = vunpack.c.l.b16 %v191
    %v1947 = vunpack.c.h.b16 %v191
    %v1948 = vunpack.c.l.b16 %v192
    %v1949 = vunpack.c.h.b16 %v192
    %v1950 = vunpack.c.l.b16 %v193
    %v1951 = vunpack.c.h.b16 %v193
    %v1952 = vunpack.c.l.b16 %v194
    %v1953 = vunpack.c.h.b16 %v194
    %v1954 = vunpack.c.l.b16 %v195
    %v1955 = vunpack.c.h.b16 %v195
    %v1956 = vunpack.c.l.b16 %v196
    %v1957 = vunpack.c.h.b16 %v196
    %v1958 = vunpack.c.l.b16 %v197
    %v1959 = vunpack.c.h.b16 %v197
    %v1960 = vunpack.c.l.b16 %v198
    %v1961 = vunpack.c.h.b16 %v198
    %v1962 = vunpack.c.l.b16 %v199
    %v1963 = vunpack.c.h.b16 %v199
    %v1964 = vunpack.c.l.b16 %v200
    %v1965 = vunpack.c.h.b16 %v200
    %v1966 = vunpack.c.l.b16 %v201
    %v1967 = vunpack.c.h.b16 %v201
    %v1968 = vunpack.c.l.b16 %v202
    %v1969 = vunpack.c.h.b16 %v202
    %v1970 = vunpack.c.l.b16 %v203
    %v1971 = vunpack.c.h.b16 %v203
    %v1972 = vunpack.c.l.b16 %v204
    %v1973 = vunpack.c.h.b16 %v204
    %v1974 = vunpack.c.l.b16 %v205
    %v1975 = vunpack.c.h.b16 %v205
    %v1976 = vunpack.c.l.b16 %v206
    %v1977 = vunpack.c.h.b16 %v206
    %v1978 = vunpack.c.l.b16 %v207
    %v1979 = vunpack.c.h.b16 %v207
    %v1980 = vunpack.c.l.b16 %v208
    %v1981 = vunpack.c.h.b16 %v208
    %v1982 = vunpack.c.l.b16 %v209
    %v1983 = vunpack.c.h.b16 %v209
    %v1984 = vunpack.c.l.b16 %v210
    %v1985 = vunpack.c.h.b16 %v210
    %v1986 = vunpack.c.l.b16 %v211
    %v1987 = vunpack.c.h.b16 %v211
    %v1988 = vunpack.c.l.b16 %v212
    %v1989 = vunpack.c.h.b16 %v212
    %v1990 = vunpack.c.l.b16 %v213
    %v1991 = vunpack.c.h.b16 %v213
    %v1992 = vunpack.c.l.b16 %v214
    %v1993 = vunpack.c.h.b16 %v214
    %v1994 = vunpack.c.l.b16 %v215
    %v1995 = vunpack.c.h.b16 %v215
    %v1996 = vunpack.c.l.b16 %v216
    %v1997 = vunpack.c.h.b16 %v216
    %v1998 = vunpack.c.l.b16 %v217
    %v1999 = vunpack.c.h.b16 %v217
    %v2000 = vunpack.c.l.b16 %v218
    %v2001 = vunpack.c.h.b16 %v218
    %v2002 = vunpack.c.l.b16 %v219
    %v2003 = vunpack.c.h.b16 %v219
    %v2004 = vunpack.c.l.b16 %v220
    %v2005 = vunpack.c.h.b16 %v220
    %v2006 = vunpack.c.l.b16 %v221
    %v2007 = vunpack.c.h.b16 %v221
    %v2008 = vunpack.c.l.b16 %v222
    %v2009 = vunpack.c.h.b16 %v222
    %v2010 = vunpack.c.l.b16 %v223
    %v2011 = vunpack.c.h.b16 %v223
    %v2012 = vunpack.c.l.b16 %v224
    %v2013 = vunpack.c.h.b16 %v224
    %v2014 = vunpack.c.l.b16 %v225
    %v2015 = vunpack.c.h.b16 %v225
    %v2016 = vunpack.c.l.b16 %v226
    %v2017 = vunpack.c.h.b16 %v226
    %v2018 = vunpack.c.l.b16 %v227
    %v2019 = vunpack.c.h.b16 %v227
    %v2020 = vunpack.c.l.b16 %v228
    %v2021 = vunpack.c.h.b16 %v228
    %v2022 = vunpack.c.l.b16 %v229
    %v2023 = vunpack.c.h.b16 %v229
    %v2024 = vunpack.c.l.b16 %v230
    %v2025 = vunpack.c.h.b16 %v230
    %v2026 = vunpack.c.l.b16 %v231
    %v2027 = vunpack.c.h.b16 %v231
    %v2028 = vunpack.c.l.b16 %v232
    %v2029 = vunpack.c.h.b16 %v232
    %v2030 = vunpack.c.l.b16 %v233
    %v2031 = vunpack.c.h.b16 %v233
    %v2032 = vunpack.c.l.b16 %v234
    %v2033 = vunpack.c.h.b16 %v234
    %v2034 = vunpack.c.l.b16 %v235
    %v2035 = vunpack.c.h.b16 %v235
    %v2036 = vunpack.c.l.b16 %v236
    %v2037 = vunpack.c.h.b16 %v236
    %v2038 = vunpack.c.l.b16 %v237
    %v2039 = vunpack.c.h.b16 %v237
    %v2040 = vunpack.c.l.b16 %v238
    %v2041 = vunpack.c.h.b16 %v238
    %v2042 = vunpack.c.l.b16 %v239
    %v2043 = vunpack.c.h.b16 %v239
    %v2044 = vunpack.c.l.b16 %v240
    %v2045 = vunpack.c.h.b16 %v240
    %v2046 = vunpack.c.l.b16 %v241
    %v2047 = vunpack.c.h.b16 %v241
    %v2048 = vunpack.c.l.b16 %v242
    %v2049 = vunpack.c.h.b16 %v242
    %v2050 = vunpack.c.l.b16 %v243
    %v2051 = vunpack.c.h.b16 %v243
    %v2052 = vunpack.c.l.b16 %v244
    %v2053 = vunpack.c.h.b16 %v244
    %v2054 = vunpack.c.l.b16 %v245
    %v2055 = vunpack.c.h.b16 %v245
    %v2056 = vunpack.c.l.b16 %v246
    %v2057 = vunpack.c.h.b16 %v246
    %v2058 = vunpack.c.l.b16 %v247
    %v2059 = vunpack.c.h.b16 %v247
    %v2060 = vunpack.c.l.b16 %v248
    %v2061 = vunpack.c.h.b16 %v248
    %v2062 = vunpack.c.l.b16 %v249
    %v2063 = vunpack.c.h.b16 %v249
    %v2064 = vunpack.c.l.b16 %v250
    %v2065 = vunpack.c.h.b16 %v250
    %v2066 = vunpack.c.l.b16 %v251
    %v2067 = vunpack.c.h.b16 %v251
    %v2068 = vunpack.c.l.b16 %v252
    %v2069 = vunpack.c.h.b16 %v252
    %v2070 = vunpack.c.l.b16 %v253
    %v2071 = vunpack.c.h.b16 %v253
    %v2072 = vunpack.c.l.b16 %v254
    %v2073 = vunpack.c.h.b16 %v254
    %v2074 = vunpack.c.l.b16 %v255
    %v2075 = vunpack.c.h.b16 %v255
    %v2076 = vunpack.c.l.b16 %v256
    %v2077 = vunpack.c.h.b16 %v256
    %v2078 = vunpack.c.l.b16 %v257
    %v2079 = vunpack.c.h.b16 %v257
    %v2080 = vunpack.c.l.b16 %v258
    %v2081 = vunpack.c.h.b16 %v258
    %v2082 = vunpack.c.l.b16 %v259
    %v2083 = vunpack.c.h.b16 %v259
    %v2084 = vunpack.c.l.b16 %v260
    %v2085 = vunpack.c.h.b16 %v260
    %v2086 = vunpack.c.l.b16 %v261
    %v2087 = vunpack.c.h.b16 %v261
    %v2088 = vunpack.c.l.b16 %v262
    %v2089 = vunpack.c.h.b16 %v262
    %v2090 = vunpack.c.l.b16 %v263
    %v2091 = vunpack.c.h.b16 %v263
    %v2092 = vunpack.c.l.b16 %v264
    %v2093 = vunpack.c.h.b16 %v264
    %v2094 = vunpack.c.l.b16 %v265
    %v2095 = vunpack.c.h.b16 %v265
    %v2096 = vunpack.c.l.b16 %v266
    %v2097 = vunpack.c.h.b16 %v266
    %v2098 = vunpack.c.l.b16 %v267
    %v2099 = vunpack.c.h.b16 %v267
    %v2100 = vunpack.c.l.b16 %v268
    %v2101 = vunpack.c.h.b16 %v268
    %v2102 = vunpack.c.l.b16 %v269
    %v2103 = vunpack.c.h.b16 %v269
    %v2104 = vunpack.c.l.b16 %v270
    %v2105 = vunpack.c.h.b16 %v270
    %v2106 = vunpack.c.l.b16 %v271
    %v2107 = vunpack.c.h.b16 %v271
    %v2108 = vunpack.c.l.b16 %v272
    %v2109 = vunpack.c.h.b16 %v272
    %v2110 = vunpack.c.l.b16 %v273
    %v2111 = vunpack.c.h.b16 %v273
    %v2112 = vunpack.c.l.b16 %v274
    %v2113 = vunpack.c.h.b16 %v274
    %v2114 = vunpack.c.l.b16 %v275
    %v2115 = vunpack.c.h.b16 %v275
    %v2116 = vunpack.c.l.b16 %v276
    %v2117 = vunpack.c.h.b16 %v276
    %v2118 = vunpack.c.l.b16 %v277
    %v2119 = vunpack.c.h.b16 %v277
    %v2120 = vunpack.c.l.b16 %v278
    %v2121 = vunpack.c.h.b16 %v278
    %v2122 = vunpack.c.l.b16 %v279
    %v2123 = vunpack.c.h.b16 %v279
    %v2124 = vunpack.c.l.b16 %v280
    %v2125 = vunpack.c.h.b16 %v280
    %v2126 = vunpack.c.l.b16 %v281
    %v2127 = vunpack.c.h.b16 %v281
    %v2128 = vunpack.c.l.b16 %v282
    %v2129 = vunpack.c.h.b16 %v282
    %v2130 = vunpack.c.l.b16 %v283
    %v2131 = vunpack.c.h.b16 %v283
    %v2132 = vunpack.c.l.b16 %v284
    %v2133 = vunpack.c.h.b16 %v284
    %v2134 = vunpack.c.l.b16 %v285
    %v2135 = vunpack.c.h.b16 %v285
    %v2136 = vunpack.c.l.b16 %v286
    %v2137 = vunpack.c.h.b16 %v286
    %v2138 = vunpack.c.l.b16 %v287
    %v2139 = vunpack.c.h.b16 %v287
    %v2140 = vunpack.c.l.b16 %v288
    %v2141 = vunpack.c.h.b16 %v288
    %v2142 = vunpack.c.l.b16 %v289
    %v2143 = vunpack.c.h.b16 %v289
    %v2144 = vunpack.c.l.b16 %v290
    %v2145 = vunpack.c.h.b16 %v290
    %v2146 = vunpack.c.l.b16 %v291
    %v2147 = vunpack.c.h.b16 %v291
    %v2148 = vunpack.c.l.b16 %v292
    %v2149 = vunpack.c.h.b16 %v292
    %v2150 = vunpack.c.l.b16 %v293
    %v2151 = vunpack.c.h.b16 %v293
    %v2152 = vunpack.c.l.b16 %v294
    %v2153 = vunpack.c.h.b16 %v294
    %v2154 = vunpack.c.l.b16 %v295
    %v2155 = vunpack.c.h.b16 %v295
    %v2156 = vunpack.c.l.b16 %v296
    %v2157 = vunpack.c.h.b16 %v296
    %v2158 = vunpack.c.l.b16 %v297
    %v2159 = vunpack.c.h.b16 %v297
    %v2160 = vunpack.c.l.b16 %v298
    %v2161 = vunpack.c.h.b16 %v298
    %v2162 = vunpack.c.l.b16 %v299
    %v2163 = vunpack.c.h.b16 %v299
    %v2164 = vunpack.c.l.b16 %v300
    %v2165 = vunpack.c.h.b16 %v300
    %v2166 = vunpack.c.l.b16 %v301
    %v2167 = vunpack.c.h.b16 %v301
    %v2168 = vunpack.c.l.b16 %v302
    %v2169 = vunpack.c.h.b16 %v302
    %v2170 = vunpack.c.l.b16 %v303
    %v2171 = vunpack.c.h.b16 %v303
    %v2172 = vunpack.c.l.b16 %v304
    %v2173 = vunpack.c.h.b16 %v304
    %v2174 = vunpack.c.l.b16 %v305
    %v2175 = vunpack.c.h.b16 %v305
    %v2176 = vunpack.c.l.b16 %v306
    %v2177 = vunpack.c.h.b16 %v306
    %v2178 = vunpack.c.l.b16 %v307
    %v2179 = vunpack.c.h.b16 %v307
    %v2180 = vunpack.c.l.b16 %v308
    %v2181 = vunpack.c.h.b16 %v308
    %v2182 = vunpack.c.l.b16 %v309
    %v2183 = vunpack.c.h.b16 %v309
    %v2184 = vunpack.c.l.b16 %v310
    %v2185 = vunpack.c.h.b16 %v310
    %v2186 = vunpack.c.l.b16 %v311
    %v2187 = vunpack.c.h.b16 %v311
    %v2188 = vunpack.c.l.b16 %v312
    %v2189 = vunpack.c.h.b16 %v312
    %v2190 = vunpack.c.l.b16 %v313
    %v2191 = vunpack.c.h.b16 %v313
    %v2192 = vunpack.c.l.b16 %v314
    %v2193 = vunpack.c.h.b16 %v314
    %v2194 = vunpack.c.l.b16 %v315
    %v2195 = vunpack.c.h.b16 %v315
    %v2196 = vunpack.c.l.b16 %v316
    %v2197 = vunpack.c.h.b16 %v316
    %v2198 = vunpack.c.l.b16 %v317
    %v2199 = vunpack.c.h.b16 %v317
    %v2200 = vunpack.c.l.b16 %v318
    %v2201 = vunpack.c.h.b16 %v318
    %v2202 = vunpack.c.l.b16 %v319
    %v2203 = vunpack.c.h.b16 %v319
    %v2204 = vunpack.c.l.b16 %v320
    %v2205 = vunpack.c.h.b16 %v320
    %v2206 = vunpack.c.l.b16 %v321
    %v2207 = vunpack.c.h.b16 %v321
    %v2208 = vunpack.c.l.b16 %v322
    %v2209 = vunpack.c.h.b16 %v322
    %v2210 = vunpack.c.l.b16 %v323
    %v2211 = vunpack.c.h.b16 %v323
    %v2212 = vunpack.c.l.b16 %v324
    %v2213 = vunpack.c.h.b16 %v324
    %v2214 = vunpack.c.l.b16 %v325
    %v2215 = vunpack.c.h.b16 %v325
    %v2216 = vunpack.c.l.b16 %v326
    %v2217 = vunpack.c.h.b16 %v326
    %v2218 = vunpack.c.l.b16 %v327
    %v2219 = vunpack.c.h.b16 %v327
    %v2220 = vunpack.c.l.b16 %v328
    %v2221 = vunpack.c.h.b16 %v328
    %v2222 = vunpack.c.l.b16 %v329
    %v2223 = vunpack.c.h.b16 %v329
    %v2224 = vunpack.c.l.b16 %v330
    %v2225 = vunpack.c.h.b16 %v330
    %v2226 = vunpack.c.l.b16 %v331
    %v2227 = vunpack.c.h.b16 %v331
    %v2228 = vunpack.c.l.b16 %v332
    %v2229 = vunpack.c.h.b16 %v332
    %v2230 = vunpack.c.l.b16 %v333
    %v2231 = vunpack.c.h.b16 %v333
    %v2232 = vunpack.c.l.b16 %v334
    %v2233 = vunpack.c.h.b16 %v334
    %v2234 = vunpack.c.l.b16 %v335
    %v2235 = vunpack.c.h.b16 %v335
    %v2236 = vunpack.c.l.b16 %v336
    %v2237 = vunpack.c.h.b16 %v336
    %v2238 = vunpack.c.l.b16 %v337
    %v2239 = vunpack.c.h.b16 %v337
    %v2240 = vunpack.c.l.b16 %v338
    %v2241 = vunpack.c.h.b16 %v338
    %v2242 = vunpack.c.l.b16 %v339
    %v2243 = vunpack.c.h.b16 %v339
    %v2244 = vunpack.c.l.b16 %v340
    %v2245 = vunpack.c.h.b16 %v340
    %v2246 = vunpack.c.l.b16 %v341
    %v2247 = vunpack.c.h.b16 %v341
    %v2248 = vunpack.c.l.b16 %v342
    %v2249 = vunpack.c.h.b16 %v342
    %v2250 = vunpack.c.l.b16 %v343
    %v2251 = vunpack.c.h.b16 %v343
    %v2252 = vunpack.c.l.b16 %v344
    %v2253 = vunpack.c.h.b16 %v344
    %v2254 = vunpack.c.l.b16 %v345
    %v2255 = vunpack.c.h.b16 %v345
    %v2256 = vunpack.c.l.b16 %v346
    %v2257 = vunpack.c.h.b16 %v346
    %v2258 = vunpack.c.l.b16 %v347
    %v2259 = vunpack.c.h.b16 %v347
    %v2260 = vunpack.c.l.b16 %v348
    %v2261 = vunpack.c.h.b16 %v348
    %v2262 = vunpack.c.l.b16 %v349
    %v2263 = vunpack.c.h.b16 %v349
    %v2264 = vunpack.c.l.b16 %v350
    %v2265 = vunpack.c.h.b16 %v350
    %v2266 = vunpack.c.l.b16 %v351
    %v2267 = vunpack.c.h.b16 %v351
    %v2268 = vunpack.c.l.b16 %v352
    %v2269 = vunpack.c.h.b16 %v352
    %v2270 = vunpack.c.l.b16 %v353
    %v2271 = vunpack.c.h.b16 %v353
    %v2272 = vunpack.c.l.b16 %v354
    %v2273 = vunpack.c.h.b16 %v354
    %v2274 = vunpack.c.l.b16 %v355
    %v2275 = vunpack.c.h.b16 %v355
    %v2276 = vunpack.c.l.b16 %v356
    %v2277 = vunpack.c.h.b16 %v356
    %v2278 = vunpack.c.l.b16 %v357
    %v2279 = vunpack.c.h.b16 %v357
    %v2280 = vunpack.c.l.b16 %v358
    %v2281 = vunpack.c.h.b16 %v358
    %v2282 = vunpack.c.l.b16 %v359
    %v2283 = vunpack.c.h.b16 %v359
    %v2284 = vunpack.c.l.b16 %v360
    %v2285 = vunpack.c.h.b16 %v360
    %v2286 = vunpack.c.l.b16 %v361
    %v2287 = vunpack.c.h.b16 %v361
    %v2288 = vunpack.c.l.b16 %v362
    %v2289 = vunpack.c.h.b16 %v362
    %v2290 = vunpack.c.l.b16 %v363
    %v2291 = vunpack.c.h.b16 %v363
    %v2292 = vunpack.c.l.b16 %v364
    %v2293 = vunpack.c.h.b16 %v364
    %v2294 = vunpack.c.l.b16 %v365
    %v2295 = vunpack.c.h.b16 %v365
    %v2296 = vunpack.c.l.b16 %v366
    %v2297 = vunpack.c.h.b16 %v366
    %v2298 = vunpack.c.l.b16 %v367
    %v2299 = vunpack.c.h.b16 %v367
    %v2300 = vunpack.c.l.b16 %v368
    %v2301 = vunpack.c.h.b16 %v368
    %v2302 = vunpack.c.l.b16 %v369
    %v2303 = vunpack.c.h.b16 %v369
    %v2304 = vunpack.c.l.b16 %v370
    %v2305 = vunpack.c.h.b16 %v370
    %v2306 = vunpack.c.l.b16 %v371
    %v2307 = vunpack.c.h.b16 %v371
    %v2308 = vunpack.c.l.b16 %v372
    %v2309 = vunpack.c.h.b16 %v372
    %v2310 = vunpack.c.l.b16 %v373
    %v2311 = vunpack.c.h.b16 %v373
    %v2312 = vunpack.c.l.b16 %v374
    %v2313 = vunpack.c.h.b16 %v374
    %v2314 = vunpack.c.l.b16 %v375
    %v2315 = vunpack.c.h.b16 %v375
    %v2316 = vunpack.c.l.b16 %v376
    %v2317 = vunpack.c.h.b16 %v376
    %v2318 = vunpack.c.l.b16 %v377
    %v2319 = vunpack.c.h.b16 %v377
    %v2320 = vunpack.c.l.b16 %v378
    %v2321 = vunpack.c.h.b16 %v378
    %v2322 = vunpack.c.l.b16 %v379
    %v2323 = vunpack.c.h.b16 %v379
    %v2324 = vunpack.c.l.b16 %v380
    %v2325 = vunpack.c.h.b16 %v380
    %v2326 = vunpack.c.l.b16 %v381
    %v2327 = vunpack.c.h.b16 %v381
    %v2328 = vunpack.c.l.b16 %v382
    %v2329 = vunpack.c.h.b16 %v382
    %v2330 = vunpack.c.l.b16 %v383
    %v2331 = vunpack.c.h.b16 %v383
    %v2332 = vunpack.c.l.b16 %v384
    %v2333 = vunpack.c.h.b16 %v384
    %v2334 = vunpack.c.l.b16 %v385
    %v2335 = vunpack.c.h.b16 %v385
    %v2336 = vunpack.c.l.b16 %v386
    %v2337 = vunpack.c.h.b16 %v386
    %v2338 = vunpack.c.l.b16 %v387
    %v2339 = vunpack.c.h.b16 %v387
    %v2340 = vunpack.c.l.b16 %v388
    %v2341 = vunpack.c.h.b16 %v388
    %v2342 = vunpack.c.l.b16 %v389
    %v2343 = vunpack.c.h.b16 %v389
    %v2344 = vunpack.c.l.b16 %v390
    %v2345 = vunpack.c.h.b16 %v390
    %v2346 = vunpack.c.l.b16 %v391
    %v2347 = vunpack.c.h.b16 %v391
    %v2348 = vunpack.c.l.b16 %v392
    %v2349 = vunpack.c.h.b16 %v392
    %v2350 = vunpack.c.l.b16 %v393
    %v2351 = vunpack.c.h.b16 %v393
    %v2352 = vunpack.c.l.b16 %v394
    %v2353 = vunpack.c.h.b16 %v394
    %v2354 = vunpack.c.l.b16 %v395
    %v2355 = vunpack.c.h.b16 %v395
    %v2356 = vunpack.c.l.b16 %v396
    %v2357 = vunpack.c.h.b16 %v396
    %v2358 = vunpack.c.l.b16 %v397
    %v2359 = vunpack.c.h.b16 %v397
    %v2360 = vunpack.c.l.b16 %v398
    %v2361 = vunpack.c.h.b16 %v398
    %v2362 = vunpack.c.l.b16 %v399
    %v2363 = vunpack.c.h.b16 %v399
    %v2364 = vunpack.c.l.b16 %v400
    %v2365 = vunpack.c.h.b16 %v400
    %v2366 = vunpack.c.l.b16 %v401
    %v2367 = vunpack.c.h.b16 %v401
    %v2368 = vunpack.c.l.b16 %v402
    %v2369 = vunpack.c.h.b16 %v402
    %v2370 = vunpack.c.l.b16 %v403
    %v2371 = vunpack.c.h.b16 %v403
    %v2372 = vunpack.c.l.b16 %v404
    %v2373 = vunpack.c.h.b16 %v404
    %v2374 = vunpack.c.l.b16 %v405
    %v2375 = vunpack.c.h.b16 %v405
    %v2376 = vunpack.c.l.b16 %v406
    %v2377 = vunpack.c.h.b16 %v406
    %v2378 = vunpack.c.l.b16 %v407
    %v2379 = vunpack.c.h.b16 %v407
    %v2380 = vunpack.c.l.b16 %v408
    %v2381 = vunpack.c.h.b16 %v408
    %v2382 = vunpack.c.l.b16 %v409
    %v2383 = vunpack.c.h.b16 %v409
    %v2384 = vunpack.c.l.b16 %v410
    %v2385 = vunpack.c.h.b16 %v410
    %v2386 = vunpack.c.l.b16 %v411
    %v2387 = vunpack.c.h.b16 %v411
    %v2388 = vunpack.c.l.b16 %v412
    %v2389 = vunpack.c.h.b16 %v412
    %v2390 = vunpack.c.l.b16 %v413
    %v2391 = vunpack.c.h.b16 %v413
    %v2392 = vunpack.c.l.b16 %v414
    %v2393 = vunpack.c.h.b16 %v414
    %v2394 = vunpack.c.l.b16 %v415
    %v2395 = vunpack.c.h.b16 %v415
    %v2396 = vunpack.c.l.b16 %v416
    %v2397 = vunpack.c.h.b16 %v416
    %v2398 = vunpack.c.l.b16 %v417
    %v2399 = vunpack.c.h.b16 %v417
    %v2400 = vunpack.c.l.b16 %v418
    %v2401 = vunpack.c.h.b16 %v418
    %v2402 = vunpack.c.l.b16 %v419
    %v2403 = vunpack.c.h.b16 %v419
    %v2404 = vunpack.c.l.b16 %v420
    %v2405 = vunpack.c.h.b16 %v420
    %v2406 = vunpack.c.l.b16 %v421
    %v2407 = vunpack.c.h.b16 %v421
    %v2408 = vunpack.c.l.b16 %v422
    %v2409 = vunpack.c.h.b16 %v422
    %v2410 = vunpack.c.l.b16 %v423
    %v2411 = vunpack.c.h.b16 %v423
    %v2412 = vunpack.c.l.b16 %v424
    %v2413 = vunpack.c.h.b16 %v424
    %v2414 = vunpack.c.l.b16 %v425
    %v2415 = vunpack.c.h.b16 %v425
    %v2416 = vunpack.c.l.b16 %v426
    %v2417 = vunpack.c.h.b16 %v426
    %v2418 = vunpack.c.l.b16 %v427
    %v2419 = vunpack.c.h.b16 %v427
    %v2420 = vunpack.c.l.b16 %v428
    %v2421 = vunpack.c.h.b16 %v428
    %v2422 = vunpack.c.l.b16 %v429
    %v2423 = vunpack.c.h.b16 %v429
    %v2424 = vunpack.c.l.b16 %v430
    %v2425 = vunpack.c.h.b16 %v430
    %v2426 = vunpack.c.l.b16 %v431
    %v2427 = vunpack.c.h.b16 %v431
    %v2428 = vunpack.c.l.b16 %v432
    %v2429 = vunpack.c.h.b16 %v432
    %v2430 = vunpack.c.l.b16 %v433
    %v2431 = vunpack.c.h.b16 %v433
    %v2432 = vunpack.c.l.b16 %v434
    %v2433 = vunpack.c.h.b16 %v434
    %v2434 = vunpack.c.l.b16 %v435
    %v2435 = vunpack.c.h.b16 %v435
    %v2436 = vunpack.c.l.b16 %v436
    %v2437 = vunpack.c.h.b16 %v436
    %v2438 = vunpack.c.l.b16 %v437
    %v2439 = vunpack.c.h.b16 %v437
    %v2440 = vunpack.c.l.b16 %v438
    %v2441 = vunpack.c.h.b16 %v438
    %v2442 = vunpack.c.l.b16 %v439
    %v2443 = vunpack.c.h.b16 %v439
    %v2444 = vunpack.c.l.b16 %v440
    %v2445 = vunpack.c.h.b16 %v440
    %v2446 = vunpack.c.l.b16 %v441
    %v2447 = vunpack.c.h.b16 %v441
    %v2448 = vunpack.c.l.b16 %v442
    %v2449 = vunpack.c.h.b16 %v442
    %v2450 = vunpack.c.l.b16 %v443
    %v2451 = vunpack.c.h.b16 %v443
    %v2452 = vunpack.c.l.b16 %v444
    %v2453 = vunpack.c.h.b16 %v444
    %v2454 = vunpack.c.l.b16 %v445
    %v2455 = vunpack.c.h.b16 %v445
    %v2456 = vunpack.c.l.b16 %v446
    %v2457 = vunpack.c.h.b16 %v446
    %v2458 = vunpack.c.l.b16 %v447
    %v2459 = vunpack.c.h.b16 %v447
    %v2460 = vunpack.c.l.b16 %v448
    %v2461 = vunpack.c.h.b16 %v448
    %v2462 = vunpack.c.l.b16 %v449
    %v2463 = vunpack.c.h.b16 %v449
    %v2464 = vunpack.c.l.b16 %v450
    %v2465 = vunpack.c.h.b16 %v450
    %v2466 = vunpack.c.l.b16 %v451
    %v2467 = vunpack.c.h.b16 %v451
    %v2468 = vunpack.c.l.b16 %v452
    %v2469 = vunpack.c.h.b16 %v452
    %v2470 = vunpack.c.l.b16 %v453
    %v2471 = vunpack.c.h.b16 %v453
    %v2472 = vunpack.c.l.b16 %v454
    %v2473 = vunpack.c.h.b16 %v454
    %v2474 = vunpack.c.l.b16 %v455
    %v2475 = vunpack.c.h.b16 %v455
    %v2476 = vunpack.c.l.b16 %v456
    %v2477 = vunpack.c.h.b16 %v456
    %v2478 = vunpack.c.l.b16 %v457
    %v2479 = vunpack.c.h.b16 %v457
    %v2480 = vunpack.c.l.b16 %v458
    %v2481 = vunpack.c.h.b16 %v458
    %v2482 = vunpack.c.l.b16 %v459
    %v2483 = vunpack.c.h.b16 %v459
    %v2484 = vunpack.c.l.b16 %v460
    %v2485 = vunpack.c.h.b16 %v460
    %v2486 = vunpack.c.l.b16 %v461
    %v2487 = vunpack.c.h.b16 %v461
    %v2488 = vunpack.c.l.b16 %v462
    %v2489 = vunpack.c.h.b16 %v462
    %v2490 = vunpack.c.l.b16 %v463
    %v2491 = vunpack.c.h.b16 %v463
    %v2492 = vunpack.c.l.b16 %v464
    %v2493 = vunpack.c.h.b16 %v464
    %v2494 = vunpack.c.l.b16 %v465
    %v2495 = vunpack.c.h.b16 %v465
    %v2496 = vunpack.c.l.b16 %v466
    %v2497 = vunpack.c.h.b16 %v466
    %v2498 = vunpack.c.l.b16 %v467
    %v2499 = vunpack.c.h.b16 %v467
    %v2500 = vunpack.c.l.b16 %v468
    %v2501 = vunpack.c.h.b16 %v468
    %v2502 = vunpack.c.l.b16 %v469
    %v2503 = vunpack.c.h.b16 %v469
    %v2504 = vunpack.c.l.b16 %v470
    %v2505 = vunpack.c.h.b16 %v470
    %v2506 = vunpack.c.l.b16 %v471
    %v2507 = vunpack.c.h.b16 %v471
    %v2508 = vunpack.c.l.b16 %v472
    %v2509 = vunpack.c.h.b16 %v472
    %v2510 = vunpack.c.l.b16 %v473
    %v2511 = vunpack.c.h.b16 %v473
    %v2512 = vunpack.c.l.b16 %v474
    %v2513 = vunpack.c.h.b16 %v474
    %v2514 = vunpack.c.l.b16 %v475
    %v2515 = vunpack.c.h.b16 %v475
    %v2516 = vunpack.c.l.b16 %v476
    %v2517 = vunpack.c.h.b16 %v476
    %v2518 = vunpack.c.l.b16 %v477
    %v2519 = vunpack.c.h.b16 %v477
    %v2520 = vunpack.c.l.b16 %v478
    %v2521 = vunpack.c.h.b16 %v478
    %v2522 = vunpack.c.l.b16 %v479
    %v2523 = vunpack.c.h.b16 %v479
    %v2524 = vunpack.c.l.b16 %v480
    %v2525 = vunpack.c.h.b16 %v480
    %v2526 = vunpack.c.l.b16 %v481
    %v2527 = vunpack.c.h.b16 %v481
    %v2528 = vunpack.c.l.b16 %v482
    %v2529 = vunpack.c.h.b16 %v482
    %v2530 = vunpack.c.l.b16 %v483
    %v2531 = vunpack.c.h.b16 %v483
    %v2532 = vunpack.c.l.b16 %v484
    %v2533 = vunpack.c.h.b16 %v484
    %v2534 = vunpack.c.l.b16 %v485
    %v2535 = vunpack.c.h.b16 %v485
    %v2536 = vunpack.c.l.b16 %v486
    %v2537 = vunpack.c.h.b16 %v486
    %v2538 = vunpack.c.l.b16 %v487
    %v2539 = vunpack.c.h.b16 %v487
    %v2540 = vunpack.c.l.b16 %v488
    %v2541 = vunpack.c.h.b16 %v488
    %v2542 = vunpack.c.l.b16 %v489
    %v2543 = vunpack.c.h.b16 %v489
    %v2544 = vunpack.c.l.b16 %v490
    %v2545 = vunpack.c.h.b16 %v490
    %v2546 = vunpack.c.l.b16 %v491
    %v2547 = vunpack.c.h.b16 %v491
    %v2548 = vunpack.c.l.b16 %v492
    %v2549 = vunpack.c.h.b16 %v492
    %v2550 = vunpack.c.l.b16 %v493
    %v2551 = vunpack.c.h.b16 %v493
    %v2552 = vunpack.c.l.b16 %v494
    %v2553 = vunpack.c.h.b16 %v494
    %v2554 = vunpack.c.l.b16 %v495
    %v2555 = vunpack.c.h.b16 %v495
    %v2556 = vunpack.c.l.b16 %v496
    %v2557 = vunpack.c.h.b16 %v496
    %v2558 = vunpack.c.l.b16 %v497
    %v2559 = vunpack.c.h.b16 %v497
    %v2560 = vunpack.c.l.b16 %v498
    %v2561 = vunpack.c.h.b16 %v498
    %v2562 = vunpack.c.l.b16 %v499
    %v2563 = vunpack.c.h.b16 %v499
    %v2564 = vunpack.c.l.b16 %v500
    %v2565 = vunpack.c.h.b16 %v500
    %v2566 = vunpack.c.l.b16 %v501
    %v2567 = vunpack.c.h.b16 %v501
    %v2568 = vunpack.c.l.b16 %v502
    %v2569 = vunpack.c.h.b16 %v502
    %v2570 = vunpack.c.l.b16 %v503
    %v2571 = vunpack.c.h.b16 %v503
    %v2572 = vunpack.c.l.b16 %v504
    %v2573 = vunpack.c.h.b16 %v504
    %v2574 = vunpack.c.l.b16 %v505
    %v2575 = vunpack.c.h.b16 %v505
    %v2576 = vunpack.c.l.b16 %v506
    %v2577 = vunpack.c.h.b16 %v506
    %v2578 = vunpack.c.l.b16 %v507
    %v2579 = vunpack.c.h.b16 %v507
    %v2580 = vunpack.c.l.b16 %v508
    %v2581 = vunpack.c.h.b16 %v508
    %v2582 = vunpack.c.l.b16 %v509
    %v2583 = vunpack.c.h.b16 %v509
    %v2584 = vunpack.c.l.b16 %v510
    %v2585 = vunpack.c.h.b16 %v510
    %v2586 = vunpack.c.l.b16 %v511
    %v2587 = vunpack.c.h.b16 %v511
    %v2588 = vunpack.c.l.b16 %v512
    %v2589 = vunpack.c.h.b16 %v512
    %v2590 = vunpack.c.l.b16 %v513
    %v2591 = vunpack.c.h.b16 %v513
    %v2592 = vunpack.c.l.b16 %v514
    %v2593 = vunpack.c.h.b16 %v514
    %v2594 = vunpack.c.l.b16 %v515
    %v2595 = vunpack.c.h.b16 %v515
    %v2596 = vunpack.c.l.b16 %v516
    %v2597 = vunpack.c.h.b16 %v516
    %v2598 = vunpack.c.l.b16 %v517
    %v2599 = vunpack.c.h.b16 %v517
    %v2600 = vunpack.c.l.b16 %v518
    %v2601 = vunpack.c.h.b16 %v518
    %v2602 = vunpack.c.l.b16 %v519
    %v2603 = vunpack.c.h.b16 %v519
    %v2604 = vunpack.c.l.b16 %v520
    %v2605 = vunpack.c.h.b16 %v520
    %v2606 = vunpack.c.l.b16 %v521
    %v2607 = vunpack.c.h.b16 %v521
    %v2608 = vunpack.c.l.b16 %v522
    %v2609 = vunpack.c.h.b16 %v522
    %v2610 = vunpack.c.l.b16 %v523
    %v2611 = vunpack.c.h.b16 %v523
    %v2612 = vunpack.c.l.b16 %v524
    %v2613 = vunpack.c.h.b16 %v524
    %v2614 = vunpack.c.l.b16 %v525
    %v2615 = vunpack.c.h.b16 %v525
    %v2616 = vunpack.c.l.b16 %v526
    %v2617 = vunpack.c.h.b16 %v526
    %v2618 = vunpack.c.l.b16 %v527
    %v2619 = vunpack.c.h.b16 %v527
    %v2620 = vunpack.c.l.b16 %v528
    %v2621 = vunpack.c.h.b16 %v528
    %v2622 = vunpack.c.l.b16 %v529
    %v2623 = vunpack.c.h.b16 %v529
    %v2624 = vunpack.c.l.b16 %v530
    %v2625 = vunpack.c.h.b16 %v530
    %v2626 = vunpack.c.l.b16 %v531
    %v2627 = vunpack.c.h.b16 %v531
    %v2628 = vunpack.c.l.b16 %v532
    %v2629 = vunpack.c.h.b16 %v532
    %v2630 = vunpack.c.l.b16 %v533
    %v2631 = vunpack.c.h.b16 %v533
    %v2632 = vunpack.c.l.b16 %v534
    %v2633 = vunpack.c.h.b16 %v534
    %v2634 = vunpack.c.l.b16 %v535
    %v2635 = vunpack.c.h.b16 %v535
    %v2636 = vunpack.c.l.b16 %v536
    %v2637 = vunpack.c.h.b16 %v536
    %v2638 = vunpack.c.l.b16 %v537
    %v2639 = vunpack.c.h.b16 %v537
    %v2640 = vunpack.c.l.b16 %v538
    %v2641 = vunpack.c.h.b16 %v538
    %v2642 = vunpack.c.l.b16 %v539
    %v2643 = vunpack.c.h.b16 %v539
    %v2644 = vunpack.c.l.b16 %v540
    %v2645 = vunpack.c.h.b16 %v540
    %v2646 = vunpack.c.l.b16 %v541
    %v2647 = vunpack.c.h.b16 %v541
    %v2648 = vunpack.c.l.b16 %v542
    %v2649 = vunpack.c.h.b16 %v542
    %v2650 = vunpack.c.l.b16 %v543
    %v2651 = vunpack.c.h.b16 %v543
    %v2652 = vunpack.c.l.b16 %v544
    %v2653 = vunpack.c.h.b16 %v544
    %v2654 = vunpack.c.l.b16 %v545
    %v2655 = vunpack.c.h.b16 %v545
    %v2656 = vunpack.c.l.b16 %v546
    %v2657 = vunpack.c.h.b16 %v546
    %v2658 = vunpack.c.l.b16 %v547
    %v2659 = vunpack.c.h.b16 %v547
    %v2660 = vunpack.c.l.b16 %v548
    %v2661 = vunpack.c.h.b16 %v548
    %v2662 = vunpack.c.l.b16 %v549
    %v2663 = vunpack.c.h.b16 %v549
    %v2664 = vunpack.c.l.b16 %v550
    %v2665 = vunpack.c.h.b16 %v550
    %v2666 = vunpack.c.l.b16 %v551
    %v2667 = vunpack.c.h.b16 %v551
    %v2668 = vunpack.c.l.b16 %v552
    %v2669 = vunpack.c.h.b16 %v552
    %v2670 = vunpack.c.l.b16 %v553
    %v2671 = vunpack.c.h.b16 %v553
    %v2672 = vunpack.c.l.b16 %v554
    %v2673 = vunpack.c.h.b16 %v554
    %v2674 = vunpack.c.l.b16 %v555
    %v2675 = vunpack.c.h.b16 %v555
    %v2676 = vunpack.c.l.b16 %v556
    %v2677 = vunpack.c.h.b16 %v556
    %v2678 = vunpack.c.l.b16 %v557
    %v2679 = vunpack.c.h.b16 %v557
    %v2680 = vunpack.c.l.b16 %v558
    %v2681 = vunpack.c.h.b16 %v558
    %v2682 = vunpack.c.l.b16 %v559
    %v2683 = vunpack.c.h.b16 %v559
    %v2684 = vunpack.c.l.b16 %v560
    %v2685 = vunpack.c.h.b16 %v560
    %v2686 = vunpack.c.l.b16 %v561
    %v2687 = vunpack.c.h.b16 %v561
    %v2688 = vunpack.c.l.b16 %v562
    %v2689 = vunpack.c.h.b16 %v562
    %v2690 = vunpack.c.l.b16 %v563
    %v2691 = vunpack.c.h.b16 %v563
    %v2692 = vunpack.c.l.b16 %v564
    %v2693 = vunpack.c.h.b16 %v564
    %v2694 = vunpack.c.l.b16 %v565
    %v2695 = vunpack.c.h.b16 %v565
    %v2696 = vunpack.c.l.b16 %v566
    %v2697 = vunpack.c.h.b16 %v566
    %v2698 = vunpack.c.l.b16 %v567
    %v2699 = vunpack.c.h.b16 %v567
    %v2700 = vunpack.c.l.b16 %v568
    %v2701 = vunpack.c.h.b16 %v568
    %v2702 = vunpack.c.l.b16 %v569
    %v2703 = vunpack.c.h.b16 %v569
    %v2704 = vunpack.c.l.b16 %v570
    %v2705 = vunpack.c.h.b16 %v570
    %v2706 = vunpack.c.l.b16 %v571
    %v2707 = vunpack.c.h.b16 %v571
    %v2708 = vunpack.c.l.b16 %v572
    %v2709 = vunpack.c.h.b16 %v572
    %v2710 = vunpack.c.l.b16 %v573
    %v2711 = vunpack.c.h.b16 %v573
    %v2712 = vunpack.c.l.b16 %v574
    %v2713 = vunpack.c.h.b16 %v574
    %v2714 = vunpack.c.l.b16 %v575
    %v2715 = vunpack.c.h.b16 %v575
    %v2716 = vunpack.c.l.b16 %v576
    %v2717 = vunpack.c.h.b16 %v576
    %v2718 = vunpack.c.l.b16 %v577
    %v2719 = vunpack.c.h.b16 %v577
    %v2720 = vunpack.c.l.b16 %v578
    %v2721 = vunpack.c.h.b16 %v578
    %v2722 = vunpack.c.l.b16 %v579
    %v2723 = vunpack.c.h.b16 %v579
    %v2724 = vunpack.c.l.b16 %v580
    %v2725 = vunpack.c.h.b16 %v580
    %v2726 = vunpack.c.l.b16 %v581
    %v2727 = vunpack.c.h.b16 %v581
    %v2728 = vunpack.c.l.b16 %v582
    %v2729 = vunpack.c.h.b16 %v582
    %v2730 = vunpack.c.l.b16 %v583
    %v2731 = vunpack.c.h.b16 %v583
    %v2732 = vunpack.c.l.b16 %v584
    %v2733 = vunpack.c.h.b16 %v584
    %v2734 = vunpack.c.l.b16 %v585
    %v2735 = vunpack.c.h.b16 %v585
    %v2736 = vunpack.c.l.b16 %v586
    %v2737 = vunpack.c.h.b16 %v586
    %v2738 = vunpack.c.l.b16 %v587
    %v2739 = vunpack.c.h.b16 %v587
    %v2740 = vunpack.c.l.b16 %v588
    %v2741 = vunpack.c.h.b16 %v588
    %v2742 = vunpack.c.l.b16 %v589
    %v2743 = vunpack.c.h.b16 %v589
    %v2744 = vunpack.c.l.b16 %v590
    %v2745 = vunpack.c.h.b16 %v590
    %v2746 = vunpack.c.l.b16 %v591
    %v2747 = vunpack.c.h.b16 %v591
    %v2748 = vunpack.c.l.b16 %v592
    %v2749 = vunpack.c.h.b16 %v592
    %v2750 = vunpack.c.l.b16 %v593
    %v2751 = vunpack.c.h.b16 %v593
    %v2752 = vunpack.c.l.b16 %v594
    %v2753 = vunpack.c.h.b16 %v594
    %v2754 = vunpack.c.l.b16 %v595
    %v2755 = vunpack.c.h.b16 %v595
    %v2756 = vunpack.c.l.b16 %v596
    %v2757 = vunpack.c.h.b16 %v596
    %v2758 = vunpack.c.l.b16 %v597
    %v2759 = vunpack.c.h.b16 %v597
    %v2760 = vunpack.c.l.b16 %v598
    %v2761 = vunpack.c.h.b16 %v598
    %v2762 = vunpack.c.l.b16 %v599
    %v2763 = vunpack.c.h.b16 %v599
    %v2764 = vunpack.c.l.b16 %v600
    %v2765 = vunpack.c.h.b16 %v600
    %v2766 = vunpack.c.l.b16 %v601
    %v2767 = vunpack.c.h.b16 %v601
    %v2768 = vunpack.c.l.b16 %v602
    %v2769 = vunpack.c.h.b16 %v602
    %v2770 = vunpack.c.l.b16 %v603
    %v2771 = vunpack.c.h.b16 %v603
    %v2772 = vunpack.c.l.b16 %v604
    %v2773 = vunpack.c.h.b16 %v604
    %v2774 = vunpack.c.l.b16 %v605
    %v2775 = vunpack.c.h.b16 %v605
    %v2776 = vunpack.c.l.b16 %v606
    %v2777 = vunpack.c.h.b16 %v606
    %v2778 = vunpack.c.l.b16 %v607
    %v2779 = vunpack.c.h.b16 %v607
    %v2780 = vunpack.c.l.b16 %v608
    %v2781 = vunpack.c.h.b16 %v608
    %v2782 = vunpack.c.l.b16 %v609
    %v2783 = vunpack.c.h.b16 %v609
    %v2784 = vunpack.c.l.b16 %v610
    %v2785 = vunpack.c.h.b16 %v610
    %v2786 = vunpack.c.l.b16 %v611
    %v2787 = vunpack.c.h.b16 %v611
    %v2788 = vunpack.c.l.b16 %v612
    %v2789 = vunpack.c.h.b16 %v612
    %v2790 = vunpack.c.l.b16 %v613
    %v2791 = vunpack.c.h.b16 %v613
    %v2792 = vunpack.c.l.b16 %v614
    %v2793 = vunpack.c.h.b16 %v614
    %v2794 = vunpack.c.l.b16 %v615
    %v2795 = vunpack.c.h.b16 %v615
    %v2796 = vunpack.c.l.b16 %v616
    %v2797 = vunpack.c.h.b16 %v616
    %v2798 = vunpack.c.l.b16 %v617
    %v2799 = vunpack.c.h.b16 %v617
    %v2800 = vunpack.c.l.b16 %v618
    %v2801 = vunpack.c.h.b16 %v618
    %v2802 = vunpack.c.l.b16 %v619
    %v2803 = vunpack.c.h.b16 %v619
    %v2804 = vunpack.c.l.b16 %v620
    %v2805 = vunpack.c.h.b16 %v620
    %v2806 = vunpack.c.l.b16 %v621
    %v2807 = vunpack.c.h.b16 %v621
    %v2808 = vunpack.c.l.b16 %v622
    %v2809 = vunpack.c.h.b16 %v622
    %v2810 = vunpack.c.l.b16 %v623
    %v2811 = vunpack.c.h.b16 %v623
    %v2812 = vunpack.c.l.b16 %v624
    %v2813 = vunpack.c.h.b16 %v624
    %v2814 = vunpack.c.l.b16 %v625
    %v2815 = vunpack.c.h.b16 %v625
    %v2816 = vunpack.c.l.b16 %v626
    %v2817 = vunpack.c.h.b16 %v626
    %v2818 = vunpack.c.l.b16 %v627
    %v2819 = vunpack.c.h.b16 %v627
    %v2820 = vunpack.c.l.b16 %v628
    %v2821 = vunpack.c.h.b16 %v628
    %v2822 = vunpack.c.l.b16 %v629
    %v2823 = vunpack.c.h.b16 %v629
    %v2824 = vunpack.c.l.b16 %v630
    %v2825 = vunpack.c.h.b16 %v630
    %v2826 = vunpack.c.l.b16 %v631
    %v2827 = vunpack.c.h.b16 %v631
    %v2828 = vunpack.c.l.b16 %v632
    %v2829 = vunpack.c.h.b16 %v632
    %v2830 = vunpack.c.l.b16 %v633
    %v2831 = vunpack.c.h.b16 %v633
    %v2832 = vunpack.c.l.b16 %v634
    %v2833 = vunpack.c.h.b16 %v634
    %v2834 = vunpack.c.l.b16 %v635
    %v2835 = vunpack.c.h.b16 %v635
    %v2836 = vunpack.c.l.b16 %v636
    %v2837 = vunpack.c.h.b16 %v636
    %v2838 = vunpack.c.l.b16 %v637
    %v2839 = vunpack.c.h.b16 %v637
    %v2840 = vunpack.c.l.b16 %v638
    %v2841 = vunpack.c.h.b16 %v638
    %v2842 = vunpack.c.l.b16 %v639
    %v2843 = vunpack.c.h.b16 %v639
    %v2844 = vunpack.c.l.b16 %v640
    %v2845 = vunpack.c.h.b16 %v640
    %v2846 = vunpack.c.l.b16 %v641
    %v2847 = vunpack.c.h.b16 %v641
    %v2848 = vunpack.c.l.b16 %v642
    %v2849 = vunpack.c.h.b16 %v642
    %v2850 = vunpack.c.l.b16 %v643
    %v2851 = vunpack.c.h.b16 %v643
    %v2852 = vunpack.c.l.b16 %v644
    %v2853 = vunpack.c.h.b16 %v644
    %v2854 = vunpack.c.l.b16 %v645
    %v2855 = vunpack.c.h.b16 %v645
    %v2856 = vunpack.c.l.b16 %v646
    %v2857 = vunpack.c.h.b16 %v646
    %v2858 = vunpack.c.l.b16 %v647
    %v2859 = vunpack.c.h.b16 %v647
    %v2860 = vunpack.c.l.b16 %v648
    %v2861 = vunpack.c.h.b16 %v648
    %v2862 = vunpack.c.l.b16 %v649
    %v2863 = vunpack.c.h.b16 %v649
    %v2864 = vunpack.c.l.b16 %v650
    %v2865 = vunpack.c.h.b16 %v650
    %v2866 = vunpack.c.l.b16 %v651
    %v2867 = vunpack.c.h.b16 %v651
    %v2868 = vunpack.c.l.b16 %v652
    %v2869 = vunpack.c.h.b16 %v652
    %v2870 = vunpack.c.l.b16 %v653
    %v2871 = vunpack.c.h.b16 %v653
    %v2872 = vunpack.c.l.b16 %v654
    %v2873 = vunpack.c.h.b16 %v654
    %v2874 = vunpack.c.l.b16 %v655
    %v2875 = vunpack.c.h.b16 %v655
    %v2876 = vunpack.c.l.b16 %v656
    %v2877 = vunpack.c.h.b16 %v656
    %v2878 = vunpack.c.l.b16 %v657
    %v2879 = vunpack.c.h.b16 %v657
    %v2880 = vunpack.c.l.b16 %v658
    %v2881 = vunpack.c.h.b16 %v658
    %v2882 = vunpack.c.l.b16 %v659
    %v2883 = vunpack.c.h.b16 %v659
    %v2884 = vunpack.c.l.b16 %v660
    %v2885 = vunpack.c.h.b16 %v660
    %v2886 = vunpack.c.l.b16 %v661
    %v2887 = vunpack.c.h.b16 %v661
    %v2888 = vunpack.c.l.b16 %v662
    %v2889 = vunpack.c.h.b16 %v662
    %v2890 = vunpack.c.l.b16 %v663
    %v2891 = vunpack.c.h.b16 %v663
    %v2892 = vunpack.c.l.b16 %v664
    %v2893 = vunpack.c.h.b16 %v664
    %v2894 = vunpack.c.l.b16 %v665
    %v2895 = vunpack.c.h.b16 %v665
    %v2896 = vunpack.c.l.b16 %v666
    %v2897 = vunpack.c.h.b16 %v666
    %v2898 = vunpack.c.l.b16 %v667
    %v2899 = vunpack.c.h.b16 %v667
    %v2900 = vunpack.c.l.b16 %v668
    %v2901 = vunpack.c.h.b16 %v668
    %v2902 = vunpack.c.l.b16 %v669
    %v2903 = vunpack.c.h.b16 %v669
    %v2904 = vunpack.c.l.b16 %v670
    %v2905 = vunpack.c.h.b16 %v670
    %v2906 = vunpack.c.l.b16 %v671
    %v2907 = vunpack.c.h.b16 %v671
    %v2908 = vunpack.c.l.b16 %v672
    %v2909 = vunpack.c.h.b16 %v672
    %v2910 = vunpack.c.l.b16 %v673
    %v2911 = vunpack.c.h.b16 %v673
    %v2912 = vunpack.c.l.b16 %v674
    %v2913 = vunpack.c.h.b16 %v674
    %v2914 = vunpack.c.l.b16 %v675
    %v2915 = vunpack.c.h.b16 %v675
    %v2916 = vunpack.c.l.b16 %v676
    %v2917 = vunpack.c.h.b16 %v676
    %v2918 = vunpack.c.l.b16 %v677
    %v2919 = vunpack.c.h.b16 %v677
    %v2920 = vunpack.c.l.b16 %v678
    %v2921 = vunpack.c.h.b16 %v678
    %v2922 = vunpack.c.l.b16 %v679
    %v2923 = vunpack.c.h.b16 %v679
    %v2924 = vunpack.c.l.b16 %v680
    %v2925 = vunpack.c.h.b16 %v680
    %v2926 = vunpack.c.l.b16 %v681
    %v2927 = vunpack.c.h.b16 %v681
    %v2928 = vunpack.c.l.b16 %v682
    %v2929 = vunpack.c.h.b16 %v682
    %v2930 = vunpack.c.l.b16 %v683
    %v2931 = vunpack.c.h.b16 %v683
    %v2932 = vunpack.c.l.b16 %v684
    %v2933 = vunpack.c.h.b16 %v684
    %v2934 = vpack.c.b16 %v1734, %v1684
    %v2935 = vpack.c.b16 %v1735, %v1685
    %v2936 = vpack.c.b16 %v1736, %v1686
    %v2937 = vpack.c.b16 %v1737, %v1687
    %v2938 = vpack.c.b16 %v1738, %v1688
    %v2939 = vpack.c.b16 %v1739, %v1689
    %v2940 = vpack.c.b16 %v1740, %v1690
    %v2941 = vpack.c.b16 %v1741, %v1691
    %v2942 = vpack.c.b16 %v1742, %v1692
    %v2943 = vpack.c.b16 %v1743, %v1693
    %v2944 = vpack.c.b16 %v1744, %v1694
    %v2945 = vpack.c.b16 %v1745, %v1695
    %v2946 = vpack.c.b16 %v1746, %v1696
    %v2947 = vpack.c.b16 %v1747, %v1697
    %v2948 = vpack.c.b16 %v1748, %v1698
    %v2949 = vpack.c.b16 %v1749, %v1699
    %v2950 = vpack.c.b16 %v1750, %v1700
    %v2951 = vpack.c.b16 %v1751, %v1701
    %v2952 = vpack.c.b16 %v1752, %v1702
    %v2953 = vpack.c.b16 %v1753, %v1703
    %v2954 = vpack.c.b16 %v1754, %v1704
    %v2955 = vpack.c.b16 %v1755, %v1705
    %v2956 = vpack.c.b16 %v1756, %v1706
    %v2957 = vpack.c.b16 %v1757, %v1707
    %v2958 = vpack.c.b16 %v1758, %v1708
    %v2959 = vpack.c.b16 %v1759, %v1709
    %v2960 = vpack.c.b16 %v1760, %v1710
    %v2961 = vpack.c.b16 %v1761, %v1711
    %v2962 = vpack.c.b16 %v1762, %v1712
    %v2963 = vpack.c.b16 %v1763, %v1713
    %v2964 = vpack.c.b16 %v1764, %v1714
    %v2965 = vpack.c.b16 %v1765, %v1715
    %v2966 = vpack.c.b16 %v1766, %v1716
    %v2967 = vpack.c.b16 %v1767, %v1717
    %v2968 = vpack.c.b16 %v1768, %v1718
    %v2969 = vpack.c.b16 %v1769, %v1719
    %v2970 = vpack.c.b16 %v1770, %v1720
    %v2971 = vpack.c.b16 %v1771, %v1721
    %v2972 = vpack.c.b16 %v1772, %v1722
    %v2973 = vpack.c.b16 %v1773, %v1723
    %v2974 = vpack.c.b16 %v1774, %v1724
    %v2975 = vpack.c.b16 %v1775, %v1725
    %v2976 = vpack.c.b16 %v1776, %v1726
    %v2977 = vpack.c.b16 %v1777, %v1727
    %v2978 = vpack.c.b16 %v1778, %v1728
    %v2979 = vpack.c.b16 %v1779, %v1729
    %v2980 = vpack.c.b16 %v1780, %v1730
    %v2981 = vpack.c.b16 %v1781, %v1731
    %v2982 = vpack.c.b16 %v1782, %v1732
    %v2983 = vpack.c.b16 %v1783, %v1733
    %v2984 = vpack.c.b16 %v1834, %v1784
    %v2985 = vpack.c.b16 %v1835, %v1785
    %v2986 = vpack.c.b16 %v1836, %v1786
    %v2987 = vpack.c.b16 %v1837, %v1787
    %v2988 = vpack.c.b16 %v1838, %v1788
    %v2989 = vpack.c.b16 %v1839, %v1789
    %v2990 = vpack.c.b16 %v1840, %v1790
    %v2991 = vpack.c.b16 %v1841, %v1791
    %v2992 = vpack.c.b16 %v1842, %v1792
    %v2993 = vpack.c.b16 %v1843, %v1793
    %v2994 = vpack.c.b16 %v1844, %v1794
    %v2995 = vpack.c.b16 %v1845, %v1795
    %v2996 = vpack.c.b16 %v1846, %v1796
    %v2997 = vpack.c.b16 %v1847, %v1797
    %v2998 = vpack.c.b16 %v1848, %v1798
    %v2999 = vpack.c.b16 %v1849, %v1799
    %v3000 = vpack.c.b16 %v1850, %v1800
    %v3001 = vpack.c.b16 %v1851, %v1801
    %v3002 = vpack.c.b16 %v1852, %v1802
    %v3003 = vpack.c.b16 %v1853, %v1803
    %v3004 = vpack.c.b16 %v1854, %v1804
    %v3005 = vpack.c.b16 %v1855, %v1805
    %v3006 = vpack.c.b16 %v1856, %v1806
    %v3007 = vpack.c.b16 %v1857, %v1807
    %v3008 = vpack.c.b16 %v1858, %v1808
    %v3009 = vpack.c.b16 %v1859, %v1809
    %v3010 = vpack.c.b16 %v1860, %v1810
    %v3011 = vpack.c.b16 %v1861, %v1811
    %v3012 = vpack.c.b16 %v1862, %v1812
    %v3013 = vpack.c.b16 %v1863, %v1813
    %v3014 = vpack.c.b16 %v1864, %v1814
    %v3015 = vpack.c.b16 %v1865, %v1815
    %v3016 = vpack.c.b16 %v1866, %v1816
    %v3017 = vpack.c.b16 %v1867, %v1817
    %v3018 = vpack.c.b16 %v1868, %v1818
    %v3019 = vpack.c.b16 %v1869, %v1819
    %v3020 = vpack.c.b16 %v1870, %v1820
    %v3021 = vpack.c.b16 %v1871, %v1821
    %v3022 = vpack.c.b16 %v1872, %v1822
    %v3023 = vpack.c.b16 %v1873, %v1823
    %v3024 = vpack.c.b16 %v1874, %v1824
    %v3025 = vpack.c.b16 %v1875, %v1825
    %v3026 = vpack.c.b16 %v1876, %v1826
    %v3027 = vpack.c.b16 %v1877, %v1827
    %v3028 = vpack.c.b16 %v1878, %v1828
    %v3029 = vpack.c.b16 %v1879, %v1829
    %v3030 = vpack.c.b16 %v1880, %v1830
    %v3031 = vpack.c.b16 %v1881, %v1831
    %v3032 = vpack.c.b16 %v1882, %v1832
    %v3033 = vpack.c.b16 %v1883, %v1833
    %v3034 = vpack.c.b16 %v1934, %v1884
    %v3035 = vpack.c.b16 %v1935, %v1885
    %v3036 = vpack.c.b16 %v1936, %v1886
    %v3037 = vpack.c.b16 %v1937, %v1887
    %v3038 = vpack.c.b16 %v1938, %v1888
    %v3039 = vpack.c.b16 %v1939, %v1889
    %v3040 = vpack.c.b16 %v1940, %v1890
    %v3041 = vpack.c.b16 %v1941, %v1891
    %v3042 = vpack.c.b16 %v1942, %v1892
    %v3043 = vpack.c.b16 %v1943, %v1893
    %v3044 = vpack.c.b16 %v1944, %v1894
    %v3045 = vpack.c.b16 %v1945, %v1895
    %v3046 = vpack.c.b16 %v1946, %v1896
    %v3047 = vpack.c.b16 %v1947, %v1897
    %v3048 = vpack.c.b16 %v1948, %v1898
    %v3049 = vpack.c.b16 %v1949, %v1899
    %v3050 = vpack.c.b16 %v1950, %v1900
    %v3051 = vpack.c.b16 %v1951, %v1901
    %v3052 = vpack.c.b16 %v1952, %v1902
    %v3053 = vpack.c.b16 %v1953, %v1903
    %v3054 = vpack.c.b16 %v1954, %v1904
    %v3055 = vpack.c.b16 %v1955, %v1905
    %v3056 = vpack.c.b16 %v1956, %v1906
    %v3057 = vpack.c.b16 %v1957, %v1907
    %v3058 = vpack.c.b16 %v1958, %v1908
    %v3059 = vpack.c.b16 %v1959, %v1909
    %v3060 = vpack.c.b16 %v1960, %v1910
    %v3061 = vpack.c.b16 %v1961, %v1911
    %v3062 = vpack.c.b16 %v1962, %v1912
    %v3063 = vpack.c.b16 %v1963, %v1913
    %v3064 = vpack.c.b16 %v1964, %v1914
    %v3065 = vpack.c.b16 %v1965, %v1915
    %v3066 = vpack.c.b16 %v1966, %v1916
    %v3067 = vpack.c.b16 %v1967, %v1917
    %v3068 = vpack.c.b16 %v1968, %v1918
    %v3069 = vpack.c.b16 %v1969, %v1919
    %v3070 = vpack.c.b16 %v1970, %v1920
    %v3071 = vpack.c.b16 %v1971, %v1921
    %v3072 = vpack.c.b16 %v1972, %v1922
    %v3073 = vpack.c.b16 %v1973, %v1923
    %v3074 = vpack.c.b16 %v1974, %v1924
    %v3075 = vpack.c.b16 %v1975, %v1925
    %v3076 = vpack.c.b16 %v1976, %v1926
    %v3077 = vpack.c.b16 %v1977, %v1927
    %v3078 = vpack.c.b16 %v1978, %v1928
    %v3079 = vpack.c.b16 %v1979, %v1929
    %v3080 = vpack.c.b16 %v1980, %v1930
    %v3081 = vpack.c.b16 %v1981, %v1931
    %v3082 = vpack.c.b16 %v1982, %v1932
    %v3083 = vpack.c.b16 %v1983, %v1933
    %v3084 = vpack.c.b16 %v2034, %v1984
    %v3085 = vpack.c.b16 %v2035, %v1985
    %v3086 = vpack.c.b16 %v2036, %v1986
    %v3087 = vpack.c.b16 %v2037, %v1987
    %v3088 = vpack.c.b16 %v2038, %v1988
    %v3089 = vpack.c.b16 %v2039, %v1989
    %v3090 = vpack.c.b16 %v2040, %v1990
    %v3091 = vpack.c.b16 %v2041, %v1991
    %v3092 = vpack.c.b16 %v2042, %v1992
    %v3093 = vpack.c.b16 %v2043, %v1993
    %v3094 = vpack.c.b16 %v2044, %v1994
    %v3095 = vpack.c.b16 %v2045, %v1995
    %v3096 = vpack.c.b16 %v2046, %v1996
    %v3097 = vpack.c.b16 %v2047, %v1997
    %v3098 = vpack.c.b16 %v2048, %v1998
    %v3099 = vpack.c.b16 %v2049, %v1999
    %v3100 = vpack.c.b16 %v2050, %v2000
    %v3101 = vpack.c.b16 %v2051, %v2001
    %v3102 = vpack.c.b16 %v2052, %v2002
    %v3103 = vpack.c.b16 %v2053, %v2003
    %v3104 = vpack.c.b16 %v2054, %v2004
    %v3105 = vpack.c.b16 %v2055, %v2005
    %v3106 = vpack.c.b16 %v2056, %v2006
    %v3107 = vpack.c.b16 %v2057, %v2007
    %v3108 = vpack.c.b16 %v2058, %v2008
    %v3109 = vpack.c.b16 %v2059, %v2009
    %v3110 = vpack.c.b16 %v2060, %v2010
    %v3111 = vpack.c.b16 %v2061, %v2011
    %v3112 = vpack.c.b16 %v2062, %v2012
    %v3113 = vpack.c.b16 %v2063, %v2013
    %v3114 = vpack.c.b16 %v2064, %v2014
    %v3115 = vpack.c.b16 %v2065, %v2015
    %v3116 = vpack.c.b16 %v2066, %v2016
    %v3117 = vpack.c.b16 %v2067, %v2017
    %v3118 = vpack.c.b16 %v2068, %v2018
    %v3119 = vpack.c.b16 %v2069, %v2019
    %v3120 = vpack.c.b16 %v2070, %v2020
    %v3121 = vpack.c.b16 %v2071, %v2021
    %v3122 = vpack.c.b16 %v2072, %v2022
    %v3123 = vpack.c.b16 %v2073, %v2023
    %v3124 = vpack.c.b16 %v2074, %v2024
    %v3125 = vpack.c.b16 %v2075, %v2025
    %v3126 = vpack.c.b16 %v2076, %v2026
    %v3127 = vpack.c.b16 %v2077, %v2027
    %v3128 = vpack.c.b16 %v2078, %v2028
    %v3129 = vpack.c.b16 %v2079, %v2029
    %v3130 = vpack.c.b16 %v2080, %v2030
    %v3131 = vpack.c.b16 %v2081, %v2031
    %v3132 = vpack.c.b16 %v2082, %v2032
    %v3133 = vpack.c.b16 %v2083, %v2033
    %v3134 = vpack.c.b16 %v2134, %v2084
    %v3135 = vpack.c.b16 %v2135, %v2085
    %v3136 = vpack.c.b16 %v2136, %v2086
    %v3137 = vpack.c.b16 %v2137, %v2087
    %v3138 = vpack.c.b16 %v2138, %v2088
    %v3139 = vpack.c.b16 %v2139, %v2089
    %v3140 = vpack.c.b16 %v2140, %v2090
    %v3141 = vpack.c.b16 %v2141, %v2091
    %v3142 = vpack.c.b16 %v2142, %v2092
    %v3143 = vpack.c.b16 %v2143, %v2093
    %v3144 = vpack.c.b16 %v2144, %v2094
    %v3145 = vpack.c.b16 %v2145, %v2095
    %v3146 = vpack.c.b16 %v2146, %v2096
    %v3147 = vpack.c.b16 %v2147, %v2097
    %v3148 = vpack.c.b16 %v2148, %v2098
    %v3149 = vpack.c.b16 %v2149, %v2099
    %v3150 = vpack.c.b16 %v2150, %v2100
    %v3151 = vpack.c.b16 %v2151, %v2101
    %v3152 = vpack.c.b16 %v2152, %v2102
    %v3153 = vpack.c.b16 %v2153, %v2103
    %v3154 = vpack.c.b16 %v2154, %v2104
    %v3155 = vpack.c.b16 %v2155, %v2105
    %v3156 = vpack.c.b16 %v2156, %v2106
    %v3157 = vpack.c.b16 %v2157, %v2107
    %v3158 = vpack.c.b16 %v2158, %v2108
    %v3159 = vpack.c.b16 %v2159, %v2109
    %v3160 = vpack.c.b16 %v2160, %v2110
    %v3161 = vpack.c.b16 %v2161, %v2111
    %v3162 = vpack.c.b16 %v2162, %v2112
    %v3163 = vpack.c.b16 %v2163, %v2113
    %v3164 = vpack.c.b16 %v2164, %v2114
    %v3165 = vpack.c.b16 %v2165, %v2115
    %v3166 = vpack.c.b16 %v2166, %v2116
    %v3167 = vpack.c.b16 %v2167, %v2117
    %v3168 = vpack.c.b16 %v2168, %v2118
    %v3169 = vpack.c.b16 %v2169, %v2119
    %v3170 = vpack.c.b16 %v2170, %v2120
    %v3171 = vpack.c.b16 %v2171, %v2121
    %v3172 = vpack.c.b16 %v2172, %v2122
    %v3173 = vpack.c.b16 %v2173, %v2123
    %v3174 = vpack.c.b16 %v2174, %v2124
    %v3175 = vpack.c.b16 %v2175, %v2125
    %v3176 = vpack.c.b16 %v2176, %v2126
    %v3177 = vpack.c.b16 %v2177, %v2127
    %v3178 = vpack.c.b16 %v2178, %v2128
    %v3179 = vpack.c.b16 %v2179, %v2129
    %v3180 = vpack.c.b16 %v2180, %v2130
    %v3181 = vpack.c.b16 %v2181, %v2131
    %v3182 = vpack.c.b16 %v2182, %v2132
    %v3183 = vpack.c.b16 %v2183, %v2133
    %v3184 = vpack.c.b16 %v2234, %v2184
    %v3185 = vpack.c.b16 %v2235, %v2185
    %v3186 = vpack.c.b16 %v2236, %v2186
    %v3187 = vpack.c.b16 %v2237, %v2187
    %v3188 = vpack.c.b16 %v2238, %v2188
    %v3189 = vpack.c.b16 %v2239, %v2189
    %v3190 = vpack.c.b16 %v2240, %v2190
    %v3191 = vpack.c.b16 %v2241, %v2191
    %v3192 = vpack.c.b16 %v2242, %v2192
    %v3193 = vpack.c.b16 %v2243, %v2193
    %v3194 = vpack.c.b16 %v2244, %v2194
    %v3195 = vpack.c.b16 %v2245, %v2195
    %v3196 = vpack.c.b16 %v2246, %v2196
    %v3197 = vpack.c.b16 %v2247, %v2197
    %v3198 = vpack.c.b16 %v2248, %v2198
    %v3199 = vpack.c.b16 %v2249, %v2199
    %v3200 = vpack.c.b16 %v2250, %v2200
    %v3201 = vpack.c.b16 %v2251, %v2201
    %v3202 = vpack.c.b16 %v2252, %v2202
    %v3203 = vpack.c.b16 %v2253, %v2203
    %v3204 = vpack.c.b16 %v2254, %v2204
    %v3205 = vpack.c.b16 %v2255, %v2205
    %v3206 = vpack.c.b16 %v2256, %v2206
    %v3207 = vpack.c.b16 %v2257, %v2207
    %v3208 = vpack.c.b16 %v2258, %v2208
    %v3209 = vpack.c.b16 %v2259, %v2209
    %v3210 = vpack.c.b16 %v2260, %v2210
    %v3211 = vpack.c.b16 %v2261, %v2211
    %v3212 = vpack.c.b16 %v2262, %v2212
    %v3213 = vpack.c.b16 %v2263, %v2213
    %v3214 = vpack.c.b16 %v2264, %v2214
    %v3215 = vpack.c.b16 %v2265, %v2215
    %v3216 = vpack.c.b16 %v2266, %v2216
    %v3217 = vpack.c.b16 %v2267, %v2217
    %v3218 = vpack.c.b16 %v2268, %v2218
    %v3219 = vpack.c.b16 %v2269, %v2219
    %v3220 = vpack.c.b16 %v2270, %v2220
    %v3221 = vpack.c.b16 %v2271, %v2221
    %v3222 = vpack.c.b16 %v2272, %v2222
    %v3223 = vpack.c.b16 %v2273, %v2223
    %v3224 = vpack.c.b16 %v2274, %v2224
    %v3225 = vpack.c.b16 %v2275, %v2225
    %v3226 = vpack.c.b16 %v2276, %v2226
    %v3227 = vpack.c.b16 %v2277, %v2227
    %v3228 = vpack.c.b16 %v2278, %v2228
    %v3229 = vpack.c.b16 %v2279, %v2229
    %v3230 = vpack.c.b16 %v2280, %v2230
    %v3231 = vpack.c.b16 %v2281, %v2231
    %v3232 = vpack.c.b16 %v2282, %v2232
    %v3233 = vpack.c.b16 %v2283, %v2233
    %v3234 = vpack.c.b16 %v2334, %v2284
    %v3235 = vpack.c.b16 %v2335, %v2285
    %v3236 = vpack.c.b16 %v2336, %v2286
    %v3237 = vpack.c.b16 %v2337, %v2287
    %v3238 = vpack.c.b16 %v2338, %v2288
    %v3239 = vpack.c.b16 %v2339, %v2289
    %v3240 = vpack.c.b16 %v2340, %v2290
    %v3241 = vpack.c.b16 %v2341, %v2291
    %v3242 = vpack.c.b16 %v2342, %v2292
    %v3243 = vpack.c.b16 %v2343, %v2293
    %v3244 = vpack.c.b16 %v2344, %v2294
    %v3245 = vpack.c.b16 %v2345, %v2295
    %v3246 = vpack.c.b16 %v2346, %v2296
    %v3247 = vpack.c.b16 %v2347, %v2297
    %v3248 = vpack.c.b16 %v2348, %v2298
    %v3249 = vpack.c.b16 %v2349, %v2299
    %v3250 = vpack.c.b16 %v2350, %v2300
    %v3251 = vpack.c.b16 %v2351, %v2301
    %v3252 = vpack.c.b16 %v2352, %v2302
    %v3253 = vpack.c.b16 %v2353, %v2303
    %v3254 = vpack.c.b16 %v2354, %v2304
    %v3255 = vpack.c.b16 %v2355, %v2305
    %v3256 = vpack.c.b16 %v2356, %v2306
    %v3257 = vpack.c.b16 %v2357, %v2307
    %v3258 = vpack.c.b16 %v2358, %v2308
    %v3259 = vpack.c.b16 %v2359, %v2309
    %v3260 = vpack.c.b16 %v2360, %v2310
    %v3261 = vpack.c.b16 %v2361, %v2311
    %v3262 = vpack.c.b16 %v2362, %v2312
    %v3263 = vpack.c.b16 %v2363, %v2313
    %v3264 = vpack.c.b16 %v2364, %v2314
    %v3265 = vpack.c.b16 %v2365, %v2315
    %v3266 = vpack.c.b16 %v2366, %v2316
    %v3267 = vpack.c.b16 %v2367, %v2317
    %v3268 = vpack.c.b16 %v2368, %v2318
    %v3269 = vpack.c.b16 %v2369, %v2319
    %v3270 = vpack.c.b16 %v2370, %v2320
    %v3271 = vpack.c.b16 %v2371, %v2321
    %v3272 = vpack.c.b16 %v2372, %v2322
    %v3273 = vpack.c.b16 %v2373, %v2323
    %v3274 = vpack.c.b16 %v2374, %v2324
    %v3275 = vpack.c.b16 %v2375, %v2325
    %v3276 = vpack.c.b16 %v2376, %v2326
    %v3277 = vpack.c.b16 %v2377, %v2327
    %v3278 = vpack.c.b16 %v2378, %v2328
    %v3279 = vpack.c.b16 %v2379, %v2329
    %v3280 = vpack.c.b16 %v2380, %v2330
    %v3281 = vpack.c.b16 %v2381, %v2331
    %v3282 = vpack.c.b16 %v2382, %v2332
    %v3283 = vpack.c.b16 %v2383, %v2333
    %v3284 = vpack.c.b16 %v2434, %v2384
    %v3285 = vpack.c.b16 %v2435, %v2385
    %v3286 = vpack.c.b16 %v2436, %v2386
    %v3287 = vpack.c.b16 %v2437, %v2387
    %v3288 = vpack.c.b16 %v2438, %v2388
    %v3289 = vpack.c.b16 %v2439, %v2389
    %v3290 = vpack.c.b16 %v2440, %v2390
    %v3291 = vpack.c.b16 %v2441, %v2391
    %v3292 = vpack.c.b16 %v2442, %v2392
    %v3293 = vpack.c.b16 %v2443, %v2393
    %v3294 = vpack.c.b16 %v2444, %v2394
    %v3295 = vpack.c.b16 %v2445, %v2395
    %v3296 = vpack.c.b16 %v2446, %v2396
    %v3297 = vpack.c.b16 %v2447, %v2397
    %v3298 = vpack.c.b16 %v2448, %v2398
    %v3299 = vpack.c.b16 %v2449, %v2399
    %v3300 = vpack.c.b16 %v2450, %v2400
    %v3301 = vpack.c.b16 %v2451, %v2401
    %v3302 = vpack.c.b16 %v2452, %v2402
    %v3303 = vpack.c.b16 %v2453, %v2403
    %v3304 = vpack.c.b16 %v2454, %v2404
    %v3305 = vpack.c.b16 %v2455, %v2405
    %v3306 = vpack.c.b16 %v2456, %v2406
    %v3307 = vpack.c.b16 %v2457, %v2407
    %v3308 = vpack.c.b16 %v2458, %v2408
    %v3309 = vpack.c.b16 %v2459, %v2409
    %v3310 = vpack.c.b16 %v2460, %v2410
    %v3311 = vpack.c.b16 %v2461, %v2411
    %v3312 = vpack.c.b16 %v2462, %v2412
    %v3313 = vpack.c.b16 %v2463, %v2413
    %v3314 = vpack.c.b16 %v2464, %v2414
    %v3315 = vpack.c.b16 %v2465, %v2415
    %v3316 = vpack.c.b16 %v2466, %v2416
    %v3317 = vpack.c.b16 %v2467, %v2417
    %v3318 = vpack.c.b16 %v2468, %v2418
    %v3319 = vpack.c.b16 %v2469, %v2419
    %v3320 = vpack.c.b16 %v2470, %v2420
    %v3321 = vpack.c.b16 %v2471, %v2421
    %v3322 = vpack.c.b16 %v2472, %v2422
    %v3323 = vpack.c.b16 %v2473, %v2423
    %v3324 = vpack.c.b16 %v2474, %v2424
    %v3325 = vpack.c.b16 %v2475, %v2425
    %v3326 = vpack.c.b16 %v2476, %v2426
    %v3327 = vpack.c.b16 %v2477, %v2427
    %v3328 = vpack.c.b16 %v2478, %v2428
    %v3329 = vpack.c.b16 %v2479, %v2429
    %v3330 = vpack.c.b16 %v2480, %v2430
    %v3331 = vpack.c.b16 %v2481, %v2431
    %v3332 = vpack.c.b16 %v2482, %v2432
    %v3333 = vpack.c.b16 %v2483, %v2433
    %v3334 = vpack.c.b16 %v2534, %v2484
    %v3335 = vpack.c.b16 %v2535, %v2485
    %v3336 = vpack.c.b16 %v2536, %v2486
    %v3337 = vpack.c.b16 %v2537, %v2487
    %v3338 = vpack.c.b16 %v2538, %v2488
    %v3339 = vpack.c.b16 %v2539, %v2489
    %v3340 = vpack.c.b16 %v2540, %v2490
    %v3341 = vpack.c.b16 %v2541, %v2491
    %v3342 = vpack.c.b16 %v2542, %v2492
    %v3343 = vpack.c.b16 %v2543, %v2493
    %v3344 = vpack.c.b16 %v2544, %v2494
    %v3345 = vpack.c.b16 %v2545, %v2495
    %v3346 = vpack.c.b16 %v2546, %v2496
    %v3347 = vpack.c.b16 %v2547, %v2497
    %v3348 = vpack.c.b16 %v2548, %v2498
    %v3349 = vpack.c.b16 %v2549, %v2499
    %v3350 = vpack.c.b16 %v2550, %v2500
    %v3351 = vpack.c.b16 %v2551, %v2501
    %v3352 = vpack.c.b16 %v2552, %v2502
    %v3353 = vpack.c.b16 %v2553, %v2503
    %v3354 = vpack.c.b16 %v2554, %v2504
    %v3355 = vpack.c.b16 %v2555, %v2505
    %v3356 = vpack.c.b16 %v2556, %v2506
    %v3357 = vpack.c.b16 %v2557, %v2507
    %v3358 = vpack.c.b16 %v2558, %v2508
    %v3359 = vpack.c.b16 %v2559, %v2509
    %v3360 = vpack.c.b16 %v2560, %v2510
    %v3361 = vpack.c.b16 %v2561, %v2511
    %v3362 = vpack.c.b16 %v2562, %v2512
    %v3363 = vpack.c.b16 %v2563, %v2513
    %v3364 = vpack.c.b16 %v2564, %v2514
    %v3365 = vpack.c.b16 %v2565, %v2515
    %v3366 = vpack.c.b16 %v2566, %v2516
    %v3367 = vpack.c.b16 %v2567, %v2517
    %v3368 = vpack.c.b16 %v2568, %v2518
    %v3369 = vpack.c.b16 %v2569, %v2519
    %v3370 = vpack.c.b16 %v2570, %v2520
    %v3371 = vpack.c.b16 %v2571, %v2521
    %v3372 = vpack.c.b16 %v2572, %v2522
    %v3373 = vpack.c.b16 %v2573, %v2523
    %v3374 = vpack.c.b16 %v2574, %v2524
    %v3375 = vpack.c.b16 %v2575, %v2525
    %v3376 = vpack.c.b16 %v2576, %v2526
    %v3377 = vpack.c.b16 %v2577, %v2527
    %v3378 = vpack.c.b16 %v2578, %v2528
    %v3379 = vpack.c.b16 %v2579, %v2529
    %v3380 = vpack.c.b16 %v2580, %v2530
    %v3381 = vpack.c.b16 %v2581, %v2531
    %v3382 = vpack.c.b16 %v2582, %v2532
    %v3383 = vpack.c.b16 %v2583, %v2533
    %v3384 = vpack.c.b16 %v2634, %v2584
    %v3385 = vpack.c.b16 %v2635, %v2585
    %v3386 = vpack.c.b16 %v2636, %v2586
    %v3387 = vpack.c.b16 %v2637, %v2587
    %v3388 = vpack.c.b16 %v2638, %v2588
    %v3389 = vpack.c.b16 %v2639, %v2589
    %v3390 = vpack.c.b16 %v2640, %v2590
    %v3391 = vpack.c.b16 %v2641, %v2591
    %v3392 = vpack.c.b16 %v2642, %v2592
    %v3393 = vpack.c.b16 %v2643, %v2593
    %v3394 = vpack.c.b16 %v2644, %v2594
    %v3395 = vpack.c.b16 %v2645, %v2595
    %v3396 = vpack.c.b16 %v2646, %v2596
    %v3397 = vpack.c.b16 %v2647, %v2597
    %v3398 = vpack.c.b16 %v2648, %v2598
    %v3399 = vpack.c.b16 %v2649, %v2599
    %v3400 = vpack.c.b16 %v2650, %v2600
    %v3401 = vpack.c.b16 %v2651, %v2601
    %v3402 = vpack.c.b16 %v2652, %v2602
    %v3403 = vpack.c.b16 %v2653, %v2603
    %v3404 = vpack.c.b16 %v2654, %v2604
    %v3405 = vpack.c.b16 %v2655, %v2605
    %v3406 = vpack.c.b16 %v2656, %v2606
    %v3407 = vpack.c.b16 %v2657, %v2607
    %v3408 = vpack.c.b16 %v2658, %v2608
    %v3409 = vpack.c.b16 %v2659, %v2609
    %v3410 = vpack.c.b16 %v2660, %v2610
    %v3411 = vpack.c.b16 %v2661, %v2611
    %v3412 = vpack.c.b16 %v2662, %v2612
    %v3413 = vpack.c.b16 %v2663, %v2613
    %v3414 = vpack.c.b16 %v2664, %v2614
    %v3415 = vpack.c.b16 %v2665, %v2615
    %v3416 = vpack.c.b16 %v2666, %v2616
    %v3417 = vpack.c.b16 %v2667, %v2617
    %v3418 = vpack.c.b16 %v2668, %v2618
    %v3419 = vpack.c.b16 %v2669, %v2619
    %v3420 = vpack.c.b16 %v2670, %v2620
    %v3421 = vpack.c.b16 %v2671, %v2621
    %v3422 = vpack.c.b16 %v2672, %v2622
    %v3423 = vpack.c.b16 %v2673, %v2623
    %v3424 = vpack.c.b16 %v2674, %v2624
    %v3425 = vpack.c.b16 %v2675, %v2625
    %v3426 = vpack.c.b16 %v2676, %v2626
    %v3427 = vpack.c.b16 %v2677, %v2627
    %v3428 = vpack.c.b16 %v2678, %v2628
    %v3429 = vpack.c.b16 %v2679, %v2629
    %v3430 = vpack.c.b16 %v2680, %v2630
    %v3431 = vpack.c.b16 %v2681, %v2631
    %v3432 = vpack.c.b16 %v2682, %v2632
    %v3433 = vpack.c.b16 %v2683, %v2633
    %v3434 = vpack.c.b16 %v2734, %v2684
    %v3435 = vpack.c.b16 %v2735, %v2685
    %v3436 = vpack.c.b16 %v2736, %v2686
    %v3437 = vpack.c.b16 %v2737, %v2687
    %v3438 = vpack.c.b16 %v2738, %v2688
    %v3439 = vpack.c.b16 %v2739, %v2689
    %v3440 = vpack.c.b16 %v2740, %v2690
    %v3441 = vpack.c.b16 %v2741, %v2691
    %v3442 = vpack.c.b16 %v2742, %v2692
    %v3443 = vpack.c.b16 %v2743, %v2693
    %v3444 = vpack.c.b16 %v2744, %v2694
    %v3445 = vpack.c.b16 %v2745, %v2695
    %v3446 = vpack.c.b16 %v2746, %v2696
    %v3447 = vpack.c.b16 %v2747, %v2697
    %v3448 = vpack.c.b16 %v2748, %v2698
    %v3449 = vpack.c.b16 %v2749, %v2699
    %v3450 = vpack.c.b16 %v2750, %v2700
    %v3451 = vpack.c.b16 %v2751, %v2701
    %v3452 = vpack.c.b16 %v2752, %v2702
    %v3453 = vpack.c.b16 %v2753, %v2703
    %v3454 = vpack.c.b16 %v2754, %v2704
    %v3455 = vpack.c.b16 %v2755, %v2705
    %v3456 = vpack.c.b16 %v2756, %v2706
    %v3457 = vpack.c.b16 %v2757, %v2707
    %v3458 = vpack.c.b16 %v2758, %v2708
    %v3459 = vpack.c.b16 %v2759, %v2709
    %v3460 = vpack.c.b16 %v2760, %v2710
    %v3461 = vpack.c.b16 %v2761, %v2711
    %v3462 = vpack.c.b16 %v2762, %v2712
    %v3463 = vpack.c.b16 %v2763, %v2713
    %v3464 = vpack.c.b16 %v2764, %v2714
    %v3465 = vpack.c.b16 %v2765, %v2715
    %v3466 = vpack.c.b16 %v2766, %v2716
    %v3467 = vpack.c.b16 %v2767, %v2717
    %v3468 = vpack.c.b16 %v2768, %v2718
    %v3469 = vpack.c.b16 %v2769, %v2719
    %v3470 = vpack.c.b16 %v2770, %v2720
    %v3471 = vpack.c.b16 %v2771, %v2721
    %v3472 = vpack.c.b16 %v2772, %v2722
    %v3473 = vpack.c.b16 %v2773, %v2723
    %v3474 = vpack.c.b16 %v2774, %v2724
    %v3475 = vpack.c.b16 %v2775, %v2725
    %v3476 = vpack.c.b16 %v2776, %v2726
    %v3477 = vpack.c.b16 %v2777, %v2727
    %v3478 = vpack.c.b16 %v2778, %v2728
    %v3479 = vpack.c.b16 %v2779, %v2729
    %v3480 = vpack.c.b16 %v2780, %v2730
    %v3481 = vpack.c.b16 %v2781, %v2731
    %v3482 = vpack.c.b16 %v2782, %v2732
    %v3483 = vpack.c.b16 %v2783, %v2733
    %v3484 = vpack.c.b16 %v2834, %v2784
    %v3485 = vpack.c.b16 %v2835, %v2785
    %v3486 = vpack.c.b16 %v2836, %v2786
    %v3487 = vpack.c.b16 %v2837, %v2787
    %v3488 = vpack.c.b16 %v2838, %v2788
    %v3489 = vpack.c.b16 %v2839, %v2789
    %v3490 = vpack.c.b16 %v2840, %v2790
    %v3491 = vpack.c.b16 %v2841, %v2791
    %v3492 = vpack.c.b16 %v2842, %v2792
    %v3493 = vpack.c.b16 %v2843, %v2793
    %v3494 = vpack.c.b16 %v2844, %v2794
    %v3495 = vpack.c.b16 %v2845, %v2795
    %v3496 = vpack.c.b16 %v2846, %v2796
    %v3497 = vpack.c.b16 %v2847, %v2797
    %v3498 = vpack.c.b16 %v2848, %v2798
    %v3499 = vpack.c.b16 %v2849, %v2799
    %v3500 = vpack.c.b16 %v2850, %v2800
    %v3501 = vpack.c.b16 %v2851, %v2801
    %v3502 = vpack.c.b16 %v2852, %v2802
    %v3503 = vpack.c.b16 %v2853, %v2803
    %v3504 = vpack.c.b16 %v2854, %v2804
    %v3505 = vpack.c.b16 %v2855, %v2805
    %v3506 = vpack.c.b16 %v2856, %v2806
    %v3507 = vpack.c.b16 %v2857, %v2807
    %v3508 = vpack.c.b16 %v2858, %v2808
    %v3509 = vpack.c.b16 %v2859, %v2809
    %v3510 = vpack.c.b16 %v2860, %v2810
    %v3511 = vpack.c.b16 %v2861, %v2811
    %v3512 = vpack.c.b16 %v2862, %v2812
    %v3513 = vpack.c.b16 %v2863, %v2813
    %v3514 = vpack.c.b16 %v2864, %v2814
    %v3515 = vpack.c.b16 %v2865, %v2815
    %v3516 = vpack.c.b16 %v2866, %v2816
    %v3517 = vpack.c.b16 %v2867, %v2817
    %v3518 = vpack.c.b16 %v2868, %v2818
    %v3519 = vpack.c.b16 %v2869, %v2819
    %v3520 = vpack.c.b16 %v2870, %v2820
    %v3521 = vpack.c.b16 %v2871, %v2821
    %v3522 = vpack.c.b16 %v2872, %v2822
    %v3523 = vpack.c.b16 %v2873, %v2823
    %v3524 = vpack.c.b16 %v2874, %v2824
    %v3525 = vpack.c.b16 %v2875, %v2825
    %v3526 = vpack.c.b16 %v2876, %v2826
    %v3527 = vpack.c.b16 %v2877, %v2827
    %v3528 = vpack.c.b16 %v2878, %v2828
    %v3529 = vpack.c.b16 %v2879, %v2829
    %v3530 = vpack.c.b16 %v2880, %v2830
    %v3531 = vpack.c.b16 %v2881, %v2831
    %v3532 = vpack.c.b16 %v2882, %v2832
    %v3533 = vpack.c.b16 %v2883, %v2833
    %v3534 = vpack.c.b16 %v2884, %v2884
    %v3535 = vpack.c.b16 %v2885, %v2885
    %v3536 = vpack.c.b16 %v2886, %v2886
    %v3537 = vpack.c.b16 %v2887, %v2887
    %v3538 = vpack.c.b16 %v2888, %v2888
    %v3539 = vpack.c.b16 %v2889, %v2889
    %v3540 = vpack.c.b16 %v2890, %v2890
    %v3541 = vpack.c.b16 %v2891, %v2891
    %v3542 = vpack.c.b16 %v2892, %v2892
    %v3543 = vpack.c.b16 %v2893, %v2893
    %v3544 = vpack.c.b16 %v2894, %v2894
    %v3545 = vpack.c.b16 %v2895, %v2895
    %v3546 = vpack.c.b16 %v2896, %v2896
    %v3547 = vpack.c.b16 %v2897, %v2897
    %v3548 = vpack.c.b16 %v2898, %v2898
    %v3549 = vpack.c.b16 %v2899, %v2899
    %v3550 = vpack.c.b16 %v2900, %v2900
    %v3551 = vpack.c.b16 %v2901, %v2901
    %v3552 = vpack.c.b16 %v2902, %v2902
    %v3553 = vpack.c.b16 %v2903, %v2903
    %v3554 = vpack.c.b16 %v2904, %v2904
    %v3555 = vpack.c.b16 %v2905, %v2905
    %v3556 = vpack.c.b16 %v2906, %v2906
    %v3557 = vpack.c.b16 %v2907, %v2907
    %v3558 = vpack.c.b16 %v2908, %v2908
    %v3559 = vpack.c.b16 %v2909, %v2909
    %v3560 = vpack.c.b16 %v2910, %v2910
    %v3561 = vpack.c.b16 %v2911, %v2911
    %v3562 = vpack.c.b16 %v2912, %v2912
    %v3563 = vpack.c.b16 %v2913, %v2913
    %v3564 = vpack.c.b16 %v2914, %v2914
    %v3565 = vpack.c.b16 %v2915, %v2915
    %v3566 = vpack.c.b16 %v2916, %v2916
    %v3567 = vpack.c.b16 %v2917, %v2917
    %v3568 = vpack.c.b16 %v2918, %v2918
    %v3569 = vpack.c.b16 %v2919, %v2919
    %v3570 = vpack.c.b16 %v2920, %v2920
    %v3571 = vpack.c.b16 %v2921, %v2921
    %v3572 = vpack.c.b16 %v2922, %v2922
    %v3573 = vpack.c.b16 %v2923, %v2923
    %v3574 = vpack.c.b16 %v2924, %v2924
    %v3575 = vpack.c.b16 %v2925, %v2925
    %v3576 = vpack.c.b16 %v2926, %v2926
    %v3577 = vpack.c.b16 %v2927, %v2927
    %v3578 = vpack.c.b16 %v2928, %v2928
    %v3579 = vpack.c.b16 %v2929, %v2929
    %v3580 = vpack.c.b16 %v2930, %v2930
    %v3581 = vpack.c.b16 %v2931, %v2931
    %v3582 = vpack.c.b16 %v2932, %v2932
    %v3583 = vpack.c.b16 %v2933, %v2933
    %v4235 = vlaneseq
    %v4236 = vshrl.u32 %v4235, 7
    %v4237 = vsub.s32 0, %v4236
    %v4238 = vrot.slane %v685, %v4237
    %v4239 = vlaneseq
    %v4240 = vshrl.u32 %v4239, 7
    %v4241 = vsub.s32 1, %v4240
    %v4242 = vrot.slane %v685, %v4241
    %4245 = vmatprep.subr.bf16.mxu0 %v2935
    %4246 = vmatpush1.bf16.xpose.msra.mxu0 %v2934
    %4247 = vmatprep.subr.bf16.mxu0 %v2985
    %4248 = vmatpush1.bf16.xpose.msra.mxu0 %v2984
    %4249 = vmatprep.subr.bf16.mxu0 %v3035
    %4250 = vmatpush1.bf16.xpose.msra.mxu0 %v3034
    %4251 = vmatprep.subr.bf16.mxu0 %v3085
    %4252 = vmatpush1.bf16.xpose.msra.mxu0 %v3084
    %4253 = vmatprep.subr.bf16.mxu0 %v3135
    %4254 = vmatpush1.bf16.xpose.msra.mxu0 %v3134
    %4255 = vmatprep.subr.bf16.mxu0 %v3185
    %4256 = vmatpush1.bf16.xpose.msra.mxu0 %v3184
    %4257 = vmatprep.subr.bf16.mxu0 %v3235
    %4258 = vmatpush1.bf16.xpose.msra.mxu0 %v3234
    %4259 = vmatprep.subr.bf16.mxu0 %v3285
    %4260 = vmatpush1.bf16.xpose.msra.mxu0 %v3284
    %4261 = vmatprep.subr.bf16.mxu0 %v3335
    %4262 = vmatpush1.bf16.xpose.msra.mxu0 %v3334
    %4263 = vmatprep.subr.bf16.mxu0 %v3385
    %4264 = vmatpush1.bf16.xpose.msra.mxu0 %v3384
    %4265 = vmatprep.subr.bf16.mxu0 %v3435
    %4266 = vmatpush1.bf16.xpose.msra.mxu0 %v3434
    %4267 = vmatprep.subr.bf16.mxu0 %v3485
    %4268 = vmatpush1.bf16.xpose.msra.mxu0 %v3484
    %4269 = vmatprep.subr.bf16.mxu0 %v3535
    %4270 = vmatpush1.bf16.xpose.msra.mxu0 %v3534
    %4271 = vmatprep.subr.bf16.mxu0 0
    %4272 = vmatpush1.bf16.xpose.msra.mxu0 0
    %4273 = vmatprep.subr.bf16.mxu0 0
    %4274 = vmatpush1.bf16.xpose.msra.mxu0 0
    %4275 = vmatprep.subr.bf16.mxu0 0
    %4276 = vmatpush1.bf16.xpose.msra.mxu0 0
    %4277 = vmatprep.mubr.bf16.mxu0 %v730
    %4278 = vmatmul.mubr.bf16.gmra.mrb[0].mxu0 %v716
    %v4279 = vpop.f32.mrb[0].mxu0
    %v4280 = vadd.f32 %v4238, %v4279
    %v4281 = vpop.f32.mrb[0].mxu0
    %v4282 = vadd.f32 %v4242, %v4281
    %v4283 = vpop.f32.mrb[0].mxu0
    %v4284 = vpop.f32.mrb[0].mxu0
    %4285 = vdwg.mxu0
    %4286 = vmatprep.subr.bf16.mxu0 %v2937
    %4287 = vmatpush1.bf16.xpose.msra.mxu0 %v2936
    %4288 = vmatprep.subr.bf16.mxu0 %v2987
    %4289 = vmatpush1.bf16.xpose.msra.mxu0 %v2986
    %4290 = vmatprep.subr.bf16.mxu0 %v3037
    %4291 = vmatpush1.bf16.xpose.msra.mxu0 %v3036
    %4292 = vmatprep.subr.bf16.mxu0 %v3087
    %4293 = vmatpush1.bf16.xpose.msra.mxu0 %v3086
    %4294 = vmatprep.subr.bf16.mxu0 %v3137
    %4295 = vmatpush1.bf16.xpose.msra.mxu0 %v3136
    %4296 = vmatprep.subr.bf16.mxu0 %v3187
    %4297 = vmatpush1.bf16.xpose.msra.mxu0 %v3186
    %4298 = vmatprep.subr.bf16.mxu0 %v3237
    %4299 = vmatpush1.bf16.xpose.msra.mxu0 %v3236
    %4300 = vmatprep.subr.bf16.mxu0 %v3287
    %4301 = vmatpush1.bf16.xpose.msra.mxu0 %v3286
    %4302 = vmatprep.subr.bf16.mxu0 %v3337
    %4303 = vmatpush1.bf16.xpose.msra.mxu0 %v3336
    %4304 = vmatprep.subr.bf16.mxu0 %v3387
    %4305 = vmatpush1.bf16.xpose.msra.mxu0 %v3386
    %4306 = vmatprep.subr.bf16.mxu0 %v3437
    %4307 = vmatpush1.bf16.xpose.msra.mxu0 %v3436
    %4308 = vmatprep.subr.bf16.mxu0 %v3487
    %4309 = vmatpush1.bf16.xpose.msra.mxu0 %v3486
    %4310 = vmatprep.subr.bf16.mxu0 %v3537
    %4311 = vmatpush1.bf16.xpose.msra.mxu0 %v3536
    %4312 = vmatprep.subr.bf16.mxu0 0
    %4313 = vmatpush1.bf16.xpose.msra.mxu0 0
    %4314 = vmatprep.subr.bf16.mxu0 0
    %4315 = vmatpush1.bf16.xpose.msra.mxu0 0
    %4316 = vmatprep.subr.bf16.mxu0 0
    %4317 = vmatpush1.bf16.xpose.msra.mxu0 0
    %4318 = vmatprep.mubr.bf16.mxu0 %v740
    %4319 = vmatmul.mubr.bf16.gmra.mrb[0].mxu0 %v738
    %v4320 = vpop.f32.mrb[0].mxu0
    %v4321 = vadd.f32 %v4280, %v4320
    %v4322 = vpop.f32.mrb[0].mxu0
    %v4323 = vadd.f32 %v4282, %v4322
    %v4324 = vpop.f32.mrb[0].mxu0
    %v4325 = vpop.f32.mrb[0].mxu0
    %4326 = vdwg.mxu0
    %4327 = vmatprep.subr.bf16.mxu0 %v2939
    %4328 = vmatpush1.bf16.xpose.msra.mxu0 %v2938
    %4329 = vmatprep.subr.bf16.mxu0 %v2989
    %4330 = vmatpush1.bf16.xpose.msra.mxu0 %v2988
    %4331 = vmatprep.subr.bf16.mxu0 %v3039
    %4332 = vmatpush1.bf16.xpose.msra.mxu0 %v3038
    %4333 = vmatprep.subr.bf16.mxu0 %v3089
    %4334 = vmatpush1.bf16.xpose.msra.mxu0 %v3088
    %4335 = vmatprep.subr.bf16.mxu0 %v3139
    %4336 = vmatpush1.bf16.xpose.msra.mxu0 %v3138
    %4337 = vmatprep.subr.bf16.mxu0 %v3189
    %4338 = vmatpush1.bf16.xpose.msra.mxu0 %v3188
    %4339 = vmatprep.subr.bf16.mxu0 %v3239
    %4340 = vmatpush1.bf16.xpose.msra.mxu0 %v3238
    %4341 = vmatprep.subr.bf16.mxu0 %v3289
    %4342 = vmatpush1.bf16.xpose.msra.mxu0 %v3288
    %4343 = vmatprep.subr.bf16.mxu0 %v3339
    %4344 = vmatpush1.bf16.xpose.msra.mxu0 %v3338
    %4345 = vmatprep.subr.bf16.mxu0 %v3389
    %4346 = vmatpush1.bf16.xpose.msra.mxu0 %v3388
    %4347 = vmatprep.subr.bf16.mxu0 %v3439
    %4348 = vmatpush1.bf16.xpose.msra.mxu0 %v3438
    %4349 = vmatprep.subr.bf16.mxu0 %v3489
    %4350 = vmatpush1.bf16.xpose.msra.mxu0 %v3488
    %4351 = vmatprep.subr.bf16.mxu0 %v3539
    %4352 = vmatpush1.bf16.xpose.msra.mxu0 %v3538
    %4353 = vmatprep.subr.bf16.mxu0 0
    %4354 = vmatpush1.bf16.xpose.msra.mxu0 0
    %4355 = vmatprep.subr.bf16.mxu0 0
    %4356 = vmatpush1.bf16.xpose.msra.mxu0 0
    %4357 = vmatprep.subr.bf16.mxu0 0
    %4358 = vmatpush1.bf16.xpose.msra.mxu0 0
    %4359 = vmatprep.mubr.bf16.mxu0 %v737
    %4360 = vmatmul.mubr.bf16.gmra.mrb[0].mxu0 %v723
    %v4361 = vpop.f32.mrb[0].mxu0
    %v4362 = vadd.f32 %v4321, %v4361
    %v4363 = vpop.f32.mrb[0].mxu0
    %v4364 = vadd.f32 %v4323, %v4363
    %v4365 = vpop.f32.mrb[0].mxu0
    %v4366 = vpop.f32.mrb[0].mxu0
    %4367 = vdwg.mxu0
    %4368 = vmatprep.subr.bf16.mxu0 %v2941
    %4369 = vmatpush1.bf16.xpose.msra.mxu0 %v2940
    %4370 = vmatprep.subr.bf16.mxu0 %v2991
    %4371 = vmatpush1.bf16.xpose.msra.mxu0 %v2990
    %4372 = vmatprep.subr.bf16.mxu0 %v3041
    %4373 = vmatpush1.bf16.xpose.msra.mxu0 %v3040
    %4374 = vmatprep.subr.bf16.mxu0 %v3091
    %4375 = vmatpush1.bf16.xpose.msra.mxu0 %v3090
    %4376 = vmatprep.subr.bf16.mxu0 %v3141
    %4377 = vmatpush1.bf16.xpose.msra.mxu0 %v3140
    %4378 = vmatprep.subr.bf16.mxu0 %v3191
    %4379 = vmatpush1.bf16.xpose.msra.mxu0 %v3190
    %4380 = vmatprep.subr.bf16.mxu0 %v3241
    %4381 = vmatpush1.bf16.xpose.msra.mxu0 %v3240
    %4382 = vmatprep.subr.bf16.mxu0 %v3291
    %4383 = vmatpush1.bf16.xpose.msra.mxu0 %v3290
    %4384 = vmatprep.subr.bf16.mxu0 %v3341
    %4385 = vmatpush1.bf16.xpose.msra.mxu0 %v3340
    %4386 = vmatprep.subr.bf16.mxu0 %v3391
    %4387 = vmatpush1.bf16.xpose.msra.mxu0 %v3390
    %4388 = vmatprep.subr.bf16.mxu0 %v3441
    %4389 = vmatpush1.bf16.xpose.msra.mxu0 %v3440
    %4390 = vmatprep.subr.bf16.mxu0 %v3491
    %4391 = vmatpush1.bf16.xpose.msra.mxu0 %v3490
    %4392 = vmatprep.subr.bf16.mxu0 %v3541
    %4393 = vmatpush1.bf16.xpose.msra.mxu0 %v3540
    %4394 = vmatprep.subr.bf16.mxu0 0
    %4395 = vmatpush1.bf16.xpose.msra.mxu0 0
    %4396 = vmatprep.subr.bf16.mxu0 0
    %4397 = vmatpush1.bf16.xpose.msra.mxu0 0
    %4398 = vmatprep.subr.bf16.mxu0 0
    %4399 = vmatpush1.bf16.xpose.msra.mxu0 0
    %4400 = vmatprep.mubr.bf16.mxu0 %v741
    %4401 = vmatmul.mubr.bf16.gmra.mrb[0].mxu0 %v739
    %v4402 = vpop.f32.mrb[0].mxu0
    %v4403 = vadd.f32 %v4362, %v4402
    %v4404 = vpop.f32.mrb[0].mxu0
    %v4405 = vadd.f32 %v4364, %v4404
    %v4406 = vpop.f32.mrb[0].mxu0
    %v4407 = vpop.f32.mrb[0].mxu0
    %4408 = vdwg.mxu0
    %4409 = vmatprep.subr.bf16.mxu0 %v2943
    %4410 = vmatpush1.bf16.xpose.msra.mxu0 %v2942
    %4411 = vmatprep.subr.bf16.mxu0 %v2993
    %4412 = vmatpush1.bf16.xpose.msra.mxu0 %v2992
    %4413 = vmatprep.subr.bf16.mxu0 %v3043
    %4414 = vmatpush1.bf16.xpose.msra.mxu0 %v3042
    %4415 = vmatprep.subr.bf16.mxu0 %v3093
    %4416 = vmatpush1.bf16.xpose.msra.mxu0 %v3092
    %4417 = vmatprep.subr.bf16.mxu0 %v3143
    %4418 = vmatpush1.bf16.xpose.msra.mxu0 %v3142
    %4419 = vmatprep.subr.bf16.mxu0 %v3193
    %4420 = vmatpush1.bf16.xpose.msra.mxu0 %v3192
    %4421 = vmatprep.subr.bf16.mxu0 %v3243
    %4422 = vmatpush1.bf16.xpose.msra.mxu0 %v3242
    %4423 = vmatprep.subr.bf16.mxu0 %v3293
    %4424 = vmatpush1.bf16.xpose.msra.mxu0 %v3292
    %4425 = vmatprep.subr.bf16.mxu0 %v3343
    %4426 = vmatpush1.bf16.xpose.msra.mxu0 %v3342
    %4427 = vmatprep.subr.bf16.mxu0 %v3393
    %4428 = vmatpush1.bf16.xpose.msra.mxu0 %v3392
    %4429 = vmatprep.subr.bf16.mxu0 %v3443
    %4430 = vmatpush1.bf16.xpose.msra.mxu0 %v3442
    %4431 = vmatprep.subr.bf16.mxu0 %v3493
    %4432 = vmatpush1.bf16.xpose.msra.mxu0 %v3492
    %4433 = vmatprep.subr.bf16.mxu0 %v3543
    %4434 = vmatpush1.bf16.xpose.msra.mxu0 %v3542
    %4435 = vmatprep.subr.bf16.mxu0 0
    %4436 = vmatpush1.bf16.xpose.msra.mxu0 0
    %4437 = vmatprep.subr.bf16.mxu0 0
    %4438 = vmatpush1.bf16.xpose.msra.mxu0 0
    %4439 = vmatprep.subr.bf16.mxu0 0
    %4440 = vmatpush1.bf16.xpose.msra.mxu0 0
    %4441 = vmatprep.mubr.bf16.mxu0 %v779
    %4442 = vmatmul.mubr.bf16.gmra.mrb[0].mxu0 %v765
    %v4443 = vpop.f32.mrb[0].mxu0
    %v4444 = vadd.f32 %v4403, %v4443
    %v4445 = vpop.f32.mrb[0].mxu0
    %v4446 = vadd.f32 %v4405, %v4445
    %v4447 = vpop.f32.mrb[0].mxu0
    %v4448 = vpop.f32.mrb[0].mxu0
    %4449 = vdwg.mxu0
    %4450 = vmatprep.subr.bf16.mxu0 %v2945
    %4451 = vmatpush1.bf16.xpose.msra.mxu0 %v2944
    %4452 = vmatprep.subr.bf16.mxu0 %v2995
    %4453 = vmatpush1.bf16.xpose.msra.mxu0 %v2994
    %4454 = vmatprep.subr.bf16.mxu0 %v3045
    %4455 = vmatpush1.bf16.xpose.msra.mxu0 %v3044
    %4456 = vmatprep.subr.bf16.mxu0 %v3095
    %4457 = vmatpush1.bf16.xpose.msra.mxu0 %v3094
    %4458 = vmatprep.subr.bf16.mxu0 %v3145
    %4459 = vmatpush1.bf16.xpose.msra.mxu0 %v3144
    %4460 = vmatprep.subr.bf16.mxu0 %v3195
    %4461 = vmatpush1.bf16.xpose.msra.mxu0 %v3194
    %4462 = vmatprep.subr.bf16.mxu0 %v3245
    %4463 = vmatpush1.bf16.xpose.msra.mxu0 %v3244
    %4464 = vmatprep.subr.bf16.mxu0 %v3295
    %4465 = vmatpush1.bf16.xpose.msra.mxu0 %v3294
    %4466 = vmatprep.subr.bf16.mxu0 %v3345
    %4467 = vmatpush1.bf16.xpose.msra.mxu0 %v3344
    %4468 = vmatprep.subr.bf16.mxu0 %v3395
    %4469 = vmatpush1.bf16.xpose.msra.mxu0 %v3394
    %4470 = vmatprep.subr.bf16.mxu0 %v3445
    %4471 = vmatpush1.bf16.xpose.msra.mxu0 %v3444
    %4472 = vmatprep.subr.bf16.mxu0 %v3495
    %4473 = vmatpush1.bf16.xpose.msra.mxu0 %v3494
    %4474 = vmatprep.subr.bf16.mxu0 %v3545
    %4475 = vmatpush1.bf16.xpose.msra.mxu0 %v3544
    %4476 = vmatprep.subr.bf16.mxu0 0
    %4477 = vmatpush1.bf16.xpose.msra.mxu0 0
    %4478 = vmatprep.subr.bf16.mxu0 0
    %4479 = vmatpush1.bf16.xpose.msra.mxu0 0
    %4480 = vmatprep.subr.bf16.mxu0 0
    %4481 = vmatpush1.bf16.xpose.msra.mxu0 0
    %4482 = vmatprep.mubr.bf16.mxu0 %v789
    %4483 = vmatmul.mubr.bf16.gmra.mrb[0].mxu0 %v787
    %v4484 = vpop.f32.mrb[0].mxu0
    %v4485 = vadd.f32 %v4444, %v4484
    %v4486 = vpop.f32.mrb[0].mxu0
    %v4487 = vadd.f32 %v4446, %v4486
    %v4488 = vpop.f32.mrb[0].mxu0
    %v4489 = vpop.f32.mrb[0].mxu0
    %4490 = vdwg.mxu0
    %4491 = vmatprep.subr.bf16.mxu0 %v2947
    %4492 = vmatpush1.bf16.xpose.msra.mxu0 %v2946
    %4493 = vmatprep.subr.bf16.mxu0 %v2997
    %4494 = vmatpush1.bf16.xpose.msra.mxu0 %v2996
    %4495 = vmatprep.subr.bf16.mxu0 %v3047
    %4496 = vmatpush1.bf16.xpose.msra.mxu0 %v3046
    %4497 = vmatprep.subr.bf16.mxu0 %v3097
    %4498 = vmatpush1.bf16.xpose.msra.mxu0 %v3096
    %4499 = vmatprep.subr.bf16.mxu0 %v3147
    %4500 = vmatpush1.bf16.xpose.msra.mxu0 %v3146
    %4501 = vmatprep.subr.bf16.mxu0 %v3197
    %4502 = vmatpush1.bf16.xpose.msra.mxu0 %v3196
    %4503 = vmatprep.subr.bf16.mxu0 %v3247
    %4504 = vmatpush1.bf16.xpose.msra.mxu0 %v3246
    %4505 = vmatprep.subr.bf16.mxu0 %v3297
    %4506 = vmatpush1.bf16.xpose.msra.mxu0 %v3296
    %4507 = vmatprep.subr.bf16.mxu0 %v3347
    %4508 = vmatpush1.bf16.xpose.msra.mxu0 %v3346
    %4509 = vmatprep.subr.bf16.mxu0 %v3397
    %4510 = vmatpush1.bf16.xpose.msra.mxu0 %v3396
    %4511 = vmatprep.subr.bf16.mxu0 %v3447
    %4512 = vmatpush1.bf16.xpose.msra.mxu0 %v3446
    %4513 = vmatprep.subr.bf16.mxu0 %v3497
    %4514 = vmatpush1.bf16.xpose.msra.mxu0 %v3496
    %4515 = vmatprep.subr.bf16.mxu0 %v3547
    %4516 = vmatpush1.bf16.xpose.msra.mxu0 %v3546
    %4517 = vmatprep.subr.bf16.mxu0 0
    %4518 = vmatpush1.bf16.xpose.msra.mxu0 0
    %4519 = vmatprep.subr.bf16.mxu0 0
    %4520 = vmatpush1.bf16.xpose.msra.mxu0 0
    %4521 = vmatprep.subr.bf16.mxu0 0
    %4522 = vmatpush1.bf16.xpose.msra.mxu0 0
    %4523 = vmatprep.mubr.bf16.mxu0 %v786
    %4524 = vmatmul.mubr.bf16.gmra.mrb[0].mxu0 %v772
    %v4525 = vpop.f32.mrb[0].mxu0
    %v4526 = vadd.f32 %v4485, %v4525
    %v4527 = vpop.f32.mrb[0].mxu0
    %v4528 = vadd.f32 %v4487, %v4527
    %v4529 = vpop.f32.mrb[0].mxu0
    %v4530 = vpop.f32.mrb[0].mxu0
    %4531 = vdwg.mxu0
    %4532 = vmatprep.subr.bf16.mxu0 %v2949
    %4533 = vmatpush1.bf16.xpose.msra.mxu0 %v2948
    %4534 = vmatprep.subr.bf16.mxu0 %v2999
    %4535 = vmatpush1.bf16.xpose.msra.mxu0 %v2998
    %4536 = vmatprep.subr.bf16.mxu0 %v3049
    %4537 = vmatpush1.bf16.xpose.msra.mxu0 %v3048
    %4538 = vmatprep.subr.bf16.mxu0 %v3099
    %4539 = vmatpush1.bf16.xpose.msra.mxu0 %v3098
    %4540 = vmatprep.subr.bf16.mxu0 %v3149
    %4541 = vmatpush1.bf16.xpose.msra.mxu0 %v3148
    %4542 = vmatprep.subr.bf16.mxu0 %v3199
    %4543 = vmatpush1.bf16.xpose.msra.mxu0 %v3198
    %4544 = vmatprep.subr.bf16.mxu0 %v3249
    %4545 = vmatpush1.bf16.xpose.msra.mxu0 %v3248
    %4546 = vmatprep.subr.bf16.mxu0 %v3299
    %4547 = vmatpush1.bf16.xpose.msra.mxu0 %v3298
    %4548 = vmatprep.subr.bf16.mxu0 %v3349
    %4549 = vmatpush1.bf16.xpose.msra.mxu0 %v3348
    %4550 = vmatprep.subr.bf16.mxu0 %v3399
    %4551 = vmatpush1.bf16.xpose.msra.mxu0 %v3398
    %4552 = vmatprep.subr.bf16.mxu0 %v3449
    %4553 = vmatpush1.bf16.xpose.msra.mxu0 %v3448
    %4554 = vmatprep.subr.bf16.mxu0 %v3499
    %4555 = vmatpush1.bf16.xpose.msra.mxu0 %v3498
    %4556 = vmatprep.subr.bf16.mxu0 %v3549
    %4557 = vmatpush1.bf16.xpose.msra.mxu0 %v3548
    %4558 = vmatprep.subr.bf16.mxu0 0
    %4559 = vmatpush1.bf16.xpose.msra.mxu0 0
    %4560 = vmatprep.subr.bf16.mxu0 0
    %4561 = vmatpush1.bf16.xpose.msra.mxu0 0
    %4562 = vmatprep.subr.bf16.mxu0 0
    %4563 = vmatpush1.bf16.xpose.msra.mxu0 0
    %4564 = vmatprep.mubr.bf16.mxu0 %v790
    %4565 = vmatmul.mubr.bf16.gmra.mrb[0].mxu0 %v788
    %v4566 = vpop.f32.mrb[0].mxu0
    %v4567 = vadd.f32 %v4526, %v4566
    %v4568 = vpop.f32.mrb[0].mxu0
    %v4569 = vadd.f32 %v4528, %v4568
    %v4570 = vpop.f32.mrb[0].mxu0
    %v4571 = vpop.f32.mrb[0].mxu0
    %4572 = vdwg.mxu0
    %4573 = vmatprep.subr.bf16.mxu0 %v2951
    %4574 = vmatpush1.bf16.xpose.msra.mxu0 %v2950
    %4575 = vmatprep.subr.bf16.mxu0 %v3001
    %4576 = vmatpush1.bf16.xpose.msra.mxu0 %v3000
    %4577 = vmatprep.subr.bf16.mxu0 %v3051
    %4578 = vmatpush1.bf16.xpose.msra.mxu0 %v3050
    %4579 = vmatprep.subr.bf16.mxu0 %v3101
    %4580 = vmatpush1.bf16.xpose.msra.mxu0 %v3100
    %4581 = vmatprep.subr.bf16.mxu0 %v3151
    %4582 = vmatpush1.bf16.xpose.msra.mxu0 %v3150
    %4583 = vmatprep.subr.bf16.mxu0 %v3201
    %4584 = vmatpush1.bf16.xpose.msra.mxu0 %v3200
    %4585 = vmatprep.subr.bf16.mxu0 %v3251
    %4586 = vmatpush1.bf16.xpose.msra.mxu0 %v3250
    %4587 = vmatprep.subr.bf16.mxu0 %v3301
    %4588 = vmatpush1.bf16.xpose.msra.mxu0 %v3300
    %4589 = vmatprep.subr.bf16.mxu0 %v3351
    %4590 = vmatpush1.bf16.xpose.msra.mxu0 %v3350
    %4591 = vmatprep.subr.bf16.mxu0 %v3401
    %4592 = vmatpush1.bf16.xpose.msra.mxu0 %v3400
    %4593 = vmatprep.subr.bf16.mxu0 %v3451
    %4594 = vmatpush1.bf16.xpose.msra.mxu0 %v3450
    %4595 = vmatprep.subr.bf16.mxu0 %v3501
    %4596 = vmatpush1.bf16.xpose.msra.mxu0 %v3500
    %4597 = vmatprep.subr.bf16.mxu0 %v3551
    %4598 = vmatpush1.bf16.xpose.msra.mxu0 %v3550
    %4599 = vmatprep.subr.bf16.mxu0 0
    %4600 = vmatpush1.bf16.xpose.msra.mxu0 0
    %4601 = vmatprep.subr.bf16.mxu0 0
    %4602 = vmatpush1.bf16.xpose.msra.mxu0 0
    %4603 = vmatprep.subr.bf16.mxu0 0
    %4604 = vmatpush1.bf16.xpose.msra.mxu0 0
    %4605 = vmatprep.mubr.bf16.mxu0 %v828
    %4606 = vmatmul.mubr.bf16.gmra.mrb[0].mxu0 %v814
    %v4607 = vpop.f32.mrb[0].mxu0
    %v4608 = vadd.f32 %v4567, %v4607
    %v4609 = vpop.f32.mrb[0].mxu0
    %v4610 = vadd.f32 %v4569, %v4609
    %v4611 = vpop.f32.mrb[0].mxu0
    %v4612 = vpop.f32.mrb[0].mxu0
    %4613 = vdwg.mxu0
    %4614 = vmatprep.subr.bf16.mxu0 %v2953
    %4615 = vmatpush1.bf16.xpose.msra.mxu0 %v2952
    %4616 = vmatprep.subr.bf16.mxu0 %v3003
    %4617 = vmatpush1.bf16.xpose.msra.mxu0 %v3002
    %4618 = vmatprep.subr.bf16.mxu0 %v3053
    %4619 = vmatpush1.bf16.xpose.msra.mxu0 %v3052
    %4620 = vmatprep.subr.bf16.mxu0 %v3103
    %4621 = vmatpush1.bf16.xpose.msra.mxu0 %v3102
    %4622 = vmatprep.subr.bf16.mxu0 %v3153
    %4623 = vmatpush1.bf16.xpose.msra.mxu0 %v3152
    %4624 = vmatprep.subr.bf16.mxu0 %v3203
    %4625 = vmatpush1.bf16.xpose.msra.mxu0 %v3202
    %4626 = vmatprep.subr.bf16.mxu0 %v3253
    %4627 = vmatpush1.bf16.xpose.msra.mxu0 %v3252
    %4628 = vmatprep.subr.bf16.mxu0 %v3303
    %4629 = vmatpush1.bf16.xpose.msra.mxu0 %v3302
    %4630 = vmatprep.subr.bf16.mxu0 %v3353
    %4631 = vmatpush1.bf16.xpose.msra.mxu0 %v3352
    %4632 = vmatprep.subr.bf16.mxu0 %v3403
    %4633 = vmatpush1.bf16.xpose.msra.mxu0 %v3402
    %4634 = vmatprep.subr.bf16.mxu0 %v3453
    %4635 = vmatpush1.bf16.xpose.msra.mxu0 %v3452
    %4636 = vmatprep.subr.bf16.mxu0 %v3503
    %4637 = vmatpush1.bf16.xpose.msra.mxu0 %v3502
    %4638 = vmatprep.subr.bf16.mxu0 %v3553
    %4639 = vmatpush1.bf16.xpose.msra.mxu0 %v3552
    %4640 = vmatprep.subr.bf16.mxu0 0
    %4641 = vmatpush1.bf16.xpose.msra.mxu0 0
    %4642 = vmatprep.subr.bf16.mxu0 0
    %4643 = vmatpush1.bf16.xpose.msra.mxu0 0
    %4644 = vmatprep.subr.bf16.mxu0 0
    %4645 = vmatpush1.bf16.xpose.msra.mxu0 0
    %4646 = vmatprep.mubr.bf16.mxu0 %v838
    %4647 = vmatmul.mubr.bf16.gmra.mrb[0].mxu0 %v836
    %v4648 = vpop.f32.mrb[0].mxu0
    %v4649 = vadd.f32 %v4608, %v4648
    %v4650 = vpop.f32.mrb[0].mxu0
    %v4651 = vadd.f32 %v4610, %v4650
    %v4652 = vpop.f32.mrb[0].mxu0
    %v4653 = vpop.f32.mrb[0].mxu0
    %4654 = vdwg.mxu0
    %4655 = vmatprep.subr.bf16.mxu0 %v2955
    %4656 = vmatpush1.bf16.xpose.msra.mxu0 %v2954
    %4657 = vmatprep.subr.bf16.mxu0 %v3005
    %4658 = vmatpush1.bf16.xpose.msra.mxu0 %v3004
    %4659 = vmatprep.subr.bf16.mxu0 %v3055
    %4660 = vmatpush1.bf16.xpose.msra.mxu0 %v3054
    %4661 = vmatprep.subr.bf16.mxu0 %v3105
    %4662 = vmatpush1.bf16.xpose.msra.mxu0 %v3104
    %4663 = vmatprep.subr.bf16.mxu0 %v3155
    %4664 = vmatpush1.bf16.xpose.msra.mxu0 %v3154
    %4665 = vmatprep.subr.bf16.mxu0 %v3205
    %4666 = vmatpush1.bf16.xpose.msra.mxu0 %v3204
    %4667 = vmatprep.subr.bf16.mxu0 %v3255
    %4668 = vmatpush1.bf16.xpose.msra.mxu0 %v3254
    %4669 = vmatprep.subr.bf16.mxu0 %v3305
    %4670 = vmatpush1.bf16.xpose.msra.mxu0 %v3304
    %4671 = vmatprep.subr.bf16.mxu0 %v3355
    %4672 = vmatpush1.bf16.xpose.msra.mxu0 %v3354
    %4673 = vmatprep.subr.bf16.mxu0 %v3405
    %4674 = vmatpush1.bf16.xpose.msra.mxu0 %v3404
    %4675 = vmatprep.subr.bf16.mxu0 %v3455
    %4676 = vmatpush1.bf16.xpose.msra.mxu0 %v3454
    %4677 = vmatprep.subr.bf16.mxu0 %v3505
    %4678 = vmatpush1.bf16.xpose.msra.mxu0 %v3504
    %4679 = vmatprep.subr.bf16.mxu0 %v3555
    %4680 = vmatpush1.bf16.xpose.msra.mxu0 %v3554
    %4681 = vmatprep.subr.bf16.mxu0 0
    %4682 = vmatpush1.bf16.xpose.msra.mxu0 0
    %4683 = vmatprep.subr.bf16.mxu0 0
    %4684 = vmatpush1.bf16.xpose.msra.mxu0 0
    %4685 = vmatprep.subr.bf16.mxu0 0
    %4686 = vmatpush1.bf16.xpose.msra.mxu0 0
    %4687 = vmatprep.mubr.bf16.mxu0 %v835
    %4688 = vmatmul.mubr.bf16.gmra.mrb[0].mxu0 %v821
    %v4689 = vpop.f32.mrb[0].mxu0
    %v4690 = vadd.f32 %v4649, %v4689
    %v4691 = vpop.f32.mrb[0].mxu0
    %v4692 = vadd.f32 %v4651, %v4691
    %v4693 = vpop.f32.mrb[0].mxu0
    %v4694 = vpop.f32.mrb[0].mxu0
    %4695 = vdwg.mxu0
    %4696 = vmatprep.subr.bf16.mxu0 %v2957
    %4697 = vmatpush1.bf16.xpose.msra.mxu0 %v2956
    %4698 = vmatprep.subr.bf16.mxu0 %v3007
    %4699 = vmatpush1.bf16.xpose.msra.mxu0 %v3006
    %4700 = vmatprep.subr.bf16.mxu0 %v3057
    %4701 = vmatpush1.bf16.xpose.msra.mxu0 %v3056
    %4702 = vmatprep.subr.bf16.mxu0 %v3107
    %4703 = vmatpush1.bf16.xpose.msra.mxu0 %v3106
    %4704 = vmatprep.subr.bf16.mxu0 %v3157
    %4705 = vmatpush1.bf16.xpose.msra.mxu0 %v3156
    %4706 = vmatprep.subr.bf16.mxu0 %v3207
    %4707 = vmatpush1.bf16.xpose.msra.mxu0 %v3206
    %4708 = vmatprep.subr.bf16.mxu0 %v3257
    %4709 = vmatpush1.bf16.xpose.msra.mxu0 %v3256
    %4710 = vmatprep.subr.bf16.mxu0 %v3307
    %4711 = vmatpush1.bf16.xpose.msra.mxu0 %v3306
    %4712 = vmatprep.subr.bf16.mxu0 %v3357
    %4713 = vmatpush1.bf16.xpose.msra.mxu0 %v3356
    %4714 = vmatprep.subr.bf16.mxu0 %v3407
    %4715 = vmatpush1.bf16.xpose.msra.mxu0 %v3406
    %4716 = vmatprep.subr.bf16.mxu0 %v3457
    %4717 = vmatpush1.bf16.xpose.msra.mxu0 %v3456
    %4718 = vmatprep.subr.bf16.mxu0 %v3507
    %4719 = vmatpush1.bf16.xpose.msra.mxu0 %v3506
    %4720 = vmatprep.subr.bf16.mxu0 %v3557
    %4721 = vmatpush1.bf16.xpose.msra.mxu0 %v3556
    %4722 = vmatprep.subr.bf16.mxu0 0
    %4723 = vmatpush1.bf16.xpose.msra.mxu0 0
    %4724 = vmatprep.subr.bf16.mxu0 0
    %4725 = vmatpush1.bf16.xpose.msra.mxu0 0
    %4726 = vmatprep.subr.bf16.mxu0 0
    %4727 = vmatpush1.bf16.xpose.msra.mxu0 0
    %4728 = vmatprep.mubr.bf16.mxu0 %v839
    %4729 = vmatmul.mubr.bf16.gmra.mrb[0].mxu0 %v837
    %v4730 = vpop.f32.mrb[0].mxu0
    %v4731 = vadd.f32 %v4690, %v4730
    %v4732 = vpop.f32.mrb[0].mxu0
    %v4733 = vadd.f32 %v4692, %v4732
    %v4734 = vpop.f32.mrb[0].mxu0
    %v4735 = vpop.f32.mrb[0].mxu0
    %4736 = vdwg.mxu0
    %4737 = vmatprep.subr.bf16.mxu0 %v2959
    %4738 = vmatpush1.bf16.xpose.msra.mxu0 %v2958
    %4739 = vmatprep.subr.bf16.mxu0 %v3009
    %4740 = vmatpush1.bf16.xpose.msra.mxu0 %v3008
    %4741 = vmatprep.subr.bf16.mxu0 %v3059
    %4742 = vmatpush1.bf16.xpose.msra.mxu0 %v3058
    %4743 = vmatprep.subr.bf16.mxu0 %v3109
    %4744 = vmatpush1.bf16.xpose.msra.mxu0 %v3108
    %4745 = vmatprep.subr.bf16.mxu0 %v3159
    %4746 = vmatpush1.bf16.xpose.msra.mxu0 %v3158
    %4747 = vmatprep.subr.bf16.mxu0 %v3209
    %4748 = vmatpush1.bf16.xpose.msra.mxu0 %v3208
    %4749 = vmatprep.subr.bf16.mxu0 %v3259
    %4750 = vmatpush1.bf16.xpose.msra.mxu0 %v3258
    %4751 = vmatprep.subr.bf16.mxu0 %v3309
    %4752 = vmatpush1.bf16.xpose.msra.mxu0 %v3308
    %4753 = vmatprep.subr.bf16.mxu0 %v3359
    %4754 = vmatpush1.bf16.xpose.msra.mxu0 %v3358
    %4755 = vmatprep.subr.bf16.mxu0 %v3409
    %4756 = vmatpush1.bf16.xpose.msra.mxu0 %v3408
    %4757 = vmatprep.subr.bf16.mxu0 %v3459
    %4758 = vmatpush1.bf16.xpose.msra.mxu0 %v3458
    %4759 = vmatprep.subr.bf16.mxu0 %v3509
    %4760 = vmatpush1.bf16.xpose.msra.mxu0 %v3508
    %4761 = vmatprep.subr.bf16.mxu0 %v3559
    %4762 = vmatpush1.bf16.xpose.msra.mxu0 %v3558
    %4763 = vmatprep.subr.bf16.mxu0 0
    %4764 = vmatpush1.bf16.xpose.msra.mxu0 0
    %4765 = vmatprep.subr.bf16.mxu0 0
    %4766 = vmatpush1.bf16.xpose.msra.mxu0 0
    %4767 = vmatprep.subr.bf16.mxu0 0
    %4768 = vmatpush1.bf16.xpose.msra.mxu0 0
    %4769 = vmatprep.mubr.bf16.mxu0 %v877
    %4770 = vmatmul.mubr.bf16.gmra.mrb[0].mxu0 %v863
    %v4771 = vpop.f32.mrb[0].mxu0
    %v4772 = vadd.f32 %v4731, %v4771
    %v4773 = vpop.f32.mrb[0].mxu0
    %v4774 = vadd.f32 %v4733, %v4773
    %v4775 = vpop.f32.mrb[0].mxu0
    %v4776 = vpop.f32.mrb[0].mxu0
    %4777 = vdwg.mxu0
    %4778 = vmatprep.subr.bf16.mxu0 %v2961
    %4779 = vmatpush1.bf16.xpose.msra.mxu0 %v2960
    %4780 = vmatprep.subr.bf16.mxu0 %v3011
    %4781 = vmatpush1.bf16.xpose.msra.mxu0 %v3010
    %4782 = vmatprep.subr.bf16.mxu0 %v3061
    %4783 = vmatpush1.bf16.xpose.msra.mxu0 %v3060
    %4784 = vmatprep.subr.bf16.mxu0 %v3111
    %4785 = vmatpush1.bf16.xpose.msra.mxu0 %v3110
    %4786 = vmatprep.subr.bf16.mxu0 %v3161
    %4787 = vmatpush1.bf16.xpose.msra.mxu0 %v3160
    %4788 = vmatprep.subr.bf16.mxu0 %v3211
    %4789 = vmatpush1.bf16.xpose.msra.mxu0 %v3210
    %4790 = vmatprep.subr.bf16.mxu0 %v3261
    %4791 = vmatpush1.bf16.xpose.msra.mxu0 %v3260
    %4792 = vmatprep.subr.bf16.mxu0 %v3311
    %4793 = vmatpush1.bf16.xpose.msra.mxu0 %v3310
    %4794 = vmatprep.subr.bf16.mxu0 %v3361
    %4795 = vmatpush1.bf16.xpose.msra.mxu0 %v3360
    %4796 = vmatprep.subr.bf16.mxu0 %v3411
    %4797 = vmatpush1.bf16.xpose.msra.mxu0 %v3410
    %4798 = vmatprep.subr.bf16.mxu0 %v3461
    %4799 = vmatpush1.bf16.xpose.msra.mxu0 %v3460
    %4800 = vmatprep.subr.bf16.mxu0 %v3511
    %4801 = vmatpush1.bf16.xpose.msra.mxu0 %v3510
    %4802 = vmatprep.subr.bf16.mxu0 %v3561
    %4803 = vmatpush1.bf16.xpose.msra.mxu0 %v3560
    %4804 = vmatprep.subr.bf16.mxu0 0
    %4805 = vmatpush1.bf16.xpose.msra.mxu0 0
    %4806 = vmatprep.subr.bf16.mxu0 0
    %4807 = vmatpush1.bf16.xpose.msra.mxu0 0
    %4808 = vmatprep.subr.bf16.mxu0 0
    %4809 = vmatpush1.bf16.xpose.msra.mxu0 0
    %4810 = vmatprep.mubr.bf16.mxu0 %v887
    %4811 = vmatmul.mubr.bf16.gmra.mrb[0].mxu0 %v885
    %v4812 = vpop.f32.mrb[0].mxu0
    %v4813 = vadd.f32 %v4772, %v4812
    %v4814 = vpop.f32.mrb[0].mxu0
    %v4815 = vadd.f32 %v4774, %v4814
    %v4816 = vpop.f32.mrb[0].mxu0
    %v4817 = vpop.f32.mrb[0].mxu0
    %4818 = vdwg.mxu0
    %4819 = vmatprep.subr.bf16.mxu0 %v2963
    %4820 = vmatpush1.bf16.xpose.msra.mxu0 %v2962
    %4821 = vmatprep.subr.bf16.mxu0 %v3013
    %4822 = vmatpush1.bf16.xpose.msra.mxu0 %v3012
    %4823 = vmatprep.subr.bf16.mxu0 %v3063
    %4824 = vmatpush1.bf16.xpose.msra.mxu0 %v3062
    %4825 = vmatprep.subr.bf16.mxu0 %v3113
    %4826 = vmatpush1.bf16.xpose.msra.mxu0 %v3112
    %4827 = vmatprep.subr.bf16.mxu0 %v3163
    %4828 = vmatpush1.bf16.xpose.msra.mxu0 %v3162
    %4829 = vmatprep.subr.bf16.mxu0 %v3213
    %4830 = vmatpush1.bf16.xpose.msra.mxu0 %v3212
    %4831 = vmatprep.subr.bf16.mxu0 %v3263
    %4832 = vmatpush1.bf16.xpose.msra.mxu0 %v3262
    %4833 = vmatprep.subr.bf16.mxu0 %v3313
    %4834 = vmatpush1.bf16.xpose.msra.mxu0 %v3312
    %4835 = vmatprep.subr.bf16.mxu0 %v3363
    %4836 = vmatpush1.bf16.xpose.msra.mxu0 %v3362
    %4837 = vmatprep.subr.bf16.mxu0 %v3413
    %4838 = vmatpush1.bf16.xpose.msra.mxu0 %v3412
    %4839 = vmatprep.subr.bf16.mxu0 %v3463
    %4840 = vmatpush1.bf16.xpose.msra.mxu0 %v3462
    %4841 = vmatprep.subr.bf16.mxu0 %v3513
    %4842 = vmatpush1.bf16.xpose.msra.mxu0 %v3512
    %4843 = vmatprep.subr.bf16.mxu0 %v3563
    %4844 = vmatpush1.bf16.xpose.msra.mxu0 %v3562
    %4845 = vmatprep.subr.bf16.mxu0 0
    %4846 = vmatpush1.bf16.xpose.msra.mxu0 0
    %4847 = vmatprep.subr.bf16.mxu0 0
    %4848 = vmatpush1.bf16.xpose.msra.mxu0 0
    %4849 = vmatprep.subr.bf16.mxu0 0
    %4850 = vmatpush1.bf16.xpose.msra.mxu0 0
    %4851 = vmatprep.mubr.bf16.mxu0 %v884
    %4852 = vmatmul.mubr.bf16.gmra.mrb[0].mxu0 %v870
    %v4853 = vpop.f32.mrb[0].mxu0
    %v4854 = vadd.f32 %v4813, %v4853
    %v4855 = vpop.f32.mrb[0].mxu0
    %v4856 = vadd.f32 %v4815, %v4855
    %v4857 = vpop.f32.mrb[0].mxu0
    %v4858 = vpop.f32.mrb[0].mxu0
    %4859 = vdwg.mxu0
    %4860 = vmatprep.subr.bf16.mxu0 %v2965
    %4861 = vmatpush1.bf16.xpose.msra.mxu0 %v2964
    %4862 = vmatprep.subr.bf16.mxu0 %v3015
    %4863 = vmatpush1.bf16.xpose.msra.mxu0 %v3014
    %4864 = vmatprep.subr.bf16.mxu0 %v3065
    %4865 = vmatpush1.bf16.xpose.msra.mxu0 %v3064
    %4866 = vmatprep.subr.bf16.mxu0 %v3115
    %4867 = vmatpush1.bf16.xpose.msra.mxu0 %v3114
    %4868 = vmatprep.subr.bf16.mxu0 %v3165
    %4869 = vmatpush1.bf16.xpose.msra.mxu0 %v3164
    %4870 = vmatprep.subr.bf16.mxu0 %v3215
    %4871 = vmatpush1.bf16.xpose.msra.mxu0 %v3214
    %4872 = vmatprep.subr.bf16.mxu0 %v3265
    %4873 = vmatpush1.bf16.xpose.msra.mxu0 %v3264
    %4874 = vmatprep.subr.bf16.mxu0 %v3315
    %4875 = vmatpush1.bf16.xpose.msra.mxu0 %v3314
    %4876 = vmatprep.subr.bf16.mxu0 %v3365
    %4877 = vmatpush1.bf16.xpose.msra.mxu0 %v3364
    %4878 = vmatprep.subr.bf16.mxu0 %v3415
    %4879 = vmatpush1.bf16.xpose.msra.mxu0 %v3414
    %4880 = vmatprep.subr.bf16.mxu0 %v3465
    %4881 = vmatpush1.bf16.xpose.msra.mxu0 %v3464
    %4882 = vmatprep.subr.bf16.mxu0 %v3515
    %4883 = vmatpush1.bf16.xpose.msra.mxu0 %v3514
    %4884 = vmatprep.subr.bf16.mxu0 %v3565
    %4885 = vmatpush1.bf16.xpose.msra.mxu0 %v3564
    %4886 = vmatprep.subr.bf16.mxu0 0
    %4887 = vmatpush1.bf16.xpose.msra.mxu0 0
    %4888 = vmatprep.subr.bf16.mxu0 0
    %4889 = vmatpush1.bf16.xpose.msra.mxu0 0
    %4890 = vmatprep.subr.bf16.mxu0 0
    %4891 = vmatpush1.bf16.xpose.msra.mxu0 0
    %4892 = vmatprep.mubr.bf16.mxu0 %v888
    %4893 = vmatmul.mubr.bf16.gmra.mrb[0].mxu0 %v886
    %v4894 = vpop.f32.mrb[0].mxu0
    %v4895 = vadd.f32 %v4854, %v4894
    %v4896 = vpop.f32.mrb[0].mxu0
    %v4897 = vadd.f32 %v4856, %v4896
    %v4898 = vpop.f32.mrb[0].mxu0
    %v4899 = vpop.f32.mrb[0].mxu0
    %4900 = vdwg.mxu0
    %4901 = vmatprep.subr.bf16.mxu0 %v2967
    %4902 = vmatpush1.bf16.xpose.msra.mxu0 %v2966
    %4903 = vmatprep.subr.bf16.mxu0 %v3017
    %4904 = vmatpush1.bf16.xpose.msra.mxu0 %v3016
    %4905 = vmatprep.subr.bf16.mxu0 %v3067
    %4906 = vmatpush1.bf16.xpose.msra.mxu0 %v3066
    %4907 = vmatprep.subr.bf16.mxu0 %v3117
    %4908 = vmatpush1.bf16.xpose.msra.mxu0 %v3116
    %4909 = vmatprep.subr.bf16.mxu0 %v3167
    %4910 = vmatpush1.bf16.xpose.msra.mxu0 %v3166
    %4911 = vmatprep.subr.bf16.mxu0 %v3217
    %4912 = vmatpush1.bf16.xpose.msra.mxu0 %v3216
    %4913 = vmatprep.subr.bf16.mxu0 %v3267
    %4914 = vmatpush1.bf16.xpose.msra.mxu0 %v3266
    %4915 = vmatprep.subr.bf16.mxu0 %v3317
    %4916 = vmatpush1.bf16.xpose.msra.mxu0 %v3316
    %4917 = vmatprep.subr.bf16.mxu0 %v3367
    %4918 = vmatpush1.bf16.xpose.msra.mxu0 %v3366
    %4919 = vmatprep.subr.bf16.mxu0 %v3417
    %4920 = vmatpush1.bf16.xpose.msra.mxu0 %v3416
    %4921 = vmatprep.subr.bf16.mxu0 %v3467
    %4922 = vmatpush1.bf16.xpose.msra.mxu0 %v3466
    %4923 = vmatprep.subr.bf16.mxu0 %v3517
    %4924 = vmatpush1.bf16.xpose.msra.mxu0 %v3516
    %4925 = vmatprep.subr.bf16.mxu0 %v3567
    %4926 = vmatpush1.bf16.xpose.msra.mxu0 %v3566
    %4927 = vmatprep.subr.bf16.mxu0 0
    %4928 = vmatpush1.bf16.xpose.msra.mxu0 0
    %4929 = vmatprep.subr.bf16.mxu0 0
    %4930 = vmatpush1.bf16.xpose.msra.mxu0 0
    %4931 = vmatprep.subr.bf16.mxu0 0
    %4932 = vmatpush1.bf16.xpose.msra.mxu0 0
    %4933 = vmatprep.mubr.bf16.mxu0 %v926
    %4934 = vmatmul.mubr.bf16.gmra.mrb[0].mxu0 %v912
    %v4935 = vpop.f32.mrb[0].mxu0
    %v4936 = vadd.f32 %v4895, %v4935
    %v4937 = vpop.f32.mrb[0].mxu0
    %v4938 = vadd.f32 %v4897, %v4937
    %v4939 = vpop.f32.mrb[0].mxu0
    %v4940 = vpop.f32.mrb[0].mxu0
    %4941 = vdwg.mxu0
    %4942 = vmatprep.subr.bf16.mxu0 %v2969
    %4943 = vmatpush1.bf16.xpose.msra.mxu0 %v2968
    %4944 = vmatprep.subr.bf16.mxu0 %v3019
    %4945 = vmatpush1.bf16.xpose.msra.mxu0 %v3018
    %4946 = vmatprep.subr.bf16.mxu0 %v3069
    %4947 = vmatpush1.bf16.xpose.msra.mxu0 %v3068
    %4948 = vmatprep.subr.bf16.mxu0 %v3119
    %4949 = vmatpush1.bf16.xpose.msra.mxu0 %v3118
    %4950 = vmatprep.subr.bf16.mxu0 %v3169
    %4951 = vmatpush1.bf16.xpose.msra.mxu0 %v3168
    %4952 = vmatprep.subr.bf16.mxu0 %v3219
    %4953 = vmatpush1.bf16.xpose.msra.mxu0 %v3218
    %4954 = vmatprep.subr.bf16.mxu0 %v3269
    %4955 = vmatpush1.bf16.xpose.msra.mxu0 %v3268
    %4956 = vmatprep.subr.bf16.mxu0 %v3319
    %4957 = vmatpush1.bf16.xpose.msra.mxu0 %v3318
    %4958 = vmatprep.subr.bf16.mxu0 %v3369
    %4959 = vmatpush1.bf16.xpose.msra.mxu0 %v3368
    %4960 = vmatprep.subr.bf16.mxu0 %v3419
    %4961 = vmatpush1.bf16.xpose.msra.mxu0 %v3418
    %4962 = vmatprep.subr.bf16.mxu0 %v3469
    %4963 = vmatpush1.bf16.xpose.msra.mxu0 %v3468
    %4964 = vmatprep.subr.bf16.mxu0 %v3519
    %4965 = vmatpush1.bf16.xpose.msra.mxu0 %v3518
    %4966 = vmatprep.subr.bf16.mxu0 %v3569
    %4967 = vmatpush1.bf16.xpose.msra.mxu0 %v3568
    %4968 = vmatprep.subr.bf16.mxu0 0
    %4969 = vmatpush1.bf16.xpose.msra.mxu0 0
    %4970 = vmatprep.subr.bf16.mxu0 0
    %4971 = vmatpush1.bf16.xpose.msra.mxu0 0
    %4972 = vmatprep.subr.bf16.mxu0 0
    %4973 = vmatpush1.bf16.xpose.msra.mxu0 0
    %4974 = vmatprep.mubr.bf16.mxu0 %v936
    %4975 = vmatmul.mubr.bf16.gmra.mrb[0].mxu0 %v934
    %v4976 = vpop.f32.mrb[0].mxu0
    %v4977 = vadd.f32 %v4936, %v4976
    %v4978 = vpop.f32.mrb[0].mxu0
    %v4979 = vadd.f32 %v4938, %v4978
    %v4980 = vpop.f32.mrb[0].mxu0
    %v4981 = vpop.f32.mrb[0].mxu0
    %4982 = vdwg.mxu0
    %4983 = vmatprep.subr.bf16.mxu0 %v2971
    %4984 = vmatpush1.bf16.xpose.msra.mxu0 %v2970
    %4985 = vmatprep.subr.bf16.mxu0 %v3021
    %4986 = vmatpush1.bf16.xpose.msra.mxu0 %v3020
    %4987 = vmatprep.subr.bf16.mxu0 %v3071
    %4988 = vmatpush1.bf16.xpose.msra.mxu0 %v3070
    %4989 = vmatprep.subr.bf16.mxu0 %v3121
    %4990 = vmatpush1.bf16.xpose.msra.mxu0 %v3120
    %4991 = vmatprep.subr.bf16.mxu0 %v3171
    %4992 = vmatpush1.bf16.xpose.msra.mxu0 %v3170
    %4993 = vmatprep.subr.bf16.mxu0 %v3221
    %4994 = vmatpush1.bf16.xpose.msra.mxu0 %v3220
    %4995 = vmatprep.subr.bf16.mxu0 %v3271
    %4996 = vmatpush1.bf16.xpose.msra.mxu0 %v3270
    %4997 = vmatprep.subr.bf16.mxu0 %v3321
    %4998 = vmatpush1.bf16.xpose.msra.mxu0 %v3320
    %4999 = vmatprep.subr.bf16.mxu0 %v3371
    %5000 = vmatpush1.bf16.xpose.msra.mxu0 %v3370
    %5001 = vmatprep.subr.bf16.mxu0 %v3421
    %5002 = vmatpush1.bf16.xpose.msra.mxu0 %v3420
    %5003 = vmatprep.subr.bf16.mxu0 %v3471
    %5004 = vmatpush1.bf16.xpose.msra.mxu0 %v3470
    %5005 = vmatprep.subr.bf16.mxu0 %v3521
    %5006 = vmatpush1.bf16.xpose.msra.mxu0 %v3520
    %5007 = vmatprep.subr.bf16.mxu0 %v3571
    %5008 = vmatpush1.bf16.xpose.msra.mxu0 %v3570
    %5009 = vmatprep.subr.bf16.mxu0 0
    %5010 = vmatpush1.bf16.xpose.msra.mxu0 0
    %5011 = vmatprep.subr.bf16.mxu0 0
    %5012 = vmatpush1.bf16.xpose.msra.mxu0 0
    %5013 = vmatprep.subr.bf16.mxu0 0
    %5014 = vmatpush1.bf16.xpose.msra.mxu0 0
    %5015 = vmatprep.mubr.bf16.mxu0 %v933
    %5016 = vmatmul.mubr.bf16.gmra.mrb[0].mxu0 %v919
    %v5017 = vpop.f32.mrb[0].mxu0
    %v5018 = vadd.f32 %v4977, %v5017
    %v5019 = vpop.f32.mrb[0].mxu0
    %v5020 = vadd.f32 %v4979, %v5019
    %v5021 = vpop.f32.mrb[0].mxu0
    %v5022 = vpop.f32.mrb[0].mxu0
    %5023 = vdwg.mxu0
    %5024 = vmatprep.subr.bf16.mxu0 %v2973
    %5025 = vmatpush1.bf16.xpose.msra.mxu0 %v2972
    %5026 = vmatprep.subr.bf16.mxu0 %v3023
    %5027 = vmatpush1.bf16.xpose.msra.mxu0 %v3022
    %5028 = vmatprep.subr.bf16.mxu0 %v3073
    %5029 = vmatpush1.bf16.xpose.msra.mxu0 %v3072
    %5030 = vmatprep.subr.bf16.mxu0 %v3123
    %5031 = vmatpush1.bf16.xpose.msra.mxu0 %v3122
    %5032 = vmatprep.subr.bf16.mxu0 %v3173
    %5033 = vmatpush1.bf16.xpose.msra.mxu0 %v3172
    %5034 = vmatprep.subr.bf16.mxu0 %v3223
    %5035 = vmatpush1.bf16.xpose.msra.mxu0 %v3222
    %5036 = vmatprep.subr.bf16.mxu0 %v3273
    %5037 = vmatpush1.bf16.xpose.msra.mxu0 %v3272
    %5038 = vmatprep.subr.bf16.mxu0 %v3323
    %5039 = vmatpush1.bf16.xpose.msra.mxu0 %v3322
    %5040 = vmatprep.subr.bf16.mxu0 %v3373
    %5041 = vmatpush1.bf16.xpose.msra.mxu0 %v3372
    %5042 = vmatprep.subr.bf16.mxu0 %v3423
    %5043 = vmatpush1.bf16.xpose.msra.mxu0 %v3422
    %5044 = vmatprep.subr.bf16.mxu0 %v3473
    %5045 = vmatpush1.bf16.xpose.msra.mxu0 %v3472
    %5046 = vmatprep.subr.bf16.mxu0 %v3523
    %5047 = vmatpush1.bf16.xpose.msra.mxu0 %v3522
    %5048 = vmatprep.subr.bf16.mxu0 %v3573
    %5049 = vmatpush1.bf16.xpose.msra.mxu0 %v3572
    %5050 = vmatprep.subr.bf16.mxu0 0
    %5051 = vmatpush1.bf16.xpose.msra.mxu0 0
    %5052 = vmatprep.subr.bf16.mxu0 0
    %5053 = vmatpush1.bf16.xpose.msra.mxu0 0
    %5054 = vmatprep.subr.bf16.mxu0 0
    %5055 = vmatpush1.bf16.xpose.msra.mxu0 0
    %5056 = vmatprep.mubr.bf16.mxu0 %v937
    %5057 = vmatmul.mubr.bf16.gmra.mrb[0].mxu0 %v935
    %v5058 = vpop.f32.mrb[0].mxu0
    %v5059 = vadd.f32 %v5018, %v5058
    %v5060 = vpop.f32.mrb[0].mxu0
    %v5061 = vadd.f32 %v5020, %v5060
    %v5062 = vpop.f32.mrb[0].mxu0
    %v5063 = vpop.f32.mrb[0].mxu0
    %5064 = vdwg.mxu0
    %5065 = vmatprep.subr.bf16.mxu0 %v2975
    %5066 = vmatpush1.bf16.xpose.msra.mxu0 %v2974
    %5067 = vmatprep.subr.bf16.mxu0 %v3025
    %5068 = vmatpush1.bf16.xpose.msra.mxu0 %v3024
    %5069 = vmatprep.subr.bf16.mxu0 %v3075
    %5070 = vmatpush1.bf16.xpose.msra.mxu0 %v3074
    %5071 = vmatprep.subr.bf16.mxu0 %v3125
    %5072 = vmatpush1.bf16.xpose.msra.mxu0 %v3124
    %5073 = vmatprep.subr.bf16.mxu0 %v3175
    %5074 = vmatpush1.bf16.xpose.msra.mxu0 %v3174
    %5075 = vmatprep.subr.bf16.mxu0 %v3225
    %5076 = vmatpush1.bf16.xpose.msra.mxu0 %v3224
    %5077 = vmatprep.subr.bf16.mxu0 %v3275
    %5078 = vmatpush1.bf16.xpose.msra.mxu0 %v3274
    %5079 = vmatprep.subr.bf16.mxu0 %v3325
    %5080 = vmatpush1.bf16.xpose.msra.mxu0 %v3324
    %5081 = vmatprep.subr.bf16.mxu0 %v3375
    %5082 = vmatpush1.bf16.xpose.msra.mxu0 %v3374
    %5083 = vmatprep.subr.bf16.mxu0 %v3425
    %5084 = vmatpush1.bf16.xpose.msra.mxu0 %v3424
    %5085 = vmatprep.subr.bf16.mxu0 %v3475
    %5086 = vmatpush1.bf16.xpose.msra.mxu0 %v3474
    %5087 = vmatprep.subr.bf16.mxu0 %v3525
    %5088 = vmatpush1.bf16.xpose.msra.mxu0 %v3524
    %5089 = vmatprep.subr.bf16.mxu0 %v3575
    %5090 = vmatpush1.bf16.xpose.msra.mxu0 %v3574
    %5091 = vmatprep.subr.bf16.mxu0 0
    %5092 = vmatpush1.bf16.xpose.msra.mxu0 0
    %5093 = vmatprep.subr.bf16.mxu0 0
    %5094 = vmatpush1.bf16.xpose.msra.mxu0 0
    %5095 = vmatprep.subr.bf16.mxu0 0
    %5096 = vmatpush1.bf16.xpose.msra.mxu0 0
    %5097 = vmatprep.mubr.bf16.mxu0 %v975
    %5098 = vmatmul.mubr.bf16.gmra.mrb[0].mxu0 %v961
    %v5099 = vpop.f32.mrb[0].mxu0
    %v5100 = vadd.f32 %v5059, %v5099
    %v5101 = vpop.f32.mrb[0].mxu0
    %v5102 = vadd.f32 %v5061, %v5101
    %v5103 = vpop.f32.mrb[0].mxu0
    %v5104 = vpop.f32.mrb[0].mxu0
    %5105 = vdwg.mxu0
    %5106 = vmatprep.subr.bf16.mxu0 %v2977
    %5107 = vmatpush1.bf16.xpose.msra.mxu0 %v2976
    %5108 = vmatprep.subr.bf16.mxu0 %v3027
    %5109 = vmatpush1.bf16.xpose.msra.mxu0 %v3026
    %5110 = vmatprep.subr.bf16.mxu0 %v3077
    %5111 = vmatpush1.bf16.xpose.msra.mxu0 %v3076
    %5112 = vmatprep.subr.bf16.mxu0 %v3127
    %5113 = vmatpush1.bf16.xpose.msra.mxu0 %v3126
    %5114 = vmatprep.subr.bf16.mxu0 %v3177
    %5115 = vmatpush1.bf16.xpose.msra.mxu0 %v3176
    %5116 = vmatprep.subr.bf16.mxu0 %v3227
    %5117 = vmatpush1.bf16.xpose.msra.mxu0 %v3226
    %5118 = vmatprep.subr.bf16.mxu0 %v3277
    %5119 = vmatpush1.bf16.xpose.msra.mxu0 %v3276
    %5120 = vmatprep.subr.bf16.mxu0 %v3327
    %5121 = vmatpush1.bf16.xpose.msra.mxu0 %v3326
    %5122 = vmatprep.subr.bf16.mxu0 %v3377
    %5123 = vmatpush1.bf16.xpose.msra.mxu0 %v3376
    %5124 = vmatprep.subr.bf16.mxu0 %v3427
    %5125 = vmatpush1.bf16.xpose.msra.mxu0 %v3426
    %5126 = vmatprep.subr.bf16.mxu0 %v3477
    %5127 = vmatpush1.bf16.xpose.msra.mxu0 %v3476
    %5128 = vmatprep.subr.bf16.mxu0 %v3527
    %5129 = vmatpush1.bf16.xpose.msra.mxu0 %v3526
    %5130 = vmatprep.subr.bf16.mxu0 %v3577
    %5131 = vmatpush1.bf16.xpose.msra.mxu0 %v3576
    %5132 = vmatprep.subr.bf16.mxu0 0
    %5133 = vmatpush1.bf16.xpose.msra.mxu0 0
    %5134 = vmatprep.subr.bf16.mxu0 0
    %5135 = vmatpush1.bf16.xpose.msra.mxu0 0
    %5136 = vmatprep.subr.bf16.mxu0 0
    %5137 = vmatpush1.bf16.xpose.msra.mxu0 0
    %5138 = vmatprep.mubr.bf16.mxu0 %v985
    %5139 = vmatmul.mubr.bf16.gmra.mrb[0].mxu0 %v983
    %v5140 = vpop.f32.mrb[0].mxu0
    %v5141 = vadd.f32 %v5100, %v5140
    %v5142 = vpop.f32.mrb[0].mxu0
    %v5143 = vadd.f32 %v5102, %v5142
    %v5144 = vpop.f32.mrb[0].mxu0
    %v5145 = vpop.f32.mrb[0].mxu0
    %5146 = vdwg.mxu0
    %5147 = vmatprep.subr.bf16.mxu0 %v2979
    %5148 = vmatpush1.bf16.xpose.msra.mxu0 %v2978
    %5149 = vmatprep.subr.bf16.mxu0 %v3029
    %5150 = vmatpush1.bf16.xpose.msra.mxu0 %v3028
    %5151 = vmatprep.subr.bf16.mxu0 %v3079
    %5152 = vmatpush1.bf16.xpose.msra.mxu0 %v3078
    %5153 = vmatprep.subr.bf16.mxu0 %v3129
    %5154 = vmatpush1.bf16.xpose.msra.mxu0 %v3128
    %5155 = vmatprep.subr.bf16.mxu0 %v3179
    %5156 = vmatpush1.bf16.xpose.msra.mxu0 %v3178
    %5157 = vmatprep.subr.bf16.mxu0 %v3229
    %5158 = vmatpush1.bf16.xpose.msra.mxu0 %v3228
    %5159 = vmatprep.subr.bf16.mxu0 %v3279
    %5160 = vmatpush1.bf16.xpose.msra.mxu0 %v3278
    %5161 = vmatprep.subr.bf16.mxu0 %v3329
    %5162 = vmatpush1.bf16.xpose.msra.mxu0 %v3328
    %5163 = vmatprep.subr.bf16.mxu0 %v3379
    %5164 = vmatpush1.bf16.xpose.msra.mxu0 %v3378
    %5165 = vmatprep.subr.bf16.mxu0 %v3429
    %5166 = vmatpush1.bf16.xpose.msra.mxu0 %v3428
    %5167 = vmatprep.subr.bf16.mxu0 %v3479
    %5168 = vmatpush1.bf16.xpose.msra.mxu0 %v3478
    %5169 = vmatprep.subr.bf16.mxu0 %v3529
    %5170 = vmatpush1.bf16.xpose.msra.mxu0 %v3528
    %5171 = vmatprep.subr.bf16.mxu0 %v3579
    %5172 = vmatpush1.bf16.xpose.msra.mxu0 %v3578
    %5173 = vmatprep.subr.bf16.mxu0 0
    %5174 = vmatpush1.bf16.xpose.msra.mxu0 0
    %5175 = vmatprep.subr.bf16.mxu0 0
    %5176 = vmatpush1.bf16.xpose.msra.mxu0 0
    %5177 = vmatprep.subr.bf16.mxu0 0
    %5178 = vmatpush1.bf16.xpose.msra.mxu0 0
    %5179 = vmatprep.mubr.bf16.mxu0 %v982
    %5180 = vmatmul.mubr.bf16.gmra.mrb[0].mxu0 %v968
    %v5181 = vpop.f32.mrb[0].mxu0
    %v5182 = vadd.f32 %v5141, %v5181
    %v5183 = vpop.f32.mrb[0].mxu0
    %v5184 = vadd.f32 %v5143, %v5183
    %v5185 = vpop.f32.mrb[0].mxu0
    %v5186 = vpop.f32.mrb[0].mxu0
    %5187 = vdwg.mxu0
    %5188 = vmatprep.subr.bf16.mxu0 %v2981
    %5189 = vmatpush1.bf16.xpose.msra.mxu0 %v2980
    %5190 = vmatprep.subr.bf16.mxu0 %v3031
    %5191 = vmatpush1.bf16.xpose.msra.mxu0 %v3030
    %5192 = vmatprep.subr.bf16.mxu0 %v3081
    %5193 = vmatpush1.bf16.xpose.msra.mxu0 %v3080
    %5194 = vmatprep.subr.bf16.mxu0 %v3131
    %5195 = vmatpush1.bf16.xpose.msra.mxu0 %v3130
    %5196 = vmatprep.subr.bf16.mxu0 %v3181
    %5197 = vmatpush1.bf16.xpose.msra.mxu0 %v3180
    %5198 = vmatprep.subr.bf16.mxu0 %v3231
    %5199 = vmatpush1.bf16.xpose.msra.mxu0 %v3230
    %5200 = vmatprep.subr.bf16.mxu0 %v3281
    %5201 = vmatpush1.bf16.xpose.msra.mxu0 %v3280
    %5202 = vmatprep.subr.bf16.mxu0 %v3331
    %5203 = vmatpush1.bf16.xpose.msra.mxu0 %v3330
    %5204 = vmatprep.subr.bf16.mxu0 %v3381
    %5205 = vmatpush1.bf16.xpose.msra.mxu0 %v3380
    %5206 = vmatprep.subr.bf16.mxu0 %v3431
    %5207 = vmatpush1.bf16.xpose.msra.mxu0 %v3430
    %5208 = vmatprep.subr.bf16.mxu0 %v3481
    %5209 = vmatpush1.bf16.xpose.msra.mxu0 %v3480
    %5210 = vmatprep.subr.bf16.mxu0 %v3531
    %5211 = vmatpush1.bf16.xpose.msra.mxu0 %v3530
    %5212 = vmatprep.subr.bf16.mxu0 %v3581
    %5213 = vmatpush1.bf16.xpose.msra.mxu0 %v3580
    %5214 = vmatprep.subr.bf16.mxu0 0
    %5215 = vmatpush1.bf16.xpose.msra.mxu0 0
    %5216 = vmatprep.subr.bf16.mxu0 0
    %5217 = vmatpush1.bf16.xpose.msra.mxu0 0
    %5218 = vmatprep.subr.bf16.mxu0 0
    %5219 = vmatpush1.bf16.xpose.msra.mxu0 0
    %5220 = vmatprep.mubr.bf16.mxu0 %v986
    %5221 = vmatmul.mubr.bf16.gmra.mrb[0].mxu0 %v984
    %v5222 = vpop.f32.mrb[0].mxu0
    %v5223 = vadd.f32 %v5182, %v5222
    %v5224 = vpop.f32.mrb[0].mxu0
    %v5225 = vadd.f32 %v5184, %v5224
    %v5226 = vpop.f32.mrb[0].mxu0
    %v5227 = vpop.f32.mrb[0].mxu0
    %5228 = vdwg.mxu0
    %5229 = vmatprep.subr.bf16.mxu0 %v2983
    %5230 = vmatpush1.bf16.xpose.msra.mxu0 %v2982
    %5231 = vmatprep.subr.bf16.mxu0 %v3033
    %5232 = vmatpush1.bf16.xpose.msra.mxu0 %v3032
    %5233 = vmatprep.subr.bf16.mxu0 %v3083
    %5234 = vmatpush1.bf16.xpose.msra.mxu0 %v3082
    %5235 = vmatprep.subr.bf16.mxu0 %v3133
    %5236 = vmatpush1.bf16.xpose.msra.mxu0 %v3132
    %5237 = vmatprep.subr.bf16.mxu0 %v3183
    %5238 = vmatpush1.bf16.xpose.msra.mxu0 %v3182
    %5239 = vmatprep.subr.bf16.mxu0 %v3233
    %5240 = vmatpush1.bf16.xpose.msra.mxu0 %v3232
    %5241 = vmatprep.subr.bf16.mxu0 %v3283
    %5242 = vmatpush1.bf16.xpose.msra.mxu0 %v3282
    %5243 = vmatprep.subr.bf16.mxu0 %v3333
    %5244 = vmatpush1.bf16.xpose.msra.mxu0 %v3332
    %5245 = vmatprep.subr.bf16.mxu0 %v3383
    %5246 = vmatpush1.bf16.xpose.msra.mxu0 %v3382
    %5247 = vmatprep.subr.bf16.mxu0 %v3433
    %5248 = vmatpush1.bf16.xpose.msra.mxu0 %v3432
    %5249 = vmatprep.subr.bf16.mxu0 %v3483
    %5250 = vmatpush1.bf16.xpose.msra.mxu0 %v3482
    %5251 = vmatprep.subr.bf16.mxu0 %v3533
    %5252 = vmatpush1.bf16.xpose.msra.mxu0 %v3532
    %5253 = vmatprep.subr.bf16.mxu0 %v3583
    %5254 = vmatpush1.bf16.xpose.msra.mxu0 %v3582
    %5255 = vmatprep.subr.bf16.mxu0 0
    %5256 = vmatpush1.bf16.xpose.msra.mxu0 0
    %5257 = vmatprep.subr.bf16.mxu0 0
    %5258 = vmatpush1.bf16.xpose.msra.mxu0 0
    %5259 = vmatprep.subr.bf16.mxu0 0
    %5260 = vmatpush1.bf16.xpose.msra.mxu0 0
    %5261 = vmatprep.mubr.bf16.mxu0 %v1008
    %5262 = vmatmul.mubr.bf16.gmra.mrb[0].mxu0 %v1001
    %v5263 = vpop.f32.mrb[0].mxu0
    %v5264 = vadd.f32 %v5223, %v5263
    %v5265 = vpop.f32.mrb[0].mxu0
    %v5266 = vadd.f32 %v5225, %v5265
    %v5267 = vpop.f32.mrb[0].mxu0
    %v5268 = vpop.f32.mrb[0].mxu0
    %5269 = vdwg.mxu0
    %v5270 = vmax.f32 %v5264, 0.0
    %v5271 = vmax.f32 %v5266, 0.0
    %vm5272 = vcmask 1040384
    %v5273 = vsel %vm5272, %v5270, -inf
    %vm5274 = vcmask 581632
    %v5275 = vsel %vm5274, %v5271, -inf
    %v5276 = vmax.f32 %v5273, %v5275
    %5277 = vmax.xlane.f32.xlu0 %v5276
    %v5278 = vpop.xlane.xlu0 %5277
    %v5279 = vsub.f32 %v5270, %v5278
    %v5280 = vsub.f32 %v5271, %v5278
    %v5281 = vmul.f32 %v5279, 1.442695
    %v5282 = vpow.pop %v5281
    %v5283 = vmul.f32 %v5280, 1.442695
    %v5284 = vpow.pop %v5283
    %v5285 = vsel %vm5272, %v5282, 0.0
    %v5286 = vsel %vm5274, %v5284, 0.0
    %v5287 = vadd.f32 %v5285, %v5286
    %5288 = vadd.xlane.f32.xlu0 %v5287
    %v5289 = vpop.xlane.xlu0 %5288
    %v5290 = vlog2.pop %v5289
    %v5291 = vmul.f32 %v5290, 0.6931472
    %v5292 = vsub.f32 %v5279, %v5291
    %v5293 = vsub.f32 %v5280, %v5291
    %v5296 = vcombine.low %v5292, %v5293
    %v5298 = vunpack.c.l.s4 1966171168
    %v5299 = vunpack.c.0.s8 %v5298
    %v5300 = vlaneseq
    %v5301 = vshrl.u32 %v5300, 7
    %v5302 = vsub.s32 %v5299, %v5301
    %v5303 = vrot.slane %v5296, %v5302
    %v5305 = vunpack.c.l.s4 1966171168
    %v5306 = vunpack.c.0.s8 %v5305
    %v5307 = vlaneseq
    %v5308 = vshrl.u32 %v5307, 7
    %v5309 = vsub.s32 %v5306, %v5308
    %v5310 = vrot.slane %v5303, %v5309
    %v5312 = vlaneseq
    %vm5313 = vcmp.ge.s32.totalorder %v5312, 0
    %vm5314 = vcmp.lt.s32.totalorder %v5312, 200
    %vm5315 = vmand %vm5313, %vm5314
    %5316 = vst.msk [vmem:[#allocation8] sm:$0x3] %vm5315, %v5310
    // Predicated region
    $region26: #{tpu_custom_call.1} parent=1 // pred_check
      _
    $region27: #{tpu_custom_call.1} parent=1 // pred_check_branch
      %5318 = sbr.rel (0) target = $region29
    $region28: #{tpu_custom_call.1} parent=1 // pred_region
      %s5320 = ssub.s32 32, 32
      %5321 = vsyncadd [#allocation4], %s5320
      %s5323 = sshll.u32 [#allocation8], 4
      %s5324 = int_to_ptr.vmem [resolvable:$true] %s5323
      %5326 = dma.vmem_to_hbm [thread:$0]  %s5324, 32, %s3, [#allocation4]
    $region29: #{tpu_custom_call.1} parent=1 // pred_fallthru
      _
    // Predicated region
    $region30: #{tpu_custom_call.1} parent=1 // pred_check
      _
    $region31: #{tpu_custom_call.1} parent=1 // pred_check_branch
      %5328 = sbr.rel (0) target = $region33
    $region32: #{tpu_custom_call.1} parent=1 // pred_region
      %5329 = dma.done [#allocation4], 32
    $region33: #{tpu_custom_call.1} parent=1 // pred_fallthru
      _
    %5330 = vsyncpa [#allocation3], 1
    %5331 = vsyncpa [#allocation6], 1
    %5332 = vsyncpa [#allocation4], 1

</llo_original>
